<compile_context>
chip_gen: v5e
topology: v5e:2x2
jax: 0.10.0
libtpu: 0.0.40
codegen_flags: <defaults>
</compile_context>

<pallas_src>
import functools

import jax
import jax.numpy as jnp
from jax.experimental import pallas as pl
from jax.experimental.pallas import tpu as pltpu

_LANE = 128


def _round_up(x, m):
    return (x + m - 1) // m * m


def _pick_time_chunk(T, B, max_chunk=32):
    """Largest chunk <= max_chunk that divides T and keeps the flattened
    (Tc*B, Din) input block sublane-aligned (divisible by 8)."""
    for c in range(min(T, max_chunk), 0, -1):
        if T % c == 0 and (c * B) % 8 == 0:
            return c
    return T  # full-array block is always a legal BlockSpec


# ------------------------------ kernel factory --------------------------------
def _make_lstm_kernel(Tc, B, Hp, emit_seq, mm_dtype):
    """One grid step = one time chunk of Tc steps for the whole batch."""

    def kernel(*refs):
        if emit_seq:
            x_ref, wih_ref, whh_ref, b_ref, out_ref, h_sc, c_sc, gx_sc = refs
        else:
            (x_ref, wih_ref, whh_ref, b_ref, fcw_ref, fcb_ref,
             out_ref, h_sc, c_sc, gx_sc) = refs

        t = pl.program_id(0)

        @pl.when(t == 0)
        def _init():
            h_sc[...] = jnp.zeros_like(h_sc)
            c_sc[...] = jnp.zeros_like(c_sc)

        # Hoisted input projection for the whole chunk: one (Tc*B, Din) MXU
        # matmul (bf16 operands, f32 accumulation) with the fused bias.
        x = x_ref[...].astype(mm_dtype)
        gx_sc[...] = (jnp.dot(x, wih_ref[...],
                              preferred_element_type=jnp.float32)
                      + b_ref[...])

        whh = whh_ref[...]
        h = h_sc[...]                                  # (B, Hp) f32
        c = c_sc[...]                                  # (B, Hp) f32

        # Recurrent part: only h @ W_hh + elementwise gates per step,
        # statically unrolled over the chunk.  Gate slices are lane aligned
        # because Hp is a multiple of 128.
        for s in range(Tc):
            gates = gx_sc[s * B:(s + 1) * B, :] + jnp.dot(
                h.astype(mm_dtype), whh, preferred_element_type=jnp.float32)
            i = jax.nn.sigmoid(gates[:, 0 * Hp:1 * Hp])
            f = jax.nn.sigmoid(gates[:, 1 * Hp:2 * Hp])
            g = jnp.tanh(gates[:, 2 * Hp:3 * Hp])
            o = jax.nn.sigmoid(gates[:, 3 * Hp:4 * Hp])
            c = f * c + i * g
            h = o * jnp.tanh(c)
            if emit_seq:
                out_ref[s] = h.astype(out_ref.dtype)

        # Persist recurrent state for the next time chunk.
        h_sc[...] = h
        c_sc[...] = c

        if not emit_seq:
            # Fused final Linear(H, 1): written once, on the last chunk.
            @pl.when(t == pl.num_programs(0) - 1)
            def _fc():
                y = jnp.dot(h, fcw_ref[...], preferred_element_type=jnp.float32)
                out_ref[...] = (y + fcb_ref[...]).astype(out_ref.dtype)

    return kernel


def _vmem_limit_bytes(Tc, B, Din, Hp, w_itemsize, x_itemsize, emit_seq):
    weights = (Din + Hp) * 4 * Hp * w_itemsize + 4 * Hp * 4
    x_bufs = 2 * Tc * B * Din * x_itemsize                     # double-buffered
    out_bufs = (2 * Tc * B * Hp * w_itemsize) if emit_seq else (2 * B * 4)
    scratch = (2 * B * Hp + Tc * B * 4 * Hp) * 4
    est = weights + x_bufs + out_bufs + scratch
    if est < 24 * 1024 * 1024:
        return None                                            # default is plenty
    # Raise the scoped limit, but keep well under v7x's 64 MiB physical VMEM.
    return min(int(est * 1.5) + (4 << 20), 100 * 1024 * 1024)


def _lstm_layer_call(x2d, T, B, wih_t, whh_t, bias, *, fc_wt=None, fc_b=None,
                     time_chunk):
    """x2d: time-major flattened input (T*B, Din).
    Returns (T, B, Hp) hidden sequence, or (B, 1) if the FC is fused in."""
    _, Din = x2d.shape
    Hp = whh_t.shape[0]
    Tc = time_chunk
    assert T % Tc == 0
    n_chunks = T // Tc
    mm_dtype = whh_t.dtype
    emit_seq = fc_wt is None

    in_specs = [
        pl.BlockSpec((Tc * B, Din), lambda t: (t, 0)),
        pl.BlockSpec((Din, 4 * Hp), lambda t: (0, 0)),
        pl.BlockSpec((Hp, 4 * Hp), lambda t: (0, 0)),
        pl.BlockSpec((1, 4 * Hp), lambda t: (0, 0)),
    ]
    args = [x2d, wih_t, whh_t, bias]

    if emit_seq:
        out_shape = jax.ShapeDtypeStruct((T, B, Hp), mm_dtype)
        out_specs = pl.BlockSpec((Tc, B, Hp), lambda t: (t, 0, 0))
    else:
        O = fc_wt.shape[1]
        in_specs += [
            pl.BlockSpec((Hp, O), lambda t: (0, 0)),
            pl.BlockSpec((1, O), lambda t: (0, 0)),
        ]
        args += [fc_wt, fc_b]
        out_shape = jax.ShapeDtypeStruct((B, O), jnp.float32)
        out_specs = pl.BlockSpec((B, O), lambda t: (0, 0))

    vmem_limit = _vmem_limit_bytes(
        Tc, B, Din, Hp,
        w_itemsize=jnp.dtype(mm_dtype).itemsize,
        x_itemsize=jnp.dtype(x2d.dtype).itemsize,
        emit_seq=emit_seq)

    # Note: a leading "parallel" batch-shard grid axis (v7x dual-TensorCore
    # split) is intentionally not used here since the test batch (2) is too
    # small to shard across cores with aligned sublanes.
    return pl.pallas_call(
        _make_lstm_kernel(Tc, B, Hp, emit_seq, mm_dtype),
        out_shape=out_shape,
        grid_spec=pltpu.PrefetchScalarGridSpec(
            num_scalar_prefetch=0,
            grid=(n_chunks,),
            in_specs=in_specs,
            out_specs=out_specs,
            scratch_shapes=[
                pltpu.VMEM((B, Hp), jnp.float32),           # h state
                pltpu.VMEM((B, Hp), jnp.float32),           # c state
                pltpu.VMEM((Tc * B, 4 * Hp), jnp.float32),  # chunk input proj
            ],
        ),
        compiler_params=pltpu.CompilerParams(
            dimension_semantics=("arbitrary",),
            vmem_limit_bytes=vmem_limit,
        ),
    )(*args)


# ------------------------ one-time parameter preparation ----------------------
def _pad_gate_cols(w, H, Hp):
    """(rows, 4H) -> (rows, 4Hp): zero-pad each of the i|f|g|o blocks to Hp."""
    if Hp == H:
        return w
    rows = w.shape[0]
    w4 = w.reshape(rows, 4, H)
    return jnp.zeros((rows, 4, Hp), w.dtype).at[:, :, :H].set(w4).reshape(
        rows, 4 * Hp)


def _pad_rows(w, Rp):
    if w.shape[0] == Rp:
        return w
    return jnp.zeros((Rp,) + w.shape[1:], w.dtype).at[:w.shape[0]].set(w)


def prepare_kernel_params(params, input_size, hidden_size, num_layers,
                          mm_dtype=jnp.bfloat16):
    """Transpose, fuse biases, pad the gate/hidden dims to multiples of 128
    lanes and cast the matmul operands to `mm_dtype` -- done once, not per
    forward call."""
    H = hidden_size
    Hp = _round_up(H, _LANE)
    layers = []
    for layer in range(num_layers):
        w_ih, w_hh, b_ih, b_hh = params["lstm"][layer]
        wih_t = _pad_gate_cols(jnp.transpose(w_ih), H, Hp)       # (Din, 4Hp)
        if layer > 0:
            wih_t = _pad_rows(wih_t, Hp)                         # (Hp, 4Hp)
        whh_t = _pad_rows(_pad_gate_cols(jnp.transpose(w_hh), H, Hp), Hp)
        bias = _pad_gate_cols((b_ih + b_hh).reshape(1, 4 * H), H, Hp)
        layers.append((wih_t.astype(mm_dtype), whh_t.astype(mm_dtype),
                       bias.astype(jnp.float32)))
    fc_wt = _pad_rows(jnp.transpose(params["fc_w"]), Hp).astype(jnp.float32)
    fc_b = params["fc_b"].reshape(1, -1).astype(jnp.float32)
    return {"lstm": layers, "fc_wt": fc_wt, "fc_b": fc_b}


# ---------------------------------- forward ------------------------------------
@functools.partial(jax.jit, static_argnames=("time_chunk",))
def lstm_forward(x_btd, kparams, *, time_chunk=None):
    """Full forward: x (B, T, D) -> (B, 1). Matches the PyTorch module."""
    B, T, D = x_btd.shape
    if time_chunk is None:
        time_chunk = _pick_time_chunk(T, B)
    x = jnp.transpose(x_btd, (1, 0, 2))            # time-major (T, B, D)
    xin = x.reshape(T * B, D)                      # flattened, lane = feature
    layers = kparams["lstm"]
    n = len(layers)
    for layer, (wih_t, whh_t, bias) in enumerate(layers):
        if layer == n - 1:
            return _lstm_layer_call(xin, T, B, wih_t, whh_t, bias,
                                    fc_wt=kparams["fc_wt"],
                                    fc_b=kparams["fc_b"],
                                    time_chunk=time_chunk)
        hseq = _lstm_layer_call(xin, T, B, wih_t, whh_t, bias,
                                time_chunk=time_chunk)          # (T, B, Hp)
        xin = hseq.reshape(T * B, hseq.shape[-1])
    raise AssertionError("num_layers must be >= 1")


# -------------------------- PyTorch-layout parameters --------------------------
def init_params(key, input_size, hidden_size, num_layers):
    k = 1.0 / jnp.sqrt(hidden_size)
    params = {"lstm": []}
    for layer in range(num_layers):
        d_in = input_size if layer == 0 else hidden_size
        key, k1, k2, k3, k4 = jax.random.split(key, 5)
        w_ih = jax.random.uniform(k1, (4 * hidden_size, d_in), jnp.float32, -k, k)
        w_hh = jax.random.uniform(k2, (4 * hidden_size, hidden_size), jnp.float32, -k, k)
        b_ih = jax.random.uniform(k3, (4 * hidden_size,), jnp.float32, -k, k)
        b_hh = jax.random.uniform(k4, (4 * hidden_size,), jnp.float32, -k, k)
        params["lstm"].append((w_ih, w_hh, b_ih, b_hh))
    key, k5, k6 = jax.random.split(key, 3)
    params["fc_w"] = jax.random.uniform(k5, (1, hidden_size), jnp.float32, -k, k)
    params["fc_b"] = jax.random.uniform(k6, (1,), jnp.float32, -k, k)
    return params


# ------------------------------ pure-JAX reference -----------------------------
def _reference(x_btd, params, num_layers, hidden_size):
    B = x_btd.shape[0]
    x = x_btd
    for layer in range(num_layers):
        w_ih, w_hh, b_ih, b_hh = params["lstm"][layer]

        def step(carry, xt):
            h, c = carry
            gates = xt @ w_ih.T + h @ w_hh.T + b_ih + b_hh
            i, f, g, o = jnp.split(gates, 4, axis=-1)
            c = jax.nn.sigmoid(f) * c + jax.nn.sigmoid(i) * jnp.tanh(g)
            h = jax.nn.sigmoid(o) * jnp.tanh(c)
            return (h, c), h

        h0 = jnp.zeros((B, hidden_size), jnp.float32)
        c0 = jnp.zeros((B, hidden_size), jnp.float32)
        _, ys = jax.lax.scan(step, (h0, c0), jnp.transpose(x, (1, 0, 2)))
        x = jnp.transpose(ys, (1, 0, 2))
    return x[:, -1, :] @ params["fc_w"].T + params["fc_b"]


if __name__ == "__main__":
    batch, seq, input_size, hidden_size, num_layers = 2, 8, 16, 32, 2

    key = jax.random.PRNGKey(0)
    key, kx, kp = jax.random.split(key, 3)
    x = jax.random.normal(kx, (batch, seq, input_size), jnp.float32)
    params = init_params(kp, input_size, hidden_size, num_layers)

    ref = _reference(x, params, num_layers, hidden_size)

    # 1) f32 matmul path: tight check of the kernel structure / gate padding.
    kparams_f32 = prepare_kernel_params(params, input_size, hidden_size,
                                        num_layers, mm_dtype=jnp.float32)
    out_f32 = jax.block_until_ready(lstm_forward(x, kparams_f32))
    assert out_f32.shape == (batch, 1), out_f32.shape
    assert jnp.allclose(out_f32, ref, atol=2e-3, rtol=2e-3), (out_f32, ref)

    # 2) bf16 matmul operands with f32 accumulation (performance default):
    #    small, documented precision divergence from the all-f32 reference.
    kparams_bf16 = prepare_kernel_params(params, input_size, hidden_size,
                                         num_layers, mm_dtype=jnp.bfloat16)
    out_bf16 = jax.block_until_ready(lstm_forward(x, kparams_bf16))
    assert out_bf16.shape == (batch, 1), out_bf16.shape
    assert jnp.allclose(out_bf16, ref, atol=3e-2, rtol=3e-2), (out_bf16, ref)

    print("KERNEL_OK")
</pallas_src>

<mosaic_0001>
module attributes {stable_mosaic.version = 11 : i64} {
  func.func @kernel(%arg0: i32, %arg1: memref<16x128xf32, #tpu.memory_space<vmem>>, %arg2: memref<128x512xf32, #tpu.memory_space<vmem>>, %arg3: memref<128x512xf32, #tpu.memory_space<vmem>>, %arg4: memref<1x512xf32, #tpu.memory_space<vmem>>, %arg5: memref<128x1xf32, #tpu.memory_space<vmem>>, %arg6: memref<1x1xf32, #tpu.memory_space<vmem>>, %arg7: memref<2x1xf32, #tpu.memory_space<vmem>>, %arg8: memref<2x128xf32, #tpu.memory_space<vmem>>, %arg9: memref<2x128xf32, #tpu.memory_space<vmem>>, %arg10: memref<16x512xf32, #tpu.memory_space<vmem>>) attributes {dimension_semantics = [#tpu.dimension_semantics<arbitrary>], iteration_bounds = array<i64: 1>, scalar_prefetch = 0 : i64, scratch_operands = 3 : i64, tpu.core_type = #tpu.core_type<tc>, window_params = [{transform_indices = @transform_0, window_bounds = array<i64: 16, 128>}, {pipeline_mode = #tpu.pipeline_mode<synchronous>, transform_indices = @transform_1, window_bounds = array<i64: 128, 512>}, {pipeline_mode = #tpu.pipeline_mode<synchronous>, transform_indices = @transform_2, window_bounds = array<i64: 128, 512>}, {pipeline_mode = #tpu.pipeline_mode<synchronous>, transform_indices = @transform_3, window_bounds = array<i64: 1, 512>}, {pipeline_mode = #tpu.pipeline_mode<synchronous>, transform_indices = @transform_4, window_bounds = array<i64: 128, 1>}, {pipeline_mode = #tpu.pipeline_mode<synchronous>, transform_indices = @transform_5, window_bounds = array<i64: 1, 1>}, {pipeline_mode = #tpu.pipeline_mode<synchronous>, transform_indices = @transform_6, window_bounds = array<i64: 2, 1>}]} {
    %c0_i32 = arith.constant 0 : i32
    %0 = arith.cmpi eq, %arg0, %c0_i32 : i32
    %1 = arith.extui %0 : i1 to i32
    %c0_i32_0 = arith.constant 0 : i32
    %2 = arith.cmpi ne, %1, %c0_i32_0 : i32
    scf.if %2 {
      %cst_61 = arith.constant 0.000000e+00 : f32
      %242 = vector.broadcast %cst_61 : f32 to vector<2x128xf32>
      %c0_62 = arith.constant 0 : index
      %c0_63 = arith.constant 0 : index
      %243 = vector.load %arg8[%c0_62, %c0_63] : memref<2x128xf32, #tpu.memory_space<vmem>>, vector<2x128xf32>
      tpu.vector_store %arg8[%c0_62, %c0_63], %242 {strides = array<i32>} : memref<2x128xf32, #tpu.memory_space<vmem>>, vector<2x128xf32>,
      %cst_64 = arith.constant 0.000000e+00 : f32
      %244 = vector.broadcast %cst_64 : f32 to vector<2x128xf32>
      %c0_65 = arith.constant 0 : index
      %c0_66 = arith.constant 0 : index
      %245 = vector.load %arg9[%c0_65, %c0_66] : memref<2x128xf32, #tpu.memory_space<vmem>>, vector<2x128xf32>
      tpu.vector_store %arg9[%c0_65, %c0_66], %244 {strides = array<i32>} : memref<2x128xf32, #tpu.memory_space<vmem>>, vector<2x128xf32>,
    } else {
    }
    %c0 = arith.constant 0 : index
    %c0_1 = arith.constant 0 : index
    %3 = vector.load %arg1[%c0, %c0_1] : memref<16x128xf32, #tpu.memory_space<vmem>>, vector<16x128xf32>
    %c0_2 = arith.constant 0 : index
    %c0_3 = arith.constant 0 : index
    %4 = vector.load %arg2[%c0_2, %c0_3] : memref<128x512xf32, #tpu.memory_space<vmem>>, vector<128x512xf32>
    %cst = arith.constant dense<0.000000e+00> : vector<16x512xf32>
    %5 = tpu.matmul %3, %4, %cst {dimension_numbers = #tpu.dot_dimension_numbers<[1], [0], [0], [1], [0, 0, 1, 1], [], []>} : vector<16x128xf32>, vector<128x512xf32>, vector<16x512xf32> -> vector<16x512xf32>
    %c0_4 = arith.constant 0 : index
    %c0_5 = arith.constant 0 : index
    %6 = vector.load %arg4[%c0_4, %c0_5] : memref<1x512xf32, #tpu.memory_space<vmem>>, vector<1x512xf32>
    %7 = vector.broadcast %6 : vector<1x512xf32> to vector<16x512xf32>
    %8 = arith.addf %5, %7 : vector<16x512xf32>
    %c0_6 = arith.constant 0 : index
    %c0_7 = arith.constant 0 : index
    %9 = vector.load %arg10[%c0_6, %c0_7] : memref<16x512xf32, #tpu.memory_space<vmem>>, vector<16x512xf32>
    tpu.vector_store %arg10[%c0_6, %c0_7], %8 {strides = array<i32>} : memref<16x512xf32, #tpu.memory_space<vmem>>, vector<16x512xf32>,
    %c0_8 = arith.constant 0 : index
    %c0_9 = arith.constant 0 : index
    %10 = vector.load %arg3[%c0_8, %c0_9] : memref<128x512xf32, #tpu.memory_space<vmem>>, vector<128x512xf32>
    %c0_10 = arith.constant 0 : index
    %c0_11 = arith.constant 0 : index
    %11 = vector.load %arg8[%c0_10, %c0_11] : memref<2x128xf32, #tpu.memory_space<vmem>>, vector<2x128xf32>
    %c0_12 = arith.constant 0 : index
    %c0_13 = arith.constant 0 : index
    %12 = vector.load %arg9[%c0_12, %c0_13] : memref<2x128xf32, #tpu.memory_space<vmem>>, vector<2x128xf32>
    %c0_14 = arith.constant 0 : index
    %c0_15 = arith.constant 0 : index
    %13 = vector.load %arg10[%c0_14, %c0_15] : memref<16x512xf32, #tpu.memory_space<vmem>>, vector<2x512xf32>
    %cst_16 = arith.constant dense<0.000000e+00> : vector<2x512xf32>
    %14 = tpu.matmul %11, %10, %cst_16 {dimension_numbers = #tpu.dot_dimension_numbers<[1], [0], [0], [1], [0, 0, 1, 1], [], []>} : vector<2x128xf32>, vector<128x512xf32>, vector<2x512xf32> -> vector<2x512xf32>
    %15 = arith.addf %13, %14 : vector<2x512xf32>
    %16 = vector.extract_strided_slice %15 {offsets = [0, 0], sizes = [2, 128], strides = [1, 1]} : vector<2x512xf32> to vector<2x128xf32>
    %17 = arith.negf %16 : vector<2x128xf32>
    %18 = math.exp %17 : vector<2x128xf32>
    %cst_17 = arith.constant 1.000000e+00 : f32
    %19 = vector.broadcast %cst_17 : f32 to vector<2x128xf32>
    %20 = arith.addf %19, %18 : vector<2x128xf32>
    %21 = arith.divf %19, %20 : vector<2x128xf32>
    %22 = vector.extract_strided_slice %15 {offsets = [0, 128], sizes = [2, 128], strides = [1, 1]} : vector<2x512xf32> to vector<2x128xf32>
    %23 = arith.negf %22 : vector<2x128xf32>
    %24 = math.exp %23 : vector<2x128xf32>
    %cst_18 = arith.constant 1.000000e+00 : f32
    %25 = vector.broadcast %cst_18 : f32 to vector<2x128xf32>
    %26 = arith.addf %25, %24 : vector<2x128xf32>
    %27 = arith.divf %25, %26 : vector<2x128xf32>
    %28 = vector.extract_strided_slice %15 {offsets = [0, 256], sizes = [2, 128], strides = [1, 1]} : vector<2x512xf32> to vector<2x128xf32>
    %29 = math.tanh %28 : vector<2x128xf32>
    %30 = vector.extract_strided_slice %15 {offsets = [0, 384], sizes = [2, 128], strides = [1, 1]} : vector<2x512xf32> to vector<2x128xf32>
    %31 = arith.negf %30 : vector<2x128xf32>
    %32 = math.exp %31 : vector<2x128xf32>
    %cst_19 = arith.constant 1.000000e+00 : f32
    %33 = vector.broadcast %cst_19 : f32 to vector<2x128xf32>
    %34 = arith.addf %33, %32 : vector<2x128xf32>
    %35 = arith.divf %33, %34 : vector<2x128xf32>
    %36 = arith.mulf %27, %12 : vector<2x128xf32>
    %37 = arith.mulf %21, %29 : vector<2x128xf32>
    %38 = arith.addf %36, %37 : vector<2x128xf32>
    %39 = math.tanh %38 : vector<2x128xf32>
    %40 = arith.mulf %35, %39 : vector<2x128xf32>
    %c2 = arith.constant 2 : index
    %c0_20 = arith.constant 0 : index
    %41 = vector.load %arg10[%c2, %c0_20] : memref<16x512xf32, #tpu.memory_space<vmem>>, vector<2x512xf32>
    %cst_21 = arith.constant dense<0.000000e+00> : vector<2x512xf32>
    %42 = tpu.matmul %40, %10, %cst_21 {dimension_numbers = #tpu.dot_dimension_numbers<[1], [0], [0], [1], [0, 0, 1, 1], [], []>} : vector<2x128xf32>, vector<128x512xf32>, vector<2x512xf32> -> vector<2x512xf32>
    %43 = arith.addf %41, %42 : vector<2x512xf32>
    %44 = vector.extract_strided_slice %43 {offsets = [0, 0], sizes = [2, 128], strides = [1, 1]} : vector<2x512xf32> to vector<2x128xf32>
    %45 = arith.negf %44 : vector<2x128xf32>
    %46 = math.exp %45 : vector<2x128xf32>
    %cst_22 = arith.constant 1.000000e+00 : f32
    %47 = vector.broadcast %cst_22 : f32 to vector<2x128xf32>
    %48 = arith.addf %47, %46 : vector<2x128xf32>
    %49 = arith.divf %47, %48 : vector<2x128xf32>
    %50 = vector.extract_strided_slice %43 {offsets = [0, 128], sizes = [2, 128], strides = [1, 1]} : vector<2x512xf32> to vector<2x128xf32>
    %51 = arith.negf %50 : vector<2x128xf32>
    %52 = math.exp %51 : vector<2x128xf32>
    %cst_23 = arith.constant 1.000000e+00 : f32
    %53 = vector.broadcast %cst_23 : f32 to vector<2x128xf32>
    %54 = arith.addf %53, %52 : vector<2x128xf32>
    %55 = arith.divf %53, %54 : vector<2x128xf32>
    %56 = vector.extract_strided_slice %43 {offsets = [0, 256], sizes = [2, 128], strides = [1, 1]} : vector<2x512xf32> to vector<2x128xf32>
    %57 = math.tanh %56 : vector<2x128xf32>
    %58 = vector.extract_strided_slice %43 {offsets = [0, 384], sizes = [2, 128], strides = [1, 1]} : vector<2x512xf32> to vector<2x128xf32>
    %59 = arith.negf %58 : vector<2x128xf32>
    %60 = math.exp %59 : vector<2x128xf32>
    %cst_24 = arith.constant 1.000000e+00 : f32
    %61 = vector.broadcast %cst_24 : f32 to vector<2x128xf32>
    %62 = arith.addf %61, %60 : vector<2x128xf32>
    %63 = arith.divf %61, %62 : vector<2x128xf32>
    %64 = arith.mulf %55, %38 : vector<2x128xf32>
    %65 = arith.mulf %49, %57 : vector<2x128xf32>
    %66 = arith.addf %64, %65 : vector<2x128xf32>
    %67 = math.tanh %66 : vector<2x128xf32>
    %68 = arith.mulf %63, %67 : vector<2x128xf32>
    %c4 = arith.constant 4 : index
    %c0_25 = arith.constant 0 : index
    %69 = vector.load %arg10[%c4, %c0_25] : memref<16x512xf32, #tpu.memory_space<vmem>>, vector<2x512xf32>
    %cst_26 = arith.constant dense<0.000000e+00> : vector<2x512xf32>
    %70 = tpu.matmul %68, %10, %cst_26 {dimension_numbers = #tpu.dot_dimension_numbers<[1], [0], [0], [1], [0, 0, 1, 1], [], []>} : vector<2x128xf32>, vector<128x512xf32>, vector<2x512xf32> -> vector<2x512xf32>
    %71 = arith.addf %69, %70 : vector<2x512xf32>
    %72 = vector.extract_strided_slice %71 {offsets = [0, 0], sizes = [2, 128], strides = [1, 1]} : vector<2x512xf32> to vector<2x128xf32>
    %73 = arith.negf %72 : vector<2x128xf32>
    %74 = math.exp %73 : vector<2x128xf32>
    %cst_27 = arith.constant 1.000000e+00 : f32
    %75 = vector.broadcast %cst_27 : f32 to vector<2x128xf32>
    %76 = arith.addf %75, %74 : vector<2x128xf32>
    %77 = arith.divf %75, %76 : vector<2x128xf32>
    %78 = vector.extract_strided_slice %71 {offsets = [0, 128], sizes = [2, 128], strides = [1, 1]} : vector<2x512xf32> to vector<2x128xf32>
    %79 = arith.negf %78 : vector<2x128xf32>
    %80 = math.exp %79 : vector<2x128xf32>
    %cst_28 = arith.constant 1.000000e+00 : f32
    %81 = vector.broadcast %cst_28 : f32 to vector<2x128xf32>
    %82 = arith.addf %81, %80 : vector<2x128xf32>
    %83 = arith.divf %81, %82 : vector<2x128xf32>
    %84 = vector.extract_strided_slice %71 {offsets = [0, 256], sizes = [2, 128], strides = [1, 1]} : vector<2x512xf32> to vector<2x128xf32>
    %85 = math.tanh %84 : vector<2x128xf32>
    %86 = vector.extract_strided_slice %71 {offsets = [0, 384], sizes = [2, 128], strides = [1, 1]} : vector<2x512xf32> to vector<2x128xf32>
    %87 = arith.negf %86 : vector<2x128xf32>
    %88 = math.exp %87 : vector<2x128xf32>
    %cst_29 = arith.constant 1.000000e+00 : f32
    %89 = vector.broadcast %cst_29 : f32 to vector<2x128xf32>
    %90 = arith.addf %89, %88 : vector<2x128xf32>
    %91 = arith.divf %89, %90 : vector<2x128xf32>
    %92 = arith.mulf %83, %66 : vector<2x128xf32>
    %93 = arith.mulf %77, %85 : vector<2x128xf32>
    %94 = arith.addf %92, %93 : vector<2x128xf32>
    %95 = math.tanh %94 : vector<2x128xf32>
    %96 = arith.mulf %91, %95 : vector<2x128xf32>
    %c6 = arith.constant 6 : index
    %c0_30 = arith.constant 0 : index
    %97 = vector.load %arg10[%c6, %c0_30] : memref<16x512xf32, #tpu.memory_space<vmem>>, vector<2x512xf32>
    %cst_31 = arith.constant dense<0.000000e+00> : vector<2x512xf32>
    %98 = tpu.matmul %96, %10, %cst_31 {dimension_numbers = #tpu.dot_dimension_numbers<[1], [0], [0], [1], [0, 0, 1, 1], [], []>} : vector<2x128xf32>, vector<128x512xf32>, vector<2x512xf32> -> vector<2x512xf32>
    %99 = arith.addf %97, %98 : vector<2x512xf32>
    %100 = vector.extract_strided_slice %99 {offsets = [0, 0], sizes = [2, 128], strides = [1, 1]} : vector<2x512xf32> to vector<2x128xf32>
    %101 = arith.negf %100 : vector<2x128xf32>
    %102 = math.exp %101 : vector<2x128xf32>
    %cst_32 = arith.constant 1.000000e+00 : f32
    %103 = vector.broadcast %cst_32 : f32 to vector<2x128xf32>
    %104 = arith.addf %103, %102 : vector<2x128xf32>
    %105 = arith.divf %103, %104 : vector<2x128xf32>
    %106 = vector.extract_strided_slice %99 {offsets = [0, 128], sizes = [2, 128], strides = [1, 1]} : vector<2x512xf32> to vector<2x128xf32>
    %107 = arith.negf %106 : vector<2x128xf32>
    %108 = math.exp %107 : vector<2x128xf32>
    %cst_33 = arith.constant 1.000000e+00 : f32
    %109 = vector.broadcast %cst_33 : f32 to vector<2x128xf32>
    %110 = arith.addf %109, %108 : vector<2x128xf32>
    %111 = arith.divf %109, %110 : vector<2x128xf32>
    %112 = vector.extract_strided_slice %99 {offsets = [0, 256], sizes = [2, 128], strides = [1, 1]} : vector<2x512xf32> to vector<2x128xf32>
    %113 = math.tanh %112 : vector<2x128xf32>
    %114 = vector.extract_strided_slice %99 {offsets = [0, 384], sizes = [2, 128], strides = [1, 1]} : vector<2x512xf32> to vector<2x128xf32>
    %115 = arith.negf %114 : vector<2x128xf32>
    %116 = math.exp %115 : vector<2x128xf32>
    %cst_34 = arith.constant 1.000000e+00 : f32
    %117 = vector.broadcast %cst_34 : f32 to vector<2x128xf32>
    %118 = arith.addf %117, %116 : vector<2x128xf32>
    %119 = arith.divf %117, %118 : vector<2x128xf32>
    %120 = arith.mulf %111, %94 : vector<2x128xf32>
    %121 = arith.mulf %105, %113 : vector<2x128xf32>
    %122 = arith.addf %120, %121 : vector<2x128xf32>
    %123 = math.tanh %122 : vector<2x128xf32>
    %124 = arith.mulf %119, %123 : vector<2x128xf32>
    %c8 = arith.constant 8 : index
    %c0_35 = arith.constant 0 : index
    %125 = vector.load %arg10[%c8, %c0_35] : memref<16x512xf32, #tpu.memory_space<vmem>>, vector<2x512xf32>
    %cst_36 = arith.constant dense<0.000000e+00> : vector<2x512xf32>
    %126 = tpu.matmul %124, %10, %cst_36 {dimension_numbers = #tpu.dot_dimension_numbers<[1], [0], [0], [1], [0, 0, 1, 1], [], []>} : vector<2x128xf32>, vector<128x512xf32>, vector<2x512xf32> -> vector<2x512xf32>
    %127 = arith.addf %125, %126 : vector<2x512xf32>
    %128 = vector.extract_strided_slice %127 {offsets = [0, 0], sizes = [2, 128], strides = [1, 1]} : vector<2x512xf32> to vector<2x128xf32>
    %129 = arith.negf %128 : vector<2x128xf32>
    %130 = math.exp %129 : vector<2x128xf32>
    %cst_37 = arith.constant 1.000000e+00 : f32
    %131 = vector.broadcast %cst_37 : f32 to vector<2x128xf32>
    %132 = arith.addf %131, %130 : vector<2x128xf32>
    %133 = arith.divf %131, %132 : vector<2x128xf32>
    %134 = vector.extract_strided_slice %127 {offsets = [0, 128], sizes = [2, 128], strides = [1, 1]} : vector<2x512xf32> to vector<2x128xf32>
    %135 = arith.negf %134 : vector<2x128xf32>
    %136 = math.exp %135 : vector<2x128xf32>
    %cst_38 = arith.constant 1.000000e+00 : f32
    %137 = vector.broadcast %cst_38 : f32 to vector<2x128xf32>
    %138 = arith.addf %137, %136 : vector<2x128xf32>
    %139 = arith.divf %137, %138 : vector<2x128xf32>
    %140 = vector.extract_strided_slice %127 {offsets = [0, 256], sizes = [2, 128], strides = [1, 1]} : vector<2x512xf32> to vector<2x128xf32>
    %141 = math.tanh %140 : vector<2x128xf32>
    %142 = vector.extract_strided_slice %127 {offsets = [0, 384], sizes = [2, 128], strides = [1, 1]} : vector<2x512xf32> to vector<2x128xf32>
    %143 = arith.negf %142 : vector<2x128xf32>
    %144 = math.exp %143 : vector<2x128xf32>
    %cst_39 = arith.constant 1.000000e+00 : f32
    %145 = vector.broadcast %cst_39 : f32 to vector<2x128xf32>
    %146 = arith.addf %145, %144 : vector<2x128xf32>
    %147 = arith.divf %145, %146 : vector<2x128xf32>
    %148 = arith.mulf %139, %122 : vector<2x128xf32>
    %149 = arith.mulf %133, %141 : vector<2x128xf32>
    %150 = arith.addf %148, %149 : vector<2x128xf32>
    %151 = math.tanh %150 : vector<2x128xf32>
    %152 = arith.mulf %147, %151 : vector<2x128xf32>
    %c10 = arith.constant 10 : index
    %c0_40 = arith.constant 0 : index
    %153 = vector.load %arg10[%c10, %c0_40] : memref<16x512xf32, #tpu.memory_space<vmem>>, vector<2x512xf32>
    %cst_41 = arith.constant dense<0.000000e+00> : vector<2x512xf32>
    %154 = tpu.matmul %152, %10, %cst_41 {dimension_numbers = #tpu.dot_dimension_numbers<[1], [0], [0], [1], [0, 0, 1, 1], [], []>} : vector<2x128xf32>, vector<128x512xf32>, vector<2x512xf32> -> vector<2x512xf32>
    %155 = arith.addf %153, %154 : vector<2x512xf32>
    %156 = vector.extract_strided_slice %155 {offsets = [0, 0], sizes = [2, 128], strides = [1, 1]} : vector<2x512xf32> to vector<2x128xf32>
    %157 = arith.negf %156 : vector<2x128xf32>
    %158 = math.exp %157 : vector<2x128xf32>
    %cst_42 = arith.constant 1.000000e+00 : f32
    %159 = vector.broadcast %cst_42 : f32 to vector<2x128xf32>
    %160 = arith.addf %159, %158 : vector<2x128xf32>
    %161 = arith.divf %159, %160 : vector<2x128xf32>
    %162 = vector.extract_strided_slice %155 {offsets = [0, 128], sizes = [2, 128], strides = [1, 1]} : vector<2x512xf32> to vector<2x128xf32>
    %163 = arith.negf %162 : vector<2x128xf32>
    %164 = math.exp %163 : vector<2x128xf32>
    %cst_43 = arith.constant 1.000000e+00 : f32
    %165 = vector.broadcast %cst_43 : f32 to vector<2x128xf32>
    %166 = arith.addf %165, %164 : vector<2x128xf32>
    %167 = arith.divf %165, %166 : vector<2x128xf32>
    %168 = vector.extract_strided_slice %155 {offsets = [0, 256], sizes = [2, 128], strides = [1, 1]} : vector<2x512xf32> to vector<2x128xf32>
    %169 = math.tanh %168 : vector<2x128xf32>
    %170 = vector.extract_strided_slice %155 {offsets = [0, 384], sizes = [2, 128], strides = [1, 1]} : vector<2x512xf32> to vector<2x128xf32>
    %171 = arith.negf %170 : vector<2x128xf32>
    %172 = math.exp %171 : vector<2x128xf32>
    %cst_44 = arith.constant 1.000000e+00 : f32
    %173 = vector.broadcast %cst_44 : f32 to vector<2x128xf32>
    %174 = arith.addf %173, %172 : vector<2x128xf32>
    %175 = arith.divf %173, %174 : vector<2x128xf32>
    %176 = arith.mulf %167, %150 : vector<2x128xf32>
    %177 = arith.mulf %161, %169 : vector<2x128xf32>
    %178 = arith.addf %176, %177 : vector<2x128xf32>
    %179 = math.tanh %178 : vector<2x128xf32>
    %180 = arith.mulf %175, %179 : vector<2x128xf32>
    %c12 = arith.constant 12 : index
    %c0_45 = arith.constant 0 : index
    %181 = vector.load %arg10[%c12, %c0_45] : memref<16x512xf32, #tpu.memory_space<vmem>>, vector<2x512xf32>
    %cst_46 = arith.constant dense<0.000000e+00> : vector<2x512xf32>
    %182 = tpu.matmul %180, %10, %cst_46 {dimension_numbers = #tpu.dot_dimension_numbers<[1], [0], [0], [1], [0, 0, 1, 1], [], []>} : vector<2x128xf32>, vector<128x512xf32>, vector<2x512xf32> -> vector<2x512xf32>
    %183 = arith.addf %181, %182 : vector<2x512xf32>
    %184 = vector.extract_strided_slice %183 {offsets = [0, 0], sizes = [2, 128], strides = [1, 1]} : vector<2x512xf32> to vector<2x128xf32>
    %185 = arith.negf %184 : vector<2x128xf32>
    %186 = math.exp %185 : vector<2x128xf32>
    %cst_47 = arith.constant 1.000000e+00 : f32
    %187 = vector.broadcast %cst_47 : f32 to vector<2x128xf32>
    %188 = arith.addf %187, %186 : vector<2x128xf32>
    %189 = arith.divf %187, %188 : vector<2x128xf32>
    %190 = vector.extract_strided_slice %183 {offsets = [0, 128], sizes = [2, 128], strides = [1, 1]} : vector<2x512xf32> to vector<2x128xf32>
    %191 = arith.negf %190 : vector<2x128xf32>
    %192 = math.exp %191 : vector<2x128xf32>
    %cst_48 = arith.constant 1.000000e+00 : f32
    %193 = vector.broadcast %cst_48 : f32 to vector<2x128xf32>
    %194 = arith.addf %193, %192 : vector<2x128xf32>
    %195 = arith.divf %193, %194 : vector<2x128xf32>
    %196 = vector.extract_strided_slice %183 {offsets = [0, 256], sizes = [2, 128], strides = [1, 1]} : vector<2x512xf32> to vector<2x128xf32>
    %197 = math.tanh %196 : vector<2x128xf32>
    %198 = vector.extract_strided_slice %183 {offsets = [0, 384], sizes = [2, 128], strides = [1, 1]} : vector<2x512xf32> to vector<2x128xf32>
    %199 = arith.negf %198 : vector<2x128xf32>
    %200 = math.exp %199 : vector<2x128xf32>
    %cst_49 = arith.constant 1.000000e+00 : f32
    %201 = vector.broadcast %cst_49 : f32 to vector<2x128xf32>
    %202 = arith.addf %201, %200 : vector<2x128xf32>
    %203 = arith.divf %201, %202 : vector<2x128xf32>
    %204 = arith.mulf %195, %178 : vector<2x128xf32>
    %205 = arith.mulf %189, %197 : vector<2x128xf32>
    %206 = arith.addf %204, %205 : vector<2x128xf32>
    %207 = math.tanh %206 : vector<2x128xf32>
    %208 = arith.mulf %203, %207 : vector<2x128xf32>
    %c14 = arith.constant 14 : index
    %c0_50 = arith.constant 0 : index
    %209 = vector.load %arg10[%c14, %c0_50] : memref<16x512xf32, #tpu.memory_space<vmem>>, vector<2x512xf32>
    %cst_51 = arith.constant dense<0.000000e+00> : vector<2x512xf32>
    %210 = tpu.matmul %208, %10, %cst_51 {dimension_numbers = #tpu.dot_dimension_numbers<[1], [0], [0], [1], [0, 0, 1, 1], [], []>} : vector<2x128xf32>, vector<128x512xf32>, vector<2x512xf32> -> vector<2x512xf32>
    %211 = arith.addf %209, %210 : vector<2x512xf32>
    %212 = vector.extract_strided_slice %211 {offsets = [0, 0], sizes = [2, 128], strides = [1, 1]} : vector<2x512xf32> to vector<2x128xf32>
    %213 = arith.negf %212 : vector<2x128xf32>
    %214 = math.exp %213 : vector<2x128xf32>
    %cst_52 = arith.constant 1.000000e+00 : f32
    %215 = vector.broadcast %cst_52 : f32 to vector<2x128xf32>
    %216 = arith.addf %215, %214 : vector<2x128xf32>
    %217 = arith.divf %215, %216 : vector<2x128xf32>
    %218 = vector.extract_strided_slice %211 {offsets = [0, 128], sizes = [2, 128], strides = [1, 1]} : vector<2x512xf32> to vector<2x128xf32>
    %219 = arith.negf %218 : vector<2x128xf32>
    %220 = math.exp %219 : vector<2x128xf32>
    %cst_53 = arith.constant 1.000000e+00 : f32
    %221 = vector.broadcast %cst_53 : f32 to vector<2x128xf32>
    %222 = arith.addf %221, %220 : vector<2x128xf32>
    %223 = arith.divf %221, %222 : vector<2x128xf32>
    %224 = vector.extract_strided_slice %211 {offsets = [0, 256], sizes = [2, 128], strides = [1, 1]} : vector<2x512xf32> to vector<2x128xf32>
    %225 = math.tanh %224 : vector<2x128xf32>
    %226 = vector.extract_strided_slice %211 {offsets = [0, 384], sizes = [2, 128], strides = [1, 1]} : vector<2x512xf32> to vector<2x128xf32>
    %227 = arith.negf %226 : vector<2x128xf32>
    %228 = math.exp %227 : vector<2x128xf32>
    %cst_54 = arith.constant 1.000000e+00 : f32
    %229 = vector.broadcast %cst_54 : f32 to vector<2x128xf32>
    %230 = arith.addf %229, %228 : vector<2x128xf32>
    %231 = arith.divf %229, %230 : vector<2x128xf32>
    %232 = arith.mulf %223, %206 : vector<2x128xf32>
    %233 = arith.mulf %217, %225 : vector<2x128xf32>
    %234 = arith.addf %232, %233 : vector<2x128xf32>
    %235 = math.tanh %234 : vector<2x128xf32>
    %236 = arith.mulf %231, %235 : vector<2x128xf32>
    %c0_55 = arith.constant 0 : index
    %c0_56 = arith.constant 0 : index
    %237 = vector.load %arg8[%c0_55, %c0_56] : memref<2x128xf32, #tpu.memory_space<vmem>>, vector<2x128xf32>
    tpu.vector_store %arg8[%c0_55, %c0_56], %236 {strides = array<i32>} : memref<2x128xf32, #tpu.memory_space<vmem>>, vector<2x128xf32>,
    %c0_57 = arith.constant 0 : index
    %c0_58 = arith.constant 0 : index
    %238 = vector.load %arg9[%c0_57, %c0_58] : memref<2x128xf32, #tpu.memory_space<vmem>>, vector<2x128xf32>
    tpu.vector_store %arg9[%c0_57, %c0_58], %234 {strides = array<i32>} : memref<2x128xf32, #tpu.memory_space<vmem>>, vector<2x128xf32>,
    %c0_i32_59 = arith.constant 0 : i32
    %239 = arith.cmpi eq, %arg0, %c0_i32_59 : i32
    %240 = arith.extui %239 : i1 to i32
    %c0_i32_60 = arith.constant 0 : i32
    %241 = arith.cmpi ne, %240, %c0_i32_60 : i32
    scf.if %241 {
      %c0_61 = arith.constant 0 : index
      %c0_62 = arith.constant 0 : index
      %242 = vector.load %arg5[%c0_61, %c0_62] : memref<128x1xf32, #tpu.memory_space<vmem>>, vector<128x1xf32>
      %cst_63 = arith.constant dense<0.000000e+00> : vector<2x1xf32>
      %243 = tpu.matmul %236, %242, %cst_63 {dimension_numbers = #tpu.dot_dimension_numbers<[1], [0], [0], [1], [0, 0, 1, 1], [], []>} : vector<2x128xf32>, vector<128x1xf32>, vector<2x1xf32> -> vector<2x1xf32>
      %c0_64 = arith.constant 0 : index
      %c0_65 = arith.constant 0 : index
      %244 = vector.load %arg6[%c0_64, %c0_65] : memref<1x1xf32, #tpu.memory_space<vmem>>, vector<1x1xf32>
      %245 = vector.broadcast %244 : vector<1x1xf32> to vector<2x1xf32>
      %246 = arith.addf %243, %245 : vector<2x1xf32>
      %c0_66 = arith.constant 0 : index
      %c0_67 = arith.constant 0 : index
      %247 = vector.load %arg7[%c0_66, %c0_67] : memref<2x1xf32, #tpu.memory_space<vmem>>, vector<2x1xf32>
      tpu.vector_store %arg7[%c0_66, %c0_67], %246 {strides = array<i32>} : memref<2x1xf32, #tpu.memory_space<vmem>>, vector<2x1xf32>,
    } else {
    }
    return
  }
  func.func @transform_0(%arg0: i32) -> (i32, i32) {
    %c0_i32 = arith.constant 0 : i32
    %c0_i32_0 = arith.constant 0 : i32
    return %arg0, %c0_i32 : i32, i32
  }
  func.func @transform_1(%arg0: i32) -> (i32, i32) {
    %c0_i32 = arith.constant 0 : i32
    %c0_i32_0 = arith.constant 0 : i32
    %c0_i32_1 = arith.constant 0 : i32
    return %c0_i32, %c0_i32_0 : i32, i32
  }
  func.func @transform_2(%arg0: i32) -> (i32, i32) {
    %c0_i32 = arith.constant 0 : i32
    %c0_i32_0 = arith.constant 0 : i32
    %c0_i32_1 = arith.constant 0 : i32
    return %c0_i32, %c0_i32_0 : i32, i32
  }
  func.func @transform_3(%arg0: i32) -> (i32, i32) {
    %c0_i32 = arith.constant 0 : i32
    %c0_i32_0 = arith.constant 0 : i32
    %c0_i32_1 = arith.constant 0 : i32
    return %c0_i32, %c0_i32_0 : i32, i32
  }
  func.func @transform_4(%arg0: i32) -> (i32, i32) {
    %c0_i32 = arith.constant 0 : i32
    %c0_i32_0 = arith.constant 0 : i32
    %c0_i32_1 = arith.constant 0 : i32
    return %c0_i32, %c0_i32_0 : i32, i32
  }
  func.func @transform_5(%arg0: i32) -> (i32, i32) {
    %c0_i32 = arith.constant 0 : i32
    %c0_i32_0 = arith.constant 0 : i32
    %c0_i32_1 = arith.constant 0 : i32
    return %c0_i32, %c0_i32_0 : i32, i32
  }
  func.func @transform_6(%arg0: i32) -> (i32, i32) {
    %c0_i32 = arith.constant 0 : i32
    %c0_i32_0 = arith.constant 0 : i32
    %c0_i32_1 = arith.constant 0 : i32
    return %c0_i32, %c0_i32_0 : i32, i32
  }
}

module attributes {stable_mosaic.version = 11 : i64} {
  func.func @kernel(%arg0: i32, %arg1: memref<16x16xf32, #tpu.memory_space<vmem>>, %arg2: memref<16x512xf32, #tpu.memory_space<vmem>>, %arg3: memref<128x512xf32, #tpu.memory_space<vmem>>, %arg4: memref<1x512xf32, #tpu.memory_space<vmem>>, %arg5: memref<8x2x128xf32, #tpu.memory_space<vmem>>, %arg6: memref<2x128xf32, #tpu.memory_space<vmem>>, %arg7: memref<2x128xf32, #tpu.memory_space<vmem>>, %arg8: memref<16x512xf32, #tpu.memory_space<vmem>>) attributes {dimension_semantics = [#tpu.dimension_semantics<arbitrary>], iteration_bounds = array<i64: 1>, scalar_prefetch = 0 : i64, scratch_operands = 3 : i64, tpu.core_type = #tpu.core_type<tc>, window_params = [{transform_indices = @transform_0, window_bounds = array<i64: 16, 16>}, {pipeline_mode = #tpu.pipeline_mode<synchronous>, transform_indices = @transform_1, window_bounds = array<i64: 16, 512>}, {pipeline_mode = #tpu.pipeline_mode<synchronous>, transform_indices = @transform_2, window_bounds = array<i64: 128, 512>}, {pipeline_mode = #tpu.pipeline_mode<synchronous>, transform_indices = @transform_3, window_bounds = array<i64: 1, 512>}, {transform_indices = @transform_4, window_bounds = array<i64: 8, 2, 128>}]} {
    %c0_i32 = arith.constant 0 : i32
    %0 = arith.cmpi eq, %arg0, %c0_i32 : i32
    %1 = arith.extui %0 : i1 to i32
    %c0_i32_0 = arith.constant 0 : i32
    %2 = arith.cmpi ne, %1, %c0_i32_0 : i32
    scf.if %2 {
      %cst_79 = arith.constant 0.000000e+00 : f32
      %263 = vector.broadcast %cst_79 : f32 to vector<2x128xf32>
      %c0_80 = arith.constant 0 : index
      %c0_81 = arith.constant 0 : index
      %264 = vector.load %arg6[%c0_80, %c0_81] : memref<2x128xf32, #tpu.memory_space<vmem>>, vector<2x128xf32>
      tpu.vector_store %arg6[%c0_80, %c0_81], %263 {strides = array<i32>} : memref<2x128xf32, #tpu.memory_space<vmem>>, vector<2x128xf32>,
      %cst_82 = arith.constant 0.000000e+00 : f32
      %265 = vector.broadcast %cst_82 : f32 to vector<2x128xf32>
      %c0_83 = arith.constant 0 : index
      %c0_84 = arith.constant 0 : index
      %266 = vector.load %arg7[%c0_83, %c0_84] : memref<2x128xf32, #tpu.memory_space<vmem>>, vector<2x128xf32>
      tpu.vector_store %arg7[%c0_83, %c0_84], %265 {strides = array<i32>} : memref<2x128xf32, #tpu.memory_space<vmem>>, vector<2x128xf32>,
    } else {
    }
    %c0 = arith.constant 0 : index
    %c0_1 = arith.constant 0 : index
    %3 = vector.load %arg1[%c0, %c0_1] : memref<16x16xf32, #tpu.memory_space<vmem>>, vector<16x16xf32>
    %c0_2 = arith.constant 0 : index
    %c0_3 = arith.constant 0 : index
    %4 = vector.load %arg2[%c0_2, %c0_3] : memref<16x512xf32, #tpu.memory_space<vmem>>, vector<16x512xf32>
    %cst = arith.constant dense<0.000000e+00> : vector<16x512xf32>
    %5 = tpu.matmul %3, %4, %cst {dimension_numbers = #tpu.dot_dimension_numbers<[1], [0], [0], [1], [0, 0, 1, 1], [], []>} : vector<16x16xf32>, vector<16x512xf32>, vector<16x512xf32> -> vector<16x512xf32>
    %c0_4 = arith.constant 0 : index
    %c0_5 = arith.constant 0 : index
    %6 = vector.load %arg4[%c0_4, %c0_5] : memref<1x512xf32, #tpu.memory_space<vmem>>, vector<1x512xf32>
    %7 = vector.broadcast %6 : vector<1x512xf32> to vector<16x512xf32>
    %8 = arith.addf %5, %7 : vector<16x512xf32>
    %c0_6 = arith.constant 0 : index
    %c0_7 = arith.constant 0 : index
    %9 = vector.load %arg8[%c0_6, %c0_7] : memref<16x512xf32, #tpu.memory_space<vmem>>, vector<16x512xf32>
    tpu.vector_store %arg8[%c0_6, %c0_7], %8 {strides = array<i32>} : memref<16x512xf32, #tpu.memory_space<vmem>>, vector<16x512xf32>,
    %c0_8 = arith.constant 0 : index
    %c0_9 = arith.constant 0 : index
    %10 = vector.load %arg3[%c0_8, %c0_9] : memref<128x512xf32, #tpu.memory_space<vmem>>, vector<128x512xf32>
    %c0_10 = arith.constant 0 : index
    %c0_11 = arith.constant 0 : index
    %11 = vector.load %arg6[%c0_10, %c0_11] : memref<2x128xf32, #tpu.memory_space<vmem>>, vector<2x128xf32>
    %c0_12 = arith.constant 0 : index
    %c0_13 = arith.constant 0 : index
    %12 = vector.load %arg7[%c0_12, %c0_13] : memref<2x128xf32, #tpu.memory_space<vmem>>, vector<2x128xf32>
    %c0_14 = arith.constant 0 : index
    %c0_15 = arith.constant 0 : index
    %13 = vector.load %arg8[%c0_14, %c0_15] : memref<16x512xf32, #tpu.memory_space<vmem>>, vector<2x512xf32>
    %cst_16 = arith.constant dense<0.000000e+00> : vector<2x512xf32>
    %14 = tpu.matmul %11, %10, %cst_16 {dimension_numbers = #tpu.dot_dimension_numbers<[1], [0], [0], [1], [0, 0, 1, 1], [], []>} : vector<2x128xf32>, vector<128x512xf32>, vector<2x512xf32> -> vector<2x512xf32>
    %15 = arith.addf %13, %14 : vector<2x512xf32>
    %16 = vector.extract_strided_slice %15 {offsets = [0, 0], sizes = [2, 128], strides = [1, 1]} : vector<2x512xf32> to vector<2x128xf32>
    %17 = arith.negf %16 : vector<2x128xf32>
    %18 = math.exp %17 : vector<2x128xf32>
    %cst_17 = arith.constant 1.000000e+00 : f32
    %19 = vector.broadcast %cst_17 : f32 to vector<2x128xf32>
    %20 = arith.addf %19, %18 : vector<2x128xf32>
    %21 = arith.divf %19, %20 : vector<2x128xf32>
    %22 = vector.extract_strided_slice %15 {offsets = [0, 128], sizes = [2, 128], strides = [1, 1]} : vector<2x512xf32> to vector<2x128xf32>
    %23 = arith.negf %22 : vector<2x128xf32>
    %24 = math.exp %23 : vector<2x128xf32>
    %cst_18 = arith.constant 1.000000e+00 : f32
    %25 = vector.broadcast %cst_18 : f32 to vector<2x128xf32>
    %26 = arith.addf %25, %24 : vector<2x128xf32>
    %27 = arith.divf %25, %26 : vector<2x128xf32>
    %28 = vector.extract_strided_slice %15 {offsets = [0, 256], sizes = [2, 128], strides = [1, 1]} : vector<2x512xf32> to vector<2x128xf32>
    %29 = math.tanh %28 : vector<2x128xf32>
    %30 = vector.extract_strided_slice %15 {offsets = [0, 384], sizes = [2, 128], strides = [1, 1]} : vector<2x512xf32> to vector<2x128xf32>
    %31 = arith.negf %30 : vector<2x128xf32>
    %32 = math.exp %31 : vector<2x128xf32>
    %cst_19 = arith.constant 1.000000e+00 : f32
    %33 = vector.broadcast %cst_19 : f32 to vector<2x128xf32>
    %34 = arith.addf %33, %32 : vector<2x128xf32>
    %35 = arith.divf %33, %34 : vector<2x128xf32>
    %36 = arith.mulf %27, %12 : vector<2x128xf32>
    %37 = arith.mulf %21, %29 : vector<2x128xf32>
    %38 = arith.addf %36, %37 : vector<2x128xf32>
    %39 = math.tanh %38 : vector<2x128xf32>
    %40 = arith.mulf %35, %39 : vector<2x128xf32>
    %c0_20 = arith.constant 0 : index
    %c0_21 = arith.constant 0 : index
    %c0_22 = arith.constant 0 : index
    %41 = vector.load %arg5[%c0_20, %c0_21, %c0_22] : memref<8x2x128xf32, #tpu.memory_space<vmem>>, vector<1x2x128xf32>
    %42 = vector.shape_cast %41 : vector<1x2x128xf32> to vector<2x128xf32>
    %43 = vector.shape_cast %40 : vector<2x128xf32> to vector<1x2x128xf32>
    tpu.vector_store %arg5[%c0_20, %c0_21, %c0_22], %43 {strides = array<i32>} : memref<8x2x128xf32, #tpu.memory_space<vmem>>, vector<1x2x128xf32>,
    %c2 = arith.constant 2 : index
    %c0_23 = arith.constant 0 : index
    %44 = vector.load %arg8[%c2, %c0_23] : memref<16x512xf32, #tpu.memory_space<vmem>>, vector<2x512xf32>
    %cst_24 = arith.constant dense<0.000000e+00> : vector<2x512xf32>
    %45 = tpu.matmul %40, %10, %cst_24 {dimension_numbers = #tpu.dot_dimension_numbers<[1], [0], [0], [1], [0, 0, 1, 1], [], []>} : vector<2x128xf32>, vector<128x512xf32>, vector<2x512xf32> -> vector<2x512xf32>
    %46 = arith.addf %44, %45 : vector<2x512xf32>
    %47 = vector.extract_strided_slice %46 {offsets = [0, 0], sizes = [2, 128], strides = [1, 1]} : vector<2x512xf32> to vector<2x128xf32>
    %48 = arith.negf %47 : vector<2x128xf32>
    %49 = math.exp %48 : vector<2x128xf32>
    %cst_25 = arith.constant 1.000000e+00 : f32
    %50 = vector.broadcast %cst_25 : f32 to vector<2x128xf32>
    %51 = arith.addf %50, %49 : vector<2x128xf32>
    %52 = arith.divf %50, %51 : vector<2x128xf32>
    %53 = vector.extract_strided_slice %46 {offsets = [0, 128], sizes = [2, 128], strides = [1, 1]} : vector<2x512xf32> to vector<2x128xf32>
    %54 = arith.negf %53 : vector<2x128xf32>
    %55 = math.exp %54 : vector<2x128xf32>
    %cst_26 = arith.constant 1.000000e+00 : f32
    %56 = vector.broadcast %cst_26 : f32 to vector<2x128xf32>
    %57 = arith.addf %56, %55 : vector<2x128xf32>
    %58 = arith.divf %56, %57 : vector<2x128xf32>
    %59 = vector.extract_strided_slice %46 {offsets = [0, 256], sizes = [2, 128], strides = [1, 1]} : vector<2x512xf32> to vector<2x128xf32>
    %60 = math.tanh %59 : vector<2x128xf32>
    %61 = vector.extract_strided_slice %46 {offsets = [0, 384], sizes = [2, 128], strides = [1, 1]} : vector<2x512xf32> to vector<2x128xf32>
    %62 = arith.negf %61 : vector<2x128xf32>
    %63 = math.exp %62 : vector<2x128xf32>
    %cst_27 = arith.constant 1.000000e+00 : f32
    %64 = vector.broadcast %cst_27 : f32 to vector<2x128xf32>
    %65 = arith.addf %64, %63 : vector<2x128xf32>
    %66 = arith.divf %64, %65 : vector<2x128xf32>
    %67 = arith.mulf %58, %38 : vector<2x128xf32>
    %68 = arith.mulf %52, %60 : vector<2x128xf32>
    %69 = arith.addf %67, %68 : vector<2x128xf32>
    %70 = math.tanh %69 : vector<2x128xf32>
    %71 = arith.mulf %66, %70 : vector<2x128xf32>
    %c1 = arith.constant 1 : index
    %c0_28 = arith.constant 0 : index
    %c0_29 = arith.constant 0 : index
    %72 = vector.load %arg5[%c1, %c0_28, %c0_29] : memref<8x2x128xf32, #tpu.memory_space<vmem>>, vector<1x2x128xf32>
    %73 = vector.shape_cast %72 : vector<1x2x128xf32> to vector<2x128xf32>
    %74 = vector.shape_cast %71 : vector<2x128xf32> to vector<1x2x128xf32>
    tpu.vector_store %arg5[%c1, %c0_28, %c0_29], %74 {strides = array<i32>} : memref<8x2x128xf32, #tpu.memory_space<vmem>>, vector<1x2x128xf32>,
    %c4 = arith.constant 4 : index
    %c0_30 = arith.constant 0 : index
    %75 = vector.load %arg8[%c4, %c0_30] : memref<16x512xf32, #tpu.memory_space<vmem>>, vector<2x512xf32>
    %cst_31 = arith.constant dense<0.000000e+00> : vector<2x512xf32>
    %76 = tpu.matmul %71, %10, %cst_31 {dimension_numbers = #tpu.dot_dimension_numbers<[1], [0], [0], [1], [0, 0, 1, 1], [], []>} : vector<2x128xf32>, vector<128x512xf32>, vector<2x512xf32> -> vector<2x512xf32>
    %77 = arith.addf %75, %76 : vector<2x512xf32>
    %78 = vector.extract_strided_slice %77 {offsets = [0, 0], sizes = [2, 128], strides = [1, 1]} : vector<2x512xf32> to vector<2x128xf32>
    %79 = arith.negf %78 : vector<2x128xf32>
    %80 = math.exp %79 : vector<2x128xf32>
    %cst_32 = arith.constant 1.000000e+00 : f32
    %81 = vector.broadcast %cst_32 : f32 to vector<2x128xf32>
    %82 = arith.addf %81, %80 : vector<2x128xf32>
    %83 = arith.divf %81, %82 : vector<2x128xf32>
    %84 = vector.extract_strided_slice %77 {offsets = [0, 128], sizes = [2, 128], strides = [1, 1]} : vector<2x512xf32> to vector<2x128xf32>
    %85 = arith.negf %84 : vector<2x128xf32>
    %86 = math.exp %85 : vector<2x128xf32>
    %cst_33 = arith.constant 1.000000e+00 : f32
    %87 = vector.broadcast %cst_33 : f32 to vector<2x128xf32>
    %88 = arith.addf %87, %86 : vector<2x128xf32>
    %89 = arith.divf %87, %88 : vector<2x128xf32>
    %90 = vector.extract_strided_slice %77 {offsets = [0, 256], sizes = [2, 128], strides = [1, 1]} : vector<2x512xf32> to vector<2x128xf32>
    %91 = math.tanh %90 : vector<2x128xf32>
    %92 = vector.extract_strided_slice %77 {offsets = [0, 384], sizes = [2, 128], strides = [1, 1]} : vector<2x512xf32> to vector<2x128xf32>
    %93 = arith.negf %92 : vector<2x128xf32>
    %94 = math.exp %93 : vector<2x128xf32>
    %cst_34 = arith.constant 1.000000e+00 : f32
    %95 = vector.broadcast %cst_34 : f32 to vector<2x128xf32>
    %96 = arith.addf %95, %94 : vector<2x128xf32>
    %97 = arith.divf %95, %96 : vector<2x128xf32>
    %98 = arith.mulf %89, %69 : vector<2x128xf32>
    %99 = arith.mulf %83, %91 : vector<2x128xf32>
    %100 = arith.addf %98, %99 : vector<2x128xf32>
    %101 = math.tanh %100 : vector<2x128xf32>
    %102 = arith.mulf %97, %101 : vector<2x128xf32>
    %c2_35 = arith.constant 2 : index
    %c0_36 = arith.constant 0 : index
    %c0_37 = arith.constant 0 : index
    %103 = vector.load %arg5[%c2_35, %c0_36, %c0_37] : memref<8x2x128xf32, #tpu.memory_space<vmem>>, vector<1x2x128xf32>
    %104 = vector.shape_cast %103 : vector<1x2x128xf32> to vector<2x128xf32>
    %105 = vector.shape_cast %102 : vector<2x128xf32> to vector<1x2x128xf32>
    tpu.vector_store %arg5[%c2_35, %c0_36, %c0_37], %105 {strides = array<i32>} : memref<8x2x128xf32, #tpu.memory_space<vmem>>, vector<1x2x128xf32>,
    %c6 = arith.constant 6 : index
    %c0_38 = arith.constant 0 : index
    %106 = vector.load %arg8[%c6, %c0_38] : memref<16x512xf32, #tpu.memory_space<vmem>>, vector<2x512xf32>
    %cst_39 = arith.constant dense<0.000000e+00> : vector<2x512xf32>
    %107 = tpu.matmul %102, %10, %cst_39 {dimension_numbers = #tpu.dot_dimension_numbers<[1], [0], [0], [1], [0, 0, 1, 1], [], []>} : vector<2x128xf32>, vector<128x512xf32>, vector<2x512xf32> -> vector<2x512xf32>
    %108 = arith.addf %106, %107 : vector<2x512xf32>
    %109 = vector.extract_strided_slice %108 {offsets = [0, 0], sizes = [2, 128], strides = [1, 1]} : vector<2x512xf32> to vector<2x128xf32>
    %110 = arith.negf %109 : vector<2x128xf32>
    %111 = math.exp %110 : vector<2x128xf32>
    %cst_40 = arith.constant 1.000000e+00 : f32
    %112 = vector.broadcast %cst_40 : f32 to vector<2x128xf32>
    %113 = arith.addf %112, %111 : vector<2x128xf32>
    %114 = arith.divf %112, %113 : vector<2x128xf32>
    %115 = vector.extract_strided_slice %108 {offsets = [0, 128], sizes = [2, 128], strides = [1, 1]} : vector<2x512xf32> to vector<2x128xf32>
    %116 = arith.negf %115 : vector<2x128xf32>
    %117 = math.exp %116 : vector<2x128xf32>
    %cst_41 = arith.constant 1.000000e+00 : f32
    %118 = vector.broadcast %cst_41 : f32 to vector<2x128xf32>
    %119 = arith.addf %118, %117 : vector<2x128xf32>
    %120 = arith.divf %118, %119 : vector<2x128xf32>
    %121 = vector.extract_strided_slice %108 {offsets = [0, 256], sizes = [2, 128], strides = [1, 1]} : vector<2x512xf32> to vector<2x128xf32>
    %122 = math.tanh %121 : vector<2x128xf32>
    %123 = vector.extract_strided_slice %108 {offsets = [0, 384], sizes = [2, 128], strides = [1, 1]} : vector<2x512xf32> to vector<2x128xf32>
    %124 = arith.negf %123 : vector<2x128xf32>
    %125 = math.exp %124 : vector<2x128xf32>
    %cst_42 = arith.constant 1.000000e+00 : f32
    %126 = vector.broadcast %cst_42 : f32 to vector<2x128xf32>
    %127 = arith.addf %126, %125 : vector<2x128xf32>
    %128 = arith.divf %126, %127 : vector<2x128xf32>
    %129 = arith.mulf %120, %100 : vector<2x128xf32>
    %130 = arith.mulf %114, %122 : vector<2x128xf32>
    %131 = arith.addf %129, %130 : vector<2x128xf32>
    %132 = math.tanh %131 : vector<2x128xf32>
    %133 = arith.mulf %128, %132 : vector<2x128xf32>
    %c3 = arith.constant 3 : index
    %c0_43 = arith.constant 0 : index
    %c0_44 = arith.constant 0 : index
    %134 = vector.load %arg5[%c3, %c0_43, %c0_44] : memref<8x2x128xf32, #tpu.memory_space<vmem>>, vector<1x2x128xf32>
    %135 = vector.shape_cast %134 : vector<1x2x128xf32> to vector<2x128xf32>
    %136 = vector.shape_cast %133 : vector<2x128xf32> to vector<1x2x128xf32>
    tpu.vector_store %arg5[%c3, %c0_43, %c0_44], %136 {strides = array<i32>} : memref<8x2x128xf32, #tpu.memory_space<vmem>>, vector<1x2x128xf32>,
    %c8 = arith.constant 8 : index
    %c0_45 = arith.constant 0 : index
    %137 = vector.load %arg8[%c8, %c0_45] : memref<16x512xf32, #tpu.memory_space<vmem>>, vector<2x512xf32>
    %cst_46 = arith.constant dense<0.000000e+00> : vector<2x512xf32>
    %138 = tpu.matmul %133, %10, %cst_46 {dimension_numbers = #tpu.dot_dimension_numbers<[1], [0], [0], [1], [0, 0, 1, 1], [], []>} : vector<2x128xf32>, vector<128x512xf32>, vector<2x512xf32> -> vector<2x512xf32>
    %139 = arith.addf %137, %138 : vector<2x512xf32>
    %140 = vector.extract_strided_slice %139 {offsets = [0, 0], sizes = [2, 128], strides = [1, 1]} : vector<2x512xf32> to vector<2x128xf32>
    %141 = arith.negf %140 : vector<2x128xf32>
    %142 = math.exp %141 : vector<2x128xf32>
    %cst_47 = arith.constant 1.000000e+00 : f32
    %143 = vector.broadcast %cst_47 : f32 to vector<2x128xf32>
    %144 = arith.addf %143, %142 : vector<2x128xf32>
    %145 = arith.divf %143, %144 : vector<2x128xf32>
    %146 = vector.extract_strided_slice %139 {offsets = [0, 128], sizes = [2, 128], strides = [1, 1]} : vector<2x512xf32> to vector<2x128xf32>
    %147 = arith.negf %146 : vector<2x128xf32>
    %148 = math.exp %147 : vector<2x128xf32>
    %cst_48 = arith.constant 1.000000e+00 : f32
    %149 = vector.broadcast %cst_48 : f32 to vector<2x128xf32>
    %150 = arith.addf %149, %148 : vector<2x128xf32>
    %151 = arith.divf %149, %150 : vector<2x128xf32>
    %152 = vector.extract_strided_slice %139 {offsets = [0, 256], sizes = [2, 128], strides = [1, 1]} : vector<2x512xf32> to vector<2x128xf32>
    %153 = math.tanh %152 : vector<2x128xf32>
    %154 = vector.extract_strided_slice %139 {offsets = [0, 384], sizes = [2, 128], strides = [1, 1]} : vector<2x512xf32> to vector<2x128xf32>
    %155 = arith.negf %154 : vector<2x128xf32>
    %156 = math.exp %155 : vector<2x128xf32>
    %cst_49 = arith.constant 1.000000e+00 : f32
    %157 = vector.broadcast %cst_49 : f32 to vector<2x128xf32>
    %158 = arith.addf %157, %156 : vector<2x128xf32>
    %159 = arith.divf %157, %158 : vector<2x128xf32>
    %160 = arith.mulf %151, %131 : vector<2x128xf32>
    %161 = arith.mulf %145, %153 : vector<2x128xf32>
    %162 = arith.addf %160, %161 : vector<2x128xf32>
    %163 = math.tanh %162 : vector<2x128xf32>
    %164 = arith.mulf %159, %163 : vector<2x128xf32>
    %c4_50 = arith.constant 4 : index
    %c0_51 = arith.constant 0 : index
    %c0_52 = arith.constant 0 : index
    %165 = vector.load %arg5[%c4_50, %c0_51, %c0_52] : memref<8x2x128xf32, #tpu.memory_space<vmem>>, vector<1x2x128xf32>
    %166 = vector.shape_cast %165 : vector<1x2x128xf32> to vector<2x128xf32>
    %167 = vector.shape_cast %164 : vector<2x128xf32> to vector<1x2x128xf32>
    tpu.vector_store %arg5[%c4_50, %c0_51, %c0_52], %167 {strides = array<i32>} : memref<8x2x128xf32, #tpu.memory_space<vmem>>, vector<1x2x128xf32>,
    %c10 = arith.constant 10 : index
    %c0_53 = arith.constant 0 : index
    %168 = vector.load %arg8[%c10, %c0_53] : memref<16x512xf32, #tpu.memory_space<vmem>>, vector<2x512xf32>
    %cst_54 = arith.constant dense<0.000000e+00> : vector<2x512xf32>
    %169 = tpu.matmul %164, %10, %cst_54 {dimension_numbers = #tpu.dot_dimension_numbers<[1], [0], [0], [1], [0, 0, 1, 1], [], []>} : vector<2x128xf32>, vector<128x512xf32>, vector<2x512xf32> -> vector<2x512xf32>
    %170 = arith.addf %168, %169 : vector<2x512xf32>
    %171 = vector.extract_strided_slice %170 {offsets = [0, 0], sizes = [2, 128], strides = [1, 1]} : vector<2x512xf32> to vector<2x128xf32>
    %172 = arith.negf %171 : vector<2x128xf32>
    %173 = math.exp %172 : vector<2x128xf32>
    %cst_55 = arith.constant 1.000000e+00 : f32
    %174 = vector.broadcast %cst_55 : f32 to vector<2x128xf32>
    %175 = arith.addf %174, %173 : vector<2x128xf32>
    %176 = arith.divf %174, %175 : vector<2x128xf32>
    %177 = vector.extract_strided_slice %170 {offsets = [0, 128], sizes = [2, 128], strides = [1, 1]} : vector<2x512xf32> to vector<2x128xf32>
    %178 = arith.negf %177 : vector<2x128xf32>
    %179 = math.exp %178 : vector<2x128xf32>
    %cst_56 = arith.constant 1.000000e+00 : f32
    %180 = vector.broadcast %cst_56 : f32 to vector<2x128xf32>
    %181 = arith.addf %180, %179 : vector<2x128xf32>
    %182 = arith.divf %180, %181 : vector<2x128xf32>
    %183 = vector.extract_strided_slice %170 {offsets = [0, 256], sizes = [2, 128], strides = [1, 1]} : vector<2x512xf32> to vector<2x128xf32>
    %184 = math.tanh %183 : vector<2x128xf32>
    %185 = vector.extract_strided_slice %170 {offsets = [0, 384], sizes = [2, 128], strides = [1, 1]} : vector<2x512xf32> to vector<2x128xf32>
    %186 = arith.negf %185 : vector<2x128xf32>
    %187 = math.exp %186 : vector<2x128xf32>
    %cst_57 = arith.constant 1.000000e+00 : f32
    %188 = vector.broadcast %cst_57 : f32 to vector<2x128xf32>
    %189 = arith.addf %188, %187 : vector<2x128xf32>
    %190 = arith.divf %188, %189 : vector<2x128xf32>
    %191 = arith.mulf %182, %162 : vector<2x128xf32>
    %192 = arith.mulf %176, %184 : vector<2x128xf32>
    %193 = arith.addf %191, %192 : vector<2x128xf32>
    %194 = math.tanh %193 : vector<2x128xf32>
    %195 = arith.mulf %190, %194 : vector<2x128xf32>
    %c5 = arith.constant 5 : index
    %c0_58 = arith.constant 0 : index
    %c0_59 = arith.constant 0 : index
    %196 = vector.load %arg5[%c5, %c0_58, %c0_59] : memref<8x2x128xf32, #tpu.memory_space<vmem>>, vector<1x2x128xf32>
    %197 = vector.shape_cast %196 : vector<1x2x128xf32> to vector<2x128xf32>
    %198 = vector.shape_cast %195 : vector<2x128xf32> to vector<1x2x128xf32>
    tpu.vector_store %arg5[%c5, %c0_58, %c0_59], %198 {strides = array<i32>} : memref<8x2x128xf32, #tpu.memory_space<vmem>>, vector<1x2x128xf32>,
    %c12 = arith.constant 12 : index
    %c0_60 = arith.constant 0 : index
    %199 = vector.load %arg8[%c12, %c0_60] : memref<16x512xf32, #tpu.memory_space<vmem>>, vector<2x512xf32>
    %cst_61 = arith.constant dense<0.000000e+00> : vector<2x512xf32>
    %200 = tpu.matmul %195, %10, %cst_61 {dimension_numbers = #tpu.dot_dimension_numbers<[1], [0], [0], [1], [0, 0, 1, 1], [], []>} : vector<2x128xf32>, vector<128x512xf32>, vector<2x512xf32> -> vector<2x512xf32>
    %201 = arith.addf %199, %200 : vector<2x512xf32>
    %202 = vector.extract_strided_slice %201 {offsets = [0, 0], sizes = [2, 128], strides = [1, 1]} : vector<2x512xf32> to vector<2x128xf32>
    %203 = arith.negf %202 : vector<2x128xf32>
    %204 = math.exp %203 : vector<2x128xf32>
    %cst_62 = arith.constant 1.000000e+00 : f32
    %205 = vector.broadcast %cst_62 : f32 to vector<2x128xf32>
    %206 = arith.addf %205, %204 : vector<2x128xf32>
    %207 = arith.divf %205, %206 : vector<2x128xf32>
    %208 = vector.extract_strided_slice %201 {offsets = [0, 128], sizes = [2, 128], strides = [1, 1]} : vector<2x512xf32> to vector<2x128xf32>
    %209 = arith.negf %208 : vector<2x128xf32>
    %210 = math.exp %209 : vector<2x128xf32>
    %cst_63 = arith.constant 1.000000e+00 : f32
    %211 = vector.broadcast %cst_63 : f32 to vector<2x128xf32>
    %212 = arith.addf %211, %210 : vector<2x128xf32>
    %213 = arith.divf %211, %212 : vector<2x128xf32>
    %214 = vector.extract_strided_slice %201 {offsets = [0, 256], sizes = [2, 128], strides = [1, 1]} : vector<2x512xf32> to vector<2x128xf32>
    %215 = math.tanh %214 : vector<2x128xf32>
    %216 = vector.extract_strided_slice %201 {offsets = [0, 384], sizes = [2, 128], strides = [1, 1]} : vector<2x512xf32> to vector<2x128xf32>
    %217 = arith.negf %216 : vector<2x128xf32>
    %218 = math.exp %217 : vector<2x128xf32>
    %cst_64 = arith.constant 1.000000e+00 : f32
    %219 = vector.broadcast %cst_64 : f32 to vector<2x128xf32>
    %220 = arith.addf %219, %218 : vector<2x128xf32>
    %221 = arith.divf %219, %220 : vector<2x128xf32>
    %222 = arith.mulf %213, %193 : vector<2x128xf32>
    %223 = arith.mulf %207, %215 : vector<2x128xf32>
    %224 = arith.addf %222, %223 : vector<2x128xf32>
    %225 = math.tanh %224 : vector<2x128xf32>
    %226 = arith.mulf %221, %225 : vector<2x128xf32>
    %c6_65 = arith.constant 6 : index
    %c0_66 = arith.constant 0 : index
    %c0_67 = arith.constant 0 : index
    %227 = vector.load %arg5[%c6_65, %c0_66, %c0_67] : memref<8x2x128xf32, #tpu.memory_space<vmem>>, vector<1x2x128xf32>
    %228 = vector.shape_cast %227 : vector<1x2x128xf32> to vector<2x128xf32>
    %229 = vector.shape_cast %226 : vector<2x128xf32> to vector<1x2x128xf32>
    tpu.vector_store %arg5[%c6_65, %c0_66, %c0_67], %229 {strides = array<i32>} : memref<8x2x128xf32, #tpu.memory_space<vmem>>, vector<1x2x128xf32>,
    %c14 = arith.constant 14 : index
    %c0_68 = arith.constant 0 : index
    %230 = vector.load %arg8[%c14, %c0_68] : memref<16x512xf32, #tpu.memory_space<vmem>>, vector<2x512xf32>
    %cst_69 = arith.constant dense<0.000000e+00> : vector<2x512xf32>
    %231 = tpu.matmul %226, %10, %cst_69 {dimension_numbers = #tpu.dot_dimension_numbers<[1], [0], [0], [1], [0, 0, 1, 1], [], []>} : vector<2x128xf32>, vector<128x512xf32>, vector<2x512xf32> -> vector<2x512xf32>
    %232 = arith.addf %230, %231 : vector<2x512xf32>
    %233 = vector.extract_strided_slice %232 {offsets = [0, 0], sizes = [2, 128], strides = [1, 1]} : vector<2x512xf32> to vector<2x128xf32>
    %234 = arith.negf %233 : vector<2x128xf32>
    %235 = math.exp %234 : vector<2x128xf32>
    %cst_70 = arith.constant 1.000000e+00 : f32
    %236 = vector.broadcast %cst_70 : f32 to vector<2x128xf32>
    %237 = arith.addf %236, %235 : vector<2x128xf32>
    %238 = arith.divf %236, %237 : vector<2x128xf32>
    %239 = vector.extract_strided_slice %232 {offsets = [0, 128], sizes = [2, 128], strides = [1, 1]} : vector<2x512xf32> to vector<2x128xf32>
    %240 = arith.negf %239 : vector<2x128xf32>
    %241 = math.exp %240 : vector<2x128xf32>
    %cst_71 = arith.constant 1.000000e+00 : f32
    %242 = vector.broadcast %cst_71 : f32 to vector<2x128xf32>
    %243 = arith.addf %242, %241 : vector<2x128xf32>
    %244 = arith.divf %242, %243 : vector<2x128xf32>
    %245 = vector.extract_strided_slice %232 {offsets = [0, 256], sizes = [2, 128], strides = [1, 1]} : vector<2x512xf32> to vector<2x128xf32>
    %246 = math.tanh %245 : vector<2x128xf32>
    %247 = vector.extract_strided_slice %232 {offsets = [0, 384], sizes = [2, 128], strides = [1, 1]} : vector<2x512xf32> to vector<2x128xf32>
    %248 = arith.negf %247 : vector<2x128xf32>
    %249 = math.exp %248 : vector<2x128xf32>
    %cst_72 = arith.constant 1.000000e+00 : f32
    %250 = vector.broadcast %cst_72 : f32 to vector<2x128xf32>
    %251 = arith.addf %250, %249 : vector<2x128xf32>
    %252 = arith.divf %250, %251 : vector<2x128xf32>
    %253 = arith.mulf %244, %224 : vector<2x128xf32>
    %254 = arith.mulf %238, %246 : vector<2x128xf32>
    %255 = arith.addf %253, %254 : vector<2x128xf32>
    %256 = math.tanh %255 : vector<2x128xf32>
    %257 = arith.mulf %252, %256 : vector<2x128xf32>
    %c7 = arith.constant 7 : index
    %c0_73 = arith.constant 0 : index
    %c0_74 = arith.constant 0 : index
    %258 = vector.load %arg5[%c7, %c0_73, %c0_74] : memref<8x2x128xf32, #tpu.memory_space<vmem>>, vector<1x2x128xf32>
    %259 = vector.shape_cast %258 : vector<1x2x128xf32> to vector<2x128xf32>
    %260 = vector.shape_cast %257 : vector<2x128xf32> to vector<1x2x128xf32>
    tpu.vector_store %arg5[%c7, %c0_73, %c0_74], %260 {strides = array<i32>} : memref<8x2x128xf32, #tpu.memory_space<vmem>>, vector<1x2x128xf32>,
    %c0_75 = arith.constant 0 : index
    %c0_76 = arith.constant 0 : index
    %261 = vector.load %arg6[%c0_75, %c0_76] : memref<2x128xf32, #tpu.memory_space<vmem>>, vector<2x128xf32>
    tpu.vector_store %arg6[%c0_75, %c0_76], %257 {strides = array<i32>} : memref<2x128xf32, #tpu.memory_space<vmem>>, vector<2x128xf32>,
    %c0_77 = arith.constant 0 : index
    %c0_78 = arith.constant 0 : index
    %262 = vector.load %arg7[%c0_77, %c0_78] : memref<2x128xf32, #tpu.memory_space<vmem>>, vector<2x128xf32>
    tpu.vector_store %arg7[%c0_77, %c0_78], %255 {strides = array<i32>} : memref<2x128xf32, #tpu.memory_space<vmem>>, vector<2x128xf32>,
    return
  }
  func.func @transform_0(%arg0: i32) -> (i32, i32) {
    %c0_i32 = arith.constant 0 : i32
    %c0_i32_0 = arith.constant 0 : i32
    return %arg0, %c0_i32 : i32, i32
  }
  func.func @transform_1(%arg0: i32) -> (i32, i32) {
    %c0_i32 = arith.constant 0 : i32
    %c0_i32_0 = arith.constant 0 : i32
    %c0_i32_1 = arith.constant 0 : i32
    return %c0_i32, %c0_i32_0 : i32, i32
  }
  func.func @transform_2(%arg0: i32) -> (i32, i32) {
    %c0_i32 = arith.constant 0 : i32
    %c0_i32_0 = arith.constant 0 : i32
    %c0_i32_1 = arith.constant 0 : i32
    return %c0_i32, %c0_i32_0 : i32, i32
  }
  func.func @transform_3(%arg0: i32) -> (i32, i32) {
    %c0_i32 = arith.constant 0 : i32
    %c0_i32_0 = arith.constant 0 : i32
    %c0_i32_1 = arith.constant 0 : i32
    return %c0_i32, %c0_i32_0 : i32, i32
  }
  func.func @transform_4(%arg0: i32) -> (i32, i32, i32) {
    %c0_i32 = arith.constant 0 : i32
    %c0_i32_0 = arith.constant 0 : i32
    %c0_i32_1 = arith.constant 0 : i32
    return %arg0, %c0_i32, %c0_i32_0 : i32, i32, i32
  }
}

</mosaic_0001>

<llo_original>
// kernel: lstm_forward.2
$region0: #{lstm_forward.2}
  #allocation0 [shape = 'u32[]', space=smem, size = 0x4, offset = 0x4, fixed_abs, tag = 'smem constant byte address 0x4 - core index']
  #allocation1 [shape = 'u32[72,128]{1,0:T(1,128)}', space=vmem, size = 0x9000, scoped, tag = 'internal scratch']
  #allocation2 [shape = 'f32[2,128]{1,0:T(2,128)}', space=vmem, size = 0x400, scoped, tag = 'scratch operand']
  #allocation3 [shape = 'f32[2,128]{1,0:T(2,128)}', space=vmem, size = 0x400, scoped, tag = 'scratch operand']
  #allocation4 [shape = 'f32[16,512]{1,0:T(8,128)}', space=vmem, size = 0x8000, scoped, tag = 'scratch operand']
  %s0 = inlined_call_operand.vmem [shape: f32[16,16], index: 0, kind: input, shape index: {}]
  %s1 = inlined_call_operand.hbm [shape: f32[16,512], index: 1, kind: input, shape index: {}]
  %s2 = inlined_call_operand.hbm [shape: f32[128,512], index: 2, kind: input, shape index: {}]
  %s3 = inlined_call_operand.vmem [shape: f32[1,512], index: 3, kind: input, shape index: {}]
  %s4 = inlined_call_operand.vmem [shape: f32[8,2,128], index: 4, kind: output, shape index: {}]
  %s5 = sld [smem:[#allocation0]]
  $region38: #{lstm_forward.2} parent=0
    _
  %s7 = ssub.s32 1, %s5
  %s8 = scalar_select 0, %s7, %s5
  $region1: #{lstm_forward.2} parent=0
    #allocation5 [shape = 'u8[32768]{0}', space=vmem, size = 0x8000, scoped, tag = 'input window, operand 1, single buffered']
    #allocation6 [shape = 's32[1]{0}', space=sflag, size = 0x4, scoped, tag = 'scoped memory for lstm_forward.2']
    #allocation7 [shape = 'u8[262144]{0}', space=vmem, size = 0x40000, scoped, tag = 'input window, operand 2, single buffered']
    #allocation8 [shape = 's32[1]{0}', space=sflag, size = 0x4, scoped, tag = 'scoped memory for lstm_forward.2']
    %9 = vsyncpa [#allocation6], 0
    %10 = vsyncpa [#allocation8], 0
    // Predicated region
    $region2: #{lstm_forward.2} parent=1 // pred_check
      _
    $region3: #{lstm_forward.2} parent=1 // pred_check_branch
      %12 = sbr.rel (0) target = $region5
    $region4: #{lstm_forward.2} parent=1 // pred_region
      _
    $region5: #{lstm_forward.2} parent=1 // pred_fallthru
      _
    // Predicated region
    $region6: #{lstm_forward.2} parent=1 // pred_check
      _
    $region7: #{lstm_forward.2} parent=1 // pred_check_branch
      %14 = sbr.rel (0) target = $region9
    $region8: #{lstm_forward.2} parent=1 // pred_region
      %16 = vsyncadd [#allocation6], 0
      %s17 = sshll.u32 %s1, 4
      %s18 = int_to_ptr.hbm [resolvable:$true] %s17
      %s19 = sshll.u32 [#allocation5], 4
      %s20 = int_to_ptr.vmem [resolvable:$true] %s19
      %25 = dma.hbm_to_vmem [thread:$0]  %s18, 1024, %s20, [#allocation6], 512, 512, 32
    $region9: #{lstm_forward.2} parent=1 // pred_fallthru
      _
    // Predicated region
    $region10: #{lstm_forward.2} parent=1 // pred_check
      _
    $region11: #{lstm_forward.2} parent=1 // pred_check_branch
      %27 = sbr.rel (0) target = $region13
    $region12: #{lstm_forward.2} parent=1 // pred_region
      %29 = vsyncadd [#allocation8], 0
      %s30 = sshll.u32 %s2, 4
      %s31 = int_to_ptr.hbm [resolvable:$true] %s30
      %s32 = sshll.u32 [#allocation7], 4
      %s33 = int_to_ptr.vmem [resolvable:$true] %s32
      %38 = dma.hbm_to_vmem [thread:$0]  %s31, 8192, %s33, [#allocation8], 512, 512, 32
    $region13: #{lstm_forward.2} parent=1 // pred_fallthru
      _
    // Predicated region
    $region14: #{lstm_forward.2} parent=1 // pred_check
      _
    $region15: #{lstm_forward.2} parent=1 // pred_check_branch
      %40 = sbr.rel (0) target = $region17
    $region16: #{lstm_forward.2} parent=1 // pred_region
      _
    $region17: #{lstm_forward.2} parent=1 // pred_fallthru
      _
    // Predicated region
    $region18: #{lstm_forward.2} parent=1 // pred_check
      _
    $region19: #{lstm_forward.2} parent=1 // pred_check_branch
      %42 = sbr.rel (0) target = $region21
    $region20: #{lstm_forward.2} parent=1 // pred_region
      %44 = dma.done [#allocation6], 1024
    $region21: #{lstm_forward.2} parent=1 // pred_fallthru
      _
    // Predicated region
    $region22: #{lstm_forward.2} parent=1 // pred_check
      _
    $region23: #{lstm_forward.2} parent=1 // pred_check_branch
      %46 = sbr.rel (0) target = $region25
    $region24: #{lstm_forward.2} parent=1 // pred_region
      %48 = dma.done [#allocation8], 8192
    $region25: #{lstm_forward.2} parent=1 // pred_fallthru
      _
    %p49 = scmp.eq.s32.totalorder 0, 0
    // Predicated region
    $region26: #{lstm_forward.2} parent=1 // pred_check
      %p50 = pneg %p49
    $region27: #{lstm_forward.2} parent=1 // pred_check_branch
      %52 = sbr.rel (%p50) target = $region29
    $region28: #{lstm_forward.2} parent=1 // pred_region
      %53 = vst [vmem:[#allocation2] sm:$0x3] 0.0
      %54 = vst [vmem:[#allocation3] sm:$0x3] 0.0
    $region29: #{lstm_forward.2} parent=1 // pred_fallthru
      _
    %v55 = vld [vmem:[%s0] sm:$0xff]
    %v56 = vld [vmem:[%s0 + $0x8] sm:$0xff]
    %v57 = vld [vmem:[#allocation5] sm:$0xff]
    %v58 = vld [vmem:[#allocation5 + $0x8] sm:$0xff]
    %v59 = vld [vmem:[#allocation5 + $0x10] sm:$0xff]
    %v60 = vld [vmem:[#allocation5 + $0x18] sm:$0xff]
    %v61 = vld [vmem:[#allocation5 + $0x20] sm:$0xff]
    %v62 = vld [vmem:[#allocation5 + $0x28] sm:$0xff]
    %v63 = vld [vmem:[#allocation5 + $0x30] sm:$0xff]
    %v64 = vld [vmem:[#allocation5 + $0x38] sm:$0xff]
    %v65 = vld [vmem:[%s3] sm:$0xf]
    %v67 = vperm.slane %v65, 0
    %v68 = vperm.slane %v65, 1
    %v69 = vperm.slane %v65, 2
    %v70 = vperm.slane %v65, 3
    %vm75 = vcmask 130048
    %v77 = vsel %vm75, %v55, 0
    %v80 = vsel %vm75, %v56, 0
    %82 = vmatpush.msra.mxu0 0.0
    %83 = vmatpush.msra.mxu0 0.0
    %84 = vmatpush.msra.mxu0 0.0
    %85 = vmatpush.msra.mxu0 0.0
    %86 = vmatpush.msra.mxu0 0.0
    %87 = vmatpush.msra.mxu0 0.0
    %88 = vmatpush.msra.mxu0 0.0
    %89 = vmatpush.msra.mxu0 0.0
    %90 = vmatpush.msra.mxu0 0.0
    %91 = vmatpush.msra.mxu0 0.0
    %92 = vmatpush.msra.mxu0 0.0
    %93 = vmatpush.msra.mxu0 0.0
    %94 = vmatpush.msra.mxu0 0.0
    %95 = vmatpush.msra.mxu0 0.0
    %96 = vmatpush.msra.mxu0 %v61
    %97 = vmatpush.msra.mxu0 %v57
    %98 = vmatmul.f32.gmra.mxu0 %v77
    %v99 = vpop.f32.mrf.mxu0
    %v100 = vadd.f32 %v67, %v99
    %101 = vmatmul.f32.gmra.mxu0 %v80
    %v102 = vpop.f32.mrf.mxu0
    %v103 = vadd.f32 %v67, %v102
    %104 = vdwg.mxu0
    %105 = vmatpush.msra.mxu0 0.0
    %106 = vmatpush.msra.mxu0 0.0
    %107 = vmatpush.msra.mxu0 0.0
    %108 = vmatpush.msra.mxu0 0.0
    %109 = vmatpush.msra.mxu0 0.0
    %110 = vmatpush.msra.mxu0 0.0
    %111 = vmatpush.msra.mxu0 0.0
    %112 = vmatpush.msra.mxu0 0.0
    %113 = vmatpush.msra.mxu0 0.0
    %114 = vmatpush.msra.mxu0 0.0
    %115 = vmatpush.msra.mxu0 0.0
    %116 = vmatpush.msra.mxu0 0.0
    %117 = vmatpush.msra.mxu0 0.0
    %118 = vmatpush.msra.mxu0 0.0
    %119 = vmatpush.msra.mxu0 %v62
    %120 = vmatpush.msra.mxu0 %v58
    %121 = vmatmul.f32.gmra.mxu0 %v77
    %v122 = vpop.f32.mrf.mxu0
    %v123 = vadd.f32 %v68, %v122
    %124 = vmatmul.f32.gmra.mxu0 %v80
    %v125 = vpop.f32.mrf.mxu0
    %v126 = vadd.f32 %v68, %v125
    %127 = vdwg.mxu0
    %128 = vmatpush.msra.mxu0 0.0
    %129 = vmatpush.msra.mxu0 0.0
    %130 = vmatpush.msra.mxu0 0.0
    %131 = vmatpush.msra.mxu0 0.0
    %132 = vmatpush.msra.mxu0 0.0
    %133 = vmatpush.msra.mxu0 0.0
    %134 = vmatpush.msra.mxu0 0.0
    %135 = vmatpush.msra.mxu0 0.0
    %136 = vmatpush.msra.mxu0 0.0
    %137 = vmatpush.msra.mxu0 0.0
    %138 = vmatpush.msra.mxu0 0.0
    %139 = vmatpush.msra.mxu0 0.0
    %140 = vmatpush.msra.mxu0 0.0
    %141 = vmatpush.msra.mxu0 0.0
    %142 = vmatpush.msra.mxu0 %v63
    %143 = vmatpush.msra.mxu0 %v59
    %144 = vmatmul.f32.gmra.mxu0 %v77
    %v145 = vpop.f32.mrf.mxu0
    %v146 = vadd.f32 %v69, %v145
    %147 = vmatmul.f32.gmra.mxu0 %v80
    %v148 = vpop.f32.mrf.mxu0
    %v149 = vadd.f32 %v69, %v148
    %150 = vdwg.mxu0
    %151 = vmatpush.msra.mxu0 0.0
    %152 = vmatpush.msra.mxu0 0.0
    %153 = vmatpush.msra.mxu0 0.0
    %154 = vmatpush.msra.mxu0 0.0
    %155 = vmatpush.msra.mxu0 0.0
    %156 = vmatpush.msra.mxu0 0.0
    %157 = vmatpush.msra.mxu0 0.0
    %158 = vmatpush.msra.mxu0 0.0
    %159 = vmatpush.msra.mxu0 0.0
    %160 = vmatpush.msra.mxu0 0.0
    %161 = vmatpush.msra.mxu0 0.0
    %162 = vmatpush.msra.mxu0 0.0
    %163 = vmatpush.msra.mxu0 0.0
    %164 = vmatpush.msra.mxu0 0.0
    %165 = vmatpush.msra.mxu0 %v64
    %166 = vmatpush.msra.mxu0 %v60
    %167 = vmatmul.f32.gmra.mxu0 %v77
    %v168 = vpop.f32.mrf.mxu0
    %v169 = vadd.f32 %v70, %v168
    %170 = vmatmul.f32.gmra.mxu0 %v80
    %v171 = vpop.f32.mrf.mxu0
    %v172 = vadd.f32 %v70, %v171
    %173 = vdwg.mxu0
    %174 = vst [vmem:[#allocation4] sm:$0xff] %v100
    %175 = vst [vmem:[#allocation4 + $0x8] sm:$0xff] %v123
    %176 = vst [vmem:[#allocation4 + $0x10] sm:$0xff] %v146
    %177 = vst [vmem:[#allocation4 + $0x18] sm:$0xff] %v169
    %178 = vst [vmem:[#allocation4 + $0x20] sm:$0xff] %v103
    %179 = vst [vmem:[#allocation4 + $0x28] sm:$0xff] %v126
    %180 = vst [vmem:[#allocation4 + $0x30] sm:$0xff] %v149
    %181 = vst [vmem:[#allocation4 + $0x38] sm:$0xff] %v172
    %v182 = vld [vmem:[#allocation7] sm:$0xff]
    %v183 = vld [vmem:[#allocation7 + $0x8] sm:$0xff]
    %v184 = vld [vmem:[#allocation7 + $0x10] sm:$0xff]
    %v185 = vld [vmem:[#allocation7 + $0x18] sm:$0xff]
    %v186 = vld [vmem:[#allocation7 + $0x20] sm:$0xff]
    %v187 = vld [vmem:[#allocation7 + $0x28] sm:$0xff]
    %v188 = vld [vmem:[#allocation7 + $0x30] sm:$0xff]
    %v189 = vld [vmem:[#allocation7 + $0x38] sm:$0xff]
    %v190 = vld [vmem:[#allocation7 + $0x40] sm:$0xff]
    %v191 = vld [vmem:[#allocation7 + $0x48] sm:$0xff]
    %v192 = vld [vmem:[#allocation7 + $0x50] sm:$0xff]
    %v193 = vld [vmem:[#allocation7 + $0x58] sm:$0xff]
    %v194 = vld [vmem:[#allocation7 + $0x60] sm:$0xff]
    %v195 = vld [vmem:[#allocation7 + $0x68] sm:$0xff]
    %v196 = vld [vmem:[#allocation7 + $0x70] sm:$0xff]
    %v197 = vld [vmem:[#allocation7 + $0x78] sm:$0xff]
    %v198 = vld [vmem:[#allocation7 + $0x80] sm:$0xff]
    %v199 = vld [vmem:[#allocation7 + $0x88] sm:$0xff]
    %v200 = vld [vmem:[#allocation7 + $0x90] sm:$0xff]
    %v201 = vld [vmem:[#allocation7 + $0x98] sm:$0xff]
    %v202 = vld [vmem:[#allocation7 + $0xa0] sm:$0xff]
    %v203 = vld [vmem:[#allocation7 + $0xa8] sm:$0xff]
    %v204 = vld [vmem:[#allocation7 + $0xb0] sm:$0xff]
    %v205 = vld [vmem:[#allocation7 + $0xb8] sm:$0xff]
    %v206 = vld [vmem:[#allocation7 + $0xc0] sm:$0xff]
    %v207 = vld [vmem:[#allocation7 + $0xc8] sm:$0xff]
    %v208 = vld [vmem:[#allocation7 + $0xd0] sm:$0xff]
    %v209 = vld [vmem:[#allocation7 + $0xd8] sm:$0xff]
    %v210 = vld [vmem:[#allocation7 + $0xe0] sm:$0xff]
    %v211 = vld [vmem:[#allocation7 + $0xe8] sm:$0xff]
    %v212 = vld [vmem:[#allocation7 + $0xf0] sm:$0xff]
    %v213 = vld [vmem:[#allocation7 + $0xf8] sm:$0xff]
    %v214 = vld [vmem:[#allocation7 + $0x100] sm:$0xff]
    %v215 = vld [vmem:[#allocation7 + $0x108] sm:$0xff]
    %v216 = vld [vmem:[#allocation7 + $0x110] sm:$0xff]
    %v217 = vld [vmem:[#allocation7 + $0x118] sm:$0xff]
    %v218 = vld [vmem:[#allocation7 + $0x120] sm:$0xff]
    %v219 = vld [vmem:[#allocation7 + $0x128] sm:$0xff]
    %v220 = vld [vmem:[#allocation7 + $0x130] sm:$0xff]
    %v221 = vld [vmem:[#allocation7 + $0x138] sm:$0xff]
    %v222 = vld [vmem:[#allocation7 + $0x140] sm:$0xff]
    %v223 = vld [vmem:[#allocation7 + $0x148] sm:$0xff]
    %v224 = vld [vmem:[#allocation7 + $0x150] sm:$0xff]
    %v225 = vld [vmem:[#allocation7 + $0x158] sm:$0xff]
    %v226 = vld [vmem:[#allocation7 + $0x160] sm:$0xff]
    %v227 = vld [vmem:[#allocation7 + $0x168] sm:$0xff]
    %v228 = vld [vmem:[#allocation7 + $0x170] sm:$0xff]
    %v229 = vld [vmem:[#allocation7 + $0x178] sm:$0xff]
    %v230 = vld [vmem:[#allocation7 + $0x180] sm:$0xff]
    %v231 = vld [vmem:[#allocation7 + $0x188] sm:$0xff]
    %v232 = vld [vmem:[#allocation7 + $0x190] sm:$0xff]
    %v233 = vld [vmem:[#allocation7 + $0x198] sm:$0xff]
    %v234 = vld [vmem:[#allocation7 + $0x1a0] sm:$0xff]
    %v235 = vld [vmem:[#allocation7 + $0x1a8] sm:$0xff]
    %v236 = vld [vmem:[#allocation7 + $0x1b0] sm:$0xff]
    %v237 = vld [vmem:[#allocation7 + $0x1b8] sm:$0xff]
    %v238 = vld [vmem:[#allocation7 + $0x1c0] sm:$0xff]
    %v239 = vld [vmem:[#allocation7 + $0x1c8] sm:$0xff]
    %v240 = vld [vmem:[#allocation7 + $0x1d0] sm:$0xff]
    %v241 = vld [vmem:[#allocation7 + $0x1d8] sm:$0xff]
    %v242 = vld [vmem:[#allocation7 + $0x1e0] sm:$0xff]
    %v243 = vld [vmem:[#allocation7 + $0x1e8] sm:$0xff]
    %v244 = vld [vmem:[#allocation7 + $0x1f0] sm:$0xff]
    %v245 = vld [vmem:[#allocation7 + $0x1f8] sm:$0xff]
    %v246 = vld [vmem:[#allocation2] sm:$0x3]
    %v247 = vld [vmem:[#allocation3] sm:$0x3]
    %v248 = vld [vmem:[#allocation4] sm:$0x3]
    %v249 = vld [vmem:[#allocation4 + $0x8] sm:$0x3]
    %v250 = vld [vmem:[#allocation4 + $0x10] sm:$0x3]
    %v251 = vld [vmem:[#allocation4 + $0x18] sm:$0x3]
    %252 = vmatpush.msra.mxu0 %v242
    %253 = vmatpush.msra.mxu0 %v238
    %254 = vmatpush.msra.mxu0 %v234
    %255 = vmatpush.msra.mxu0 %v230
    %256 = vmatpush.msra.mxu0 %v226
    %257 = vmatpush.msra.mxu0 %v222
    %258 = vmatpush.msra.mxu0 %v218
    %259 = vmatpush.msra.mxu0 %v214
    %260 = vmatpush.msra.mxu0 %v210
    %261 = vmatpush.msra.mxu0 %v206
    %262 = vmatpush.msra.mxu0 %v202
    %263 = vmatpush.msra.mxu0 %v198
    %264 = vmatpush.msra.mxu0 %v194
    %265 = vmatpush.msra.mxu0 %v190
    %266 = vmatpush.msra.mxu0 %v186
    %267 = vmatpush.msra.mxu0 %v182
    %268 = vmatmul.f32.gmra.mxu0 %v246
    %v269 = vpop.f32.mrf.mxu0
    %v270 = vadd.f32 0.0, %v269
    %271 = vdwg.mxu0
    %272 = vmatpush.msra.mxu0 %v243
    %273 = vmatpush.msra.mxu0 %v239
    %274 = vmatpush.msra.mxu0 %v235
    %275 = vmatpush.msra.mxu0 %v231
    %276 = vmatpush.msra.mxu0 %v227
    %277 = vmatpush.msra.mxu0 %v223
    %278 = vmatpush.msra.mxu0 %v219
    %279 = vmatpush.msra.mxu0 %v215
    %280 = vmatpush.msra.mxu0 %v211
    %281 = vmatpush.msra.mxu0 %v207
    %282 = vmatpush.msra.mxu0 %v203
    %283 = vmatpush.msra.mxu0 %v199
    %284 = vmatpush.msra.mxu0 %v195
    %285 = vmatpush.msra.mxu0 %v191
    %286 = vmatpush.msra.mxu0 %v187
    %287 = vmatpush.msra.mxu0 %v183
    %288 = vmatmul.f32.gmra.mxu0 %v246
    %v289 = vpop.f32.mrf.mxu0
    %v290 = vadd.f32 0.0, %v289
    %291 = vdwg.mxu0
    %292 = vmatpush.msra.mxu0 %v244
    %293 = vmatpush.msra.mxu0 %v240
    %294 = vmatpush.msra.mxu0 %v236
    %295 = vmatpush.msra.mxu0 %v232
    %296 = vmatpush.msra.mxu0 %v228
    %297 = vmatpush.msra.mxu0 %v224
    %298 = vmatpush.msra.mxu0 %v220
    %299 = vmatpush.msra.mxu0 %v216
    %300 = vmatpush.msra.mxu0 %v212
    %301 = vmatpush.msra.mxu0 %v208
    %302 = vmatpush.msra.mxu0 %v204
    %303 = vmatpush.msra.mxu0 %v200
    %304 = vmatpush.msra.mxu0 %v196
    %305 = vmatpush.msra.mxu0 %v192
    %306 = vmatpush.msra.mxu0 %v188
    %307 = vmatpush.msra.mxu0 %v184
    %308 = vmatmul.f32.gmra.mxu0 %v246
    %v309 = vpop.f32.mrf.mxu0
    %v310 = vadd.f32 0.0, %v309
    %311 = vdwg.mxu0
    %312 = vmatpush.msra.mxu0 %v245
    %313 = vmatpush.msra.mxu0 %v241
    %314 = vmatpush.msra.mxu0 %v237
    %315 = vmatpush.msra.mxu0 %v233
    %316 = vmatpush.msra.mxu0 %v229
    %317 = vmatpush.msra.mxu0 %v225
    %318 = vmatpush.msra.mxu0 %v221
    %319 = vmatpush.msra.mxu0 %v217
    %320 = vmatpush.msra.mxu0 %v213
    %321 = vmatpush.msra.mxu0 %v209
    %322 = vmatpush.msra.mxu0 %v205
    %323 = vmatpush.msra.mxu0 %v201
    %324 = vmatpush.msra.mxu0 %v197
    %325 = vmatpush.msra.mxu0 %v193
    %326 = vmatpush.msra.mxu0 %v189
    %327 = vmatpush.msra.mxu0 %v185
    %328 = vmatmul.f32.gmra.mxu0 %v246
    %v329 = vpop.f32.mrf.mxu0
    %v330 = vadd.f32 0.0, %v329
    %331 = vdwg.mxu0
    %v332 = vadd.f32 %v248, %v270
    %v333 = vadd.f32 %v249, %v290
    %v334 = vadd.f32 %v250, %v310
    %v335 = vadd.f32 %v251, %v330
    %v336 = vxor.u32 %v332, 2147483648
    %v337 = vmul.f32 %v336, 1.442695
    %v338 = vpow.pop %v337
    %v339 = vadd.f32 %v338, 1.0
    %v340 = vrcp.pop %v339
    %v341 = vmul.f32 %v339, %v340
    %v342 = vsub.f32 1.0, %v341
    %v343 = vmul.f32 %v340, %v342
    %v344 = vadd.f32 %v340, %v343
    %vm345 = vweird.f32 %v339
    %vm346 = vweird.f32 %v340
    %vm347 = vmor %vm345, %vm346
    %v348 = vsel %vm347, %v340, %v344
    %v349 = vand.u32 2147483647, %v339
    %vm350 = vcmp.eq.f32.partialorder %v349, 8.507059e+37
    %v351 = vand.u32 %v339, 2147483648
    %v352 = vor.u32 1.1754944e-38, %v351
    %v353 = vsel %vm350, %v352, %v348
    %v354 = vmul.f32 1.0, %v353
    %v355 = vxor.u32 %v333, 2147483648
    %v356 = vmul.f32 %v355, 1.442695
    %v357 = vpow.pop %v356
    %v358 = vadd.f32 %v357, 1.0
    %v359 = vrcp.pop %v358
    %v360 = vmul.f32 %v358, %v359
    %v361 = vsub.f32 1.0, %v360
    %v362 = vmul.f32 %v359, %v361
    %v363 = vadd.f32 %v359, %v362
    %vm364 = vweird.f32 %v358
    %vm365 = vweird.f32 %v359
    %vm366 = vmor %vm364, %vm365
    %v367 = vsel %vm366, %v359, %v363
    %v368 = vand.u32 2147483647, %v358
    %vm369 = vcmp.eq.f32.partialorder %v368, 8.507059e+37
    %v370 = vand.u32 %v358, 2147483648
    %v371 = vor.u32 1.1754944e-38, %v370
    %v372 = vsel %vm369, %v371, %v367
    %v373 = vmul.f32 1.0, %v372
    %v374 = vtanh.pop %v334
    %v375 = vxor.u32 %v335, 2147483648
    %v376 = vmul.f32 %v375, 1.442695
    %v377 = vpow.pop %v376
    %v378 = vadd.f32 %v377, 1.0
    %v379 = vrcp.pop %v378
    %v380 = vmul.f32 %v378, %v379
    %v381 = vsub.f32 1.0, %v380
    %v382 = vmul.f32 %v379, %v381
    %v383 = vadd.f32 %v379, %v382
    %vm384 = vweird.f32 %v378
    %vm385 = vweird.f32 %v379
    %vm386 = vmor %vm384, %vm385
    %v387 = vsel %vm386, %v379, %v383
    %v388 = vand.u32 2147483647, %v378
    %vm389 = vcmp.eq.f32.partialorder %v388, 8.507059e+37
    %v390 = vand.u32 %v378, 2147483648
    %v391 = vor.u32 1.1754944e-38, %v390
    %v392 = vsel %vm389, %v391, %v387
    %v393 = vmul.f32 1.0, %v392
    %v394 = vmul.f32 %v373, %v247
    %v395 = vmul.f32 %v354, %v374
    %v396 = vadd.f32 %v394, %v395
    %v397 = vtanh.pop %v396
    %v398 = vmul.f32 %v393, %v397
    %399 = vst [vmem:[%s4] sm:$0x3] %v398
    %v400 = vld [vmem:[#allocation4] sm:$0xc]
    %v401 = vld [vmem:[#allocation4 + $0x8] sm:$0xc]
    %v402 = vld [vmem:[#allocation4 + $0x10] sm:$0xc]
    %v403 = vld [vmem:[#allocation4 + $0x18] sm:$0xc]
    %404 = vmatpush.msra.mxu0 %v242
    %405 = vmatpush.msra.mxu0 %v238
    %406 = vmatpush.msra.mxu0 %v234
    %407 = vmatpush.msra.mxu0 %v230
    %408 = vmatpush.msra.mxu0 %v226
    %409 = vmatpush.msra.mxu0 %v222
    %410 = vmatpush.msra.mxu0 %v218
    %411 = vmatpush.msra.mxu0 %v214
    %412 = vmatpush.msra.mxu0 %v210
    %413 = vmatpush.msra.mxu0 %v206
    %414 = vmatpush.msra.mxu0 %v202
    %415 = vmatpush.msra.mxu0 %v198
    %416 = vmatpush.msra.mxu0 %v194
    %417 = vmatpush.msra.mxu0 %v190
    %418 = vmatpush.msra.mxu0 %v186
    %419 = vmatpush.msra.mxu0 %v182
    %420 = vmatmul.f32.gmra.mxu0 %v398
    %v421 = vpop.f32.mrf.mxu0
    %v422 = vadd.f32 0.0, %v421
    %423 = vdwg.mxu0
    %424 = vmatpush.msra.mxu0 %v243
    %425 = vmatpush.msra.mxu0 %v239
    %426 = vmatpush.msra.mxu0 %v235
    %427 = vmatpush.msra.mxu0 %v231
    %428 = vmatpush.msra.mxu0 %v227
    %429 = vmatpush.msra.mxu0 %v223
    %430 = vmatpush.msra.mxu0 %v219
    %431 = vmatpush.msra.mxu0 %v215
    %432 = vmatpush.msra.mxu0 %v211
    %433 = vmatpush.msra.mxu0 %v207
    %434 = vmatpush.msra.mxu0 %v203
    %435 = vmatpush.msra.mxu0 %v199
    %436 = vmatpush.msra.mxu0 %v195
    %437 = vmatpush.msra.mxu0 %v191
    %438 = vmatpush.msra.mxu0 %v187
    %439 = vmatpush.msra.mxu0 %v183
    %440 = vmatmul.f32.gmra.mxu0 %v398
    %v441 = vpop.f32.mrf.mxu0
    %v442 = vadd.f32 0.0, %v441
    %443 = vdwg.mxu0
    %444 = vmatpush.msra.mxu0 %v244
    %445 = vmatpush.msra.mxu0 %v240
    %446 = vmatpush.msra.mxu0 %v236
    %447 = vmatpush.msra.mxu0 %v232
    %448 = vmatpush.msra.mxu0 %v228
    %449 = vmatpush.msra.mxu0 %v224
    %450 = vmatpush.msra.mxu0 %v220
    %451 = vmatpush.msra.mxu0 %v216
    %452 = vmatpush.msra.mxu0 %v212
    %453 = vmatpush.msra.mxu0 %v208
    %454 = vmatpush.msra.mxu0 %v204
    %455 = vmatpush.msra.mxu0 %v200
    %456 = vmatpush.msra.mxu0 %v196
    %457 = vmatpush.msra.mxu0 %v192
    %458 = vmatpush.msra.mxu0 %v188
    %459 = vmatpush.msra.mxu0 %v184
    %460 = vmatmul.f32.gmra.mxu0 %v398
    %v461 = vpop.f32.mrf.mxu0
    %v462 = vadd.f32 0.0, %v461
    %463 = vdwg.mxu0
    %464 = vmatpush.msra.mxu0 %v245
    %465 = vmatpush.msra.mxu0 %v241
    %466 = vmatpush.msra.mxu0 %v237
    %467 = vmatpush.msra.mxu0 %v233
    %468 = vmatpush.msra.mxu0 %v229
    %469 = vmatpush.msra.mxu0 %v225
    %470 = vmatpush.msra.mxu0 %v221
    %471 = vmatpush.msra.mxu0 %v217
    %472 = vmatpush.msra.mxu0 %v213
    %473 = vmatpush.msra.mxu0 %v209
    %474 = vmatpush.msra.mxu0 %v205
    %475 = vmatpush.msra.mxu0 %v201
    %476 = vmatpush.msra.mxu0 %v197
    %477 = vmatpush.msra.mxu0 %v193
    %478 = vmatpush.msra.mxu0 %v189
    %479 = vmatpush.msra.mxu0 %v185
    %480 = vmatmul.f32.gmra.mxu0 %v398
    %v481 = vpop.f32.mrf.mxu0
    %v482 = vadd.f32 0.0, %v481
    %483 = vdwg.mxu0
    %v488 = vrot.slane %v422, 6
    %v489 = vrot.slane %v442, 6
    %v490 = vrot.slane %v462, 6
    %v491 = vrot.slane %v482, 6
    %v496 = vadd.f32 %v400, %v488
    %v497 = vadd.f32 %v401, %v489
    %v498 = vadd.f32 %v402, %v490
    %v499 = vadd.f32 %v403, %v491
    %v500 = vxor.u32 %v496, 2147483648
    %v501 = vmul.f32 %v500, 1.442695
    %v502 = vpow.pop %v501
    %v503 = vadd.f32 %v502, 1.0
    %v504 = vrcp.pop %v503
    %v505 = vmul.f32 %v503, %v504
    %v506 = vsub.f32 1.0, %v505
    %v507 = vmul.f32 %v504, %v506
    %v508 = vadd.f32 %v504, %v507
    %vm509 = vweird.f32 %v503
    %vm510 = vweird.f32 %v504
    %vm511 = vmor %vm509, %vm510
    %v512 = vsel %vm511, %v504, %v508
    %v513 = vand.u32 2147483647, %v503
    %vm514 = vcmp.eq.f32.partialorder %v513, 8.507059e+37
    %v515 = vand.u32 %v503, 2147483648
    %v516 = vor.u32 1.1754944e-38, %v515
    %v517 = vsel %vm514, %v516, %v512
    %v518 = vmul.f32 1.0, %v517
    %v519 = vxor.u32 %v497, 2147483648
    %v520 = vmul.f32 %v519, 1.442695
    %v521 = vpow.pop %v520
    %v522 = vadd.f32 %v521, 1.0
    %v523 = vrcp.pop %v522
    %v524 = vmul.f32 %v522, %v523
    %v525 = vsub.f32 1.0, %v524
    %v526 = vmul.f32 %v523, %v525
    %v527 = vadd.f32 %v523, %v526
    %vm528 = vweird.f32 %v522
    %vm529 = vweird.f32 %v523
    %vm530 = vmor %vm528, %vm529
    %v531 = vsel %vm530, %v523, %v527
    %v532 = vand.u32 2147483647, %v522
    %vm533 = vcmp.eq.f32.partialorder %v532, 8.507059e+37
    %v534 = vand.u32 %v522, 2147483648
    %v535 = vor.u32 1.1754944e-38, %v534
    %v536 = vsel %vm533, %v535, %v531
    %v537 = vmul.f32 1.0, %v536
    %v538 = vtanh.pop %v498
    %v539 = vxor.u32 %v499, 2147483648
    %v540 = vmul.f32 %v539, 1.442695
    %v541 = vpow.pop %v540
    %v542 = vadd.f32 %v541, 1.0
    %v543 = vrcp.pop %v542
    %v544 = vmul.f32 %v542, %v543
    %v545 = vsub.f32 1.0, %v544
    %v546 = vmul.f32 %v543, %v545
    %v547 = vadd.f32 %v543, %v546
    %vm548 = vweird.f32 %v542
    %vm549 = vweird.f32 %v543
    %vm550 = vmor %vm548, %vm549
    %v551 = vsel %vm550, %v543, %v547
    %v552 = vand.u32 2147483647, %v542
    %vm553 = vcmp.eq.f32.partialorder %v552, 8.507059e+37
    %v554 = vand.u32 %v542, 2147483648
    %v555 = vor.u32 1.1754944e-38, %v554
    %v556 = vsel %vm553, %v555, %v551
    %v557 = vmul.f32 1.0, %v556
    %v559 = vrot.slane %v396, 6
    %v561 = vmul.f32 %v537, %v559
    %v562 = vmul.f32 %v518, %v538
    %v563 = vadd.f32 %v561, %v562
    %v564 = vtanh.pop %v563
    %v565 = vmul.f32 %v557, %v564
    %s566 = scalar_lea.vmem %s4, 2
    %567 = vst [vmem:[%s566 - $0x2] sm:$0xc] %v565
    %v568 = vld [vmem:[#allocation4] sm:$0x30]
    %v569 = vld [vmem:[#allocation4 + $0x8] sm:$0x30]
    %v570 = vld [vmem:[#allocation4 + $0x10] sm:$0x30]
    %v571 = vld [vmem:[#allocation4 + $0x18] sm:$0x30]
    %v573 = vrot.slane %v565, 2
    %575 = vmatpush.msra.mxu0 %v242
    %576 = vmatpush.msra.mxu0 %v238
    %577 = vmatpush.msra.mxu0 %v234
    %578 = vmatpush.msra.mxu0 %v230
    %579 = vmatpush.msra.mxu0 %v226
    %580 = vmatpush.msra.mxu0 %v222
    %581 = vmatpush.msra.mxu0 %v218
    %582 = vmatpush.msra.mxu0 %v214
    %583 = vmatpush.msra.mxu0 %v210
    %584 = vmatpush.msra.mxu0 %v206
    %585 = vmatpush.msra.mxu0 %v202
    %586 = vmatpush.msra.mxu0 %v198
    %587 = vmatpush.msra.mxu0 %v194
    %588 = vmatpush.msra.mxu0 %v190
    %589 = vmatpush.msra.mxu0 %v186
    %590 = vmatpush.msra.mxu0 %v182
    %591 = vmatmul.f32.gmra.mxu0 %v573
    %v592 = vpop.f32.mrf.mxu0
    %v593 = vadd.f32 0.0, %v592
    %594 = vdwg.mxu0
    %595 = vmatpush.msra.mxu0 %v243
    %596 = vmatpush.msra.mxu0 %v239
    %597 = vmatpush.msra.mxu0 %v235
    %598 = vmatpush.msra.mxu0 %v231
    %599 = vmatpush.msra.mxu0 %v227
    %600 = vmatpush.msra.mxu0 %v223
    %601 = vmatpush.msra.mxu0 %v219
    %602 = vmatpush.msra.mxu0 %v215
    %603 = vmatpush.msra.mxu0 %v211
    %604 = vmatpush.msra.mxu0 %v207
    %605 = vmatpush.msra.mxu0 %v203
    %606 = vmatpush.msra.mxu0 %v199
    %607 = vmatpush.msra.mxu0 %v195
    %608 = vmatpush.msra.mxu0 %v191
    %609 = vmatpush.msra.mxu0 %v187
    %610 = vmatpush.msra.mxu0 %v183
    %611 = vmatmul.f32.gmra.mxu0 %v573
    %v612 = vpop.f32.mrf.mxu0
    %v613 = vadd.f32 0.0, %v612
    %614 = vdwg.mxu0
    %615 = vmatpush.msra.mxu0 %v244
    %616 = vmatpush.msra.mxu0 %v240
    %617 = vmatpush.msra.mxu0 %v236
    %618 = vmatpush.msra.mxu0 %v232
    %619 = vmatpush.msra.mxu0 %v228
    %620 = vmatpush.msra.mxu0 %v224
    %621 = vmatpush.msra.mxu0 %v220
    %622 = vmatpush.msra.mxu0 %v216
    %623 = vmatpush.msra.mxu0 %v212
    %624 = vmatpush.msra.mxu0 %v208
    %625 = vmatpush.msra.mxu0 %v204
    %626 = vmatpush.msra.mxu0 %v200
    %627 = vmatpush.msra.mxu0 %v196
    %628 = vmatpush.msra.mxu0 %v192
    %629 = vmatpush.msra.mxu0 %v188
    %630 = vmatpush.msra.mxu0 %v184
    %631 = vmatmul.f32.gmra.mxu0 %v573
    %v632 = vpop.f32.mrf.mxu0
    %v633 = vadd.f32 0.0, %v632
    %634 = vdwg.mxu0
    %635 = vmatpush.msra.mxu0 %v245
    %636 = vmatpush.msra.mxu0 %v241
    %637 = vmatpush.msra.mxu0 %v237
    %638 = vmatpush.msra.mxu0 %v233
    %639 = vmatpush.msra.mxu0 %v229
    %640 = vmatpush.msra.mxu0 %v225
    %641 = vmatpush.msra.mxu0 %v221
    %642 = vmatpush.msra.mxu0 %v217
    %643 = vmatpush.msra.mxu0 %v213
    %644 = vmatpush.msra.mxu0 %v209
    %645 = vmatpush.msra.mxu0 %v205
    %646 = vmatpush.msra.mxu0 %v201
    %647 = vmatpush.msra.mxu0 %v197
    %648 = vmatpush.msra.mxu0 %v193
    %649 = vmatpush.msra.mxu0 %v189
    %650 = vmatpush.msra.mxu0 %v185
    %651 = vmatmul.f32.gmra.mxu0 %v573
    %v652 = vpop.f32.mrf.mxu0
    %v653 = vadd.f32 0.0, %v652
    %654 = vdwg.mxu0
    %v659 = vrot.slane %v593, 4
    %v660 = vrot.slane %v613, 4
    %v661 = vrot.slane %v633, 4
    %v662 = vrot.slane %v653, 4
    %v667 = vadd.f32 %v568, %v659
    %v668 = vadd.f32 %v569, %v660
    %v669 = vadd.f32 %v570, %v661
    %v670 = vadd.f32 %v571, %v662
    %v671 = vxor.u32 %v667, 2147483648
    %v672 = vmul.f32 %v671, 1.442695
    %v673 = vpow.pop %v672
    %v674 = vadd.f32 %v673, 1.0
    %v675 = vrcp.pop %v674
    %v676 = vmul.f32 %v674, %v675
    %v677 = vsub.f32 1.0, %v676
    %v678 = vmul.f32 %v675, %v677
    %v679 = vadd.f32 %v675, %v678
    %vm680 = vweird.f32 %v674
    %vm681 = vweird.f32 %v675
    %vm682 = vmor %vm680, %vm681
    %v683 = vsel %vm682, %v675, %v679
    %v684 = vand.u32 2147483647, %v674
    %vm685 = vcmp.eq.f32.partialorder %v684, 8.507059e+37
    %v686 = vand.u32 %v674, 2147483648
    %v687 = vor.u32 1.1754944e-38, %v686
    %v688 = vsel %vm685, %v687, %v683
    %v689 = vmul.f32 1.0, %v688
    %v690 = vxor.u32 %v668, 2147483648
    %v691 = vmul.f32 %v690, 1.442695
    %v692 = vpow.pop %v691
    %v693 = vadd.f32 %v692, 1.0
    %v694 = vrcp.pop %v693
    %v695 = vmul.f32 %v693, %v694
    %v696 = vsub.f32 1.0, %v695
    %v697 = vmul.f32 %v694, %v696
    %v698 = vadd.f32 %v694, %v697
    %vm699 = vweird.f32 %v693
    %vm700 = vweird.f32 %v694
    %vm701 = vmor %vm699, %vm700
    %v702 = vsel %vm701, %v694, %v698
    %v703 = vand.u32 2147483647, %v693
    %vm704 = vcmp.eq.f32.partialorder %v703, 8.507059e+37
    %v705 = vand.u32 %v693, 2147483648
    %v706 = vor.u32 1.1754944e-38, %v705
    %v707 = vsel %vm704, %v706, %v702
    %v708 = vmul.f32 1.0, %v707
    %v709 = vtanh.pop %v669
    %v710 = vxor.u32 %v670, 2147483648
    %v711 = vmul.f32 %v710, 1.442695
    %v712 = vpow.pop %v711
    %v713 = vadd.f32 %v712, 1.0
    %v714 = vrcp.pop %v713
    %v715 = vmul.f32 %v713, %v714
    %v716 = vsub.f32 1.0, %v715
    %v717 = vmul.f32 %v714, %v716
    %v718 = vadd.f32 %v714, %v717
    %vm719 = vweird.f32 %v713
    %vm720 = vweird.f32 %v714
    %vm721 = vmor %vm719, %vm720
    %v722 = vsel %vm721, %v714, %v718
    %v723 = vand.u32 2147483647, %v713
    %vm724 = vcmp.eq.f32.partialorder %v723, 8.507059e+37
    %v725 = vand.u32 %v713, 2147483648
    %v726 = vor.u32 1.1754944e-38, %v725
    %v727 = vsel %vm724, %v726, %v722
    %v728 = vmul.f32 1.0, %v727
    %v730 = vrot.slane %v563, 6
    %v732 = vmul.f32 %v708, %v730
    %v733 = vmul.f32 %v689, %v709
    %v734 = vadd.f32 %v732, %v733
    %v735 = vtanh.pop %v734
    %v736 = vmul.f32 %v728, %v735
    %s737 = scalar_lea.vmem %s4, 4
    %738 = vst [vmem:[%s737 - $0x4] sm:$0x30] %v736
    %v739 = vld [vmem:[#allocation4] sm:$0xc0]
    %v740 = vld [vmem:[#allocation4 + $0x8] sm:$0xc0]
    %v741 = vld [vmem:[#allocation4 + $0x10] sm:$0xc0]
    %v742 = vld [vmem:[#allocation4 + $0x18] sm:$0xc0]
    %v744 = vrot.slane %v736, 4
    %746 = vmatpush.msra.mxu0 %v242
    %747 = vmatpush.msra.mxu0 %v238
    %748 = vmatpush.msra.mxu0 %v234
    %749 = vmatpush.msra.mxu0 %v230
    %750 = vmatpush.msra.mxu0 %v226
    %751 = vmatpush.msra.mxu0 %v222
    %752 = vmatpush.msra.mxu0 %v218
    %753 = vmatpush.msra.mxu0 %v214
    %754 = vmatpush.msra.mxu0 %v210
    %755 = vmatpush.msra.mxu0 %v206
    %756 = vmatpush.msra.mxu0 %v202
    %757 = vmatpush.msra.mxu0 %v198
    %758 = vmatpush.msra.mxu0 %v194
    %759 = vmatpush.msra.mxu0 %v190
    %760 = vmatpush.msra.mxu0 %v186
    %761 = vmatpush.msra.mxu0 %v182
    %762 = vmatmul.f32.gmra.mxu0 %v744
    %v763 = vpop.f32.mrf.mxu0
    %v764 = vadd.f32 0.0, %v763
    %765 = vdwg.mxu0
    %766 = vmatpush.msra.mxu0 %v243
    %767 = vmatpush.msra.mxu0 %v239
    %768 = vmatpush.msra.mxu0 %v235
    %769 = vmatpush.msra.mxu0 %v231
    %770 = vmatpush.msra.mxu0 %v227
    %771 = vmatpush.msra.mxu0 %v223
    %772 = vmatpush.msra.mxu0 %v219
    %773 = vmatpush.msra.mxu0 %v215
    %774 = vmatpush.msra.mxu0 %v211
    %775 = vmatpush.msra.mxu0 %v207
    %776 = vmatpush.msra.mxu0 %v203
    %777 = vmatpush.msra.mxu0 %v199
    %778 = vmatpush.msra.mxu0 %v195
    %779 = vmatpush.msra.mxu0 %v191
    %780 = vmatpush.msra.mxu0 %v187
    %781 = vmatpush.msra.mxu0 %v183
    %782 = vmatmul.f32.gmra.mxu0 %v744
    %v783 = vpop.f32.mrf.mxu0
    %v784 = vadd.f32 0.0, %v783
    %785 = vdwg.mxu0
    %786 = vmatpush.msra.mxu0 %v244
    %787 = vmatpush.msra.mxu0 %v240
    %788 = vmatpush.msra.mxu0 %v236
    %789 = vmatpush.msra.mxu0 %v232
    %790 = vmatpush.msra.mxu0 %v228
    %791 = vmatpush.msra.mxu0 %v224
    %792 = vmatpush.msra.mxu0 %v220
    %793 = vmatpush.msra.mxu0 %v216
    %794 = vmatpush.msra.mxu0 %v212
    %795 = vmatpush.msra.mxu0 %v208
    %796 = vmatpush.msra.mxu0 %v204
    %797 = vmatpush.msra.mxu0 %v200
    %798 = vmatpush.msra.mxu0 %v196
    %799 = vmatpush.msra.mxu0 %v192
    %800 = vmatpush.msra.mxu0 %v188
    %801 = vmatpush.msra.mxu0 %v184
    %802 = vmatmul.f32.gmra.mxu0 %v744
    %v803 = vpop.f32.mrf.mxu0
    %v804 = vadd.f32 0.0, %v803
    %805 = vdwg.mxu0
    %806 = vmatpush.msra.mxu0 %v245
    %807 = vmatpush.msra.mxu0 %v241
    %808 = vmatpush.msra.mxu0 %v237
    %809 = vmatpush.msra.mxu0 %v233
    %810 = vmatpush.msra.mxu0 %v229
    %811 = vmatpush.msra.mxu0 %v225
    %812 = vmatpush.msra.mxu0 %v221
    %813 = vmatpush.msra.mxu0 %v217
    %814 = vmatpush.msra.mxu0 %v213
    %815 = vmatpush.msra.mxu0 %v209
    %816 = vmatpush.msra.mxu0 %v205
    %817 = vmatpush.msra.mxu0 %v201
    %818 = vmatpush.msra.mxu0 %v197
    %819 = vmatpush.msra.mxu0 %v193
    %820 = vmatpush.msra.mxu0 %v189
    %821 = vmatpush.msra.mxu0 %v185
    %822 = vmatmul.f32.gmra.mxu0 %v744
    %v823 = vpop.f32.mrf.mxu0
    %v824 = vadd.f32 0.0, %v823
    %825 = vdwg.mxu0
    %v830 = vrot.slane %v764, 2
    %v831 = vrot.slane %v784, 2
    %v832 = vrot.slane %v804, 2
    %v833 = vrot.slane %v824, 2
    %v838 = vadd.f32 %v739, %v830
    %v839 = vadd.f32 %v740, %v831
    %v840 = vadd.f32 %v741, %v832
    %v841 = vadd.f32 %v742, %v833
    %v842 = vxor.u32 %v838, 2147483648
    %v843 = vmul.f32 %v842, 1.442695
    %v844 = vpow.pop %v843
    %v845 = vadd.f32 %v844, 1.0
    %v846 = vrcp.pop %v845
    %v847 = vmul.f32 %v845, %v846
    %v848 = vsub.f32 1.0, %v847
    %v849 = vmul.f32 %v846, %v848
    %v850 = vadd.f32 %v846, %v849
    %vm851 = vweird.f32 %v845
    %vm852 = vweird.f32 %v846
    %vm853 = vmor %vm851, %vm852
    %v854 = vsel %vm853, %v846, %v850
    %v855 = vand.u32 2147483647, %v845
    %vm856 = vcmp.eq.f32.partialorder %v855, 8.507059e+37
    %v857 = vand.u32 %v845, 2147483648
    %v858 = vor.u32 1.1754944e-38, %v857
    %v859 = vsel %vm856, %v858, %v854
    %v860 = vmul.f32 1.0, %v859
    %v861 = vxor.u32 %v839, 2147483648
    %v862 = vmul.f32 %v861, 1.442695
    %v863 = vpow.pop %v862
    %v864 = vadd.f32 %v863, 1.0
    %v865 = vrcp.pop %v864
    %v866 = vmul.f32 %v864, %v865
    %v867 = vsub.f32 1.0, %v866
    %v868 = vmul.f32 %v865, %v867
    %v869 = vadd.f32 %v865, %v868
    %vm870 = vweird.f32 %v864
    %vm871 = vweird.f32 %v865
    %vm872 = vmor %vm870, %vm871
    %v873 = vsel %vm872, %v865, %v869
    %v874 = vand.u32 2147483647, %v864
    %vm875 = vcmp.eq.f32.partialorder %v874, 8.507059e+37
    %v876 = vand.u32 %v864, 2147483648
    %v877 = vor.u32 1.1754944e-38, %v876
    %v878 = vsel %vm875, %v877, %v873
    %v879 = vmul.f32 1.0, %v878
    %v880 = vtanh.pop %v840
    %v881 = vxor.u32 %v841, 2147483648
    %v882 = vmul.f32 %v881, 1.442695
    %v883 = vpow.pop %v882
    %v884 = vadd.f32 %v883, 1.0
    %v885 = vrcp.pop %v884
    %v886 = vmul.f32 %v884, %v885
    %v887 = vsub.f32 1.0, %v886
    %v888 = vmul.f32 %v885, %v887
    %v889 = vadd.f32 %v885, %v888
    %vm890 = vweird.f32 %v884
    %vm891 = vweird.f32 %v885
    %vm892 = vmor %vm890, %vm891
    %v893 = vsel %vm892, %v885, %v889
    %v894 = vand.u32 2147483647, %v884
    %vm895 = vcmp.eq.f32.partialorder %v894, 8.507059e+37
    %v896 = vand.u32 %v884, 2147483648
    %v897 = vor.u32 1.1754944e-38, %v896
    %v898 = vsel %vm895, %v897, %v893
    %v899 = vmul.f32 1.0, %v898
    %v901 = vrot.slane %v734, 6
    %v903 = vmul.f32 %v879, %v901
    %v904 = vmul.f32 %v860, %v880
    %v905 = vadd.f32 %v903, %v904
    %v906 = vtanh.pop %v905
    %v907 = vmul.f32 %v899, %v906
    %s908 = scalar_lea.vmem %s4, 6
    %909 = vst [vmem:[%s908 - $0x6] sm:$0xc0] %v907
    %v910 = vld [vmem:[#allocation4 + $0x20] sm:$0x3]
    %v911 = vld [vmem:[#allocation4 + $0x28] sm:$0x3]
    %v912 = vld [vmem:[#allocation4 + $0x30] sm:$0x3]
    %v913 = vld [vmem:[#allocation4 + $0x38] sm:$0x3]
    %v915 = vrot.slane %v907, 6
    %917 = vmatpush.msra.mxu0 %v242
    %918 = vmatpush.msra.mxu0 %v238
    %919 = vmatpush.msra.mxu0 %v234
    %920 = vmatpush.msra.mxu0 %v230
    %921 = vmatpush.msra.mxu0 %v226
    %922 = vmatpush.msra.mxu0 %v222
    %923 = vmatpush.msra.mxu0 %v218
    %924 = vmatpush.msra.mxu0 %v214
    %925 = vmatpush.msra.mxu0 %v210
    %926 = vmatpush.msra.mxu0 %v206
    %927 = vmatpush.msra.mxu0 %v202
    %928 = vmatpush.msra.mxu0 %v198
    %929 = vmatpush.msra.mxu0 %v194
    %930 = vmatpush.msra.mxu0 %v190
    %931 = vmatpush.msra.mxu0 %v186
    %932 = vmatpush.msra.mxu0 %v182
    %933 = vmatmul.f32.gmra.mxu0 %v915
    %v934 = vpop.f32.mrf.mxu0
    %v935 = vadd.f32 0.0, %v934
    %936 = vdwg.mxu0
    %937 = vmatpush.msra.mxu0 %v243
    %938 = vmatpush.msra.mxu0 %v239
    %939 = vmatpush.msra.mxu0 %v235
    %940 = vmatpush.msra.mxu0 %v231
    %941 = vmatpush.msra.mxu0 %v227
    %942 = vmatpush.msra.mxu0 %v223
    %943 = vmatpush.msra.mxu0 %v219
    %944 = vmatpush.msra.mxu0 %v215
    %945 = vmatpush.msra.mxu0 %v211
    %946 = vmatpush.msra.mxu0 %v207
    %947 = vmatpush.msra.mxu0 %v203
    %948 = vmatpush.msra.mxu0 %v199
    %949 = vmatpush.msra.mxu0 %v195
    %950 = vmatpush.msra.mxu0 %v191
    %951 = vmatpush.msra.mxu0 %v187
    %952 = vmatpush.msra.mxu0 %v183
    %953 = vmatmul.f32.gmra.mxu0 %v915
    %v954 = vpop.f32.mrf.mxu0
    %v955 = vadd.f32 0.0, %v954
    %956 = vdwg.mxu0
    %957 = vmatpush.msra.mxu0 %v244
    %958 = vmatpush.msra.mxu0 %v240
    %959 = vmatpush.msra.mxu0 %v236
    %960 = vmatpush.msra.mxu0 %v232
    %961 = vmatpush.msra.mxu0 %v228
    %962 = vmatpush.msra.mxu0 %v224
    %963 = vmatpush.msra.mxu0 %v220
    %964 = vmatpush.msra.mxu0 %v216
    %965 = vmatpush.msra.mxu0 %v212
    %966 = vmatpush.msra.mxu0 %v208
    %967 = vmatpush.msra.mxu0 %v204
    %968 = vmatpush.msra.mxu0 %v200
    %969 = vmatpush.msra.mxu0 %v196
    %970 = vmatpush.msra.mxu0 %v192
    %971 = vmatpush.msra.mxu0 %v188
    %972 = vmatpush.msra.mxu0 %v184
    %973 = vmatmul.f32.gmra.mxu0 %v915
    %v974 = vpop.f32.mrf.mxu0
    %v975 = vadd.f32 0.0, %v974
    %976 = vdwg.mxu0
    %977 = vmatpush.msra.mxu0 %v245
    %978 = vmatpush.msra.mxu0 %v241
    %979 = vmatpush.msra.mxu0 %v237
    %980 = vmatpush.msra.mxu0 %v233
    %981 = vmatpush.msra.mxu0 %v229
    %982 = vmatpush.msra.mxu0 %v225
    %983 = vmatpush.msra.mxu0 %v221
    %984 = vmatpush.msra.mxu0 %v217
    %985 = vmatpush.msra.mxu0 %v213
    %986 = vmatpush.msra.mxu0 %v209
    %987 = vmatpush.msra.mxu0 %v205
    %988 = vmatpush.msra.mxu0 %v201
    %989 = vmatpush.msra.mxu0 %v197
    %990 = vmatpush.msra.mxu0 %v193
    %991 = vmatpush.msra.mxu0 %v189
    %992 = vmatpush.msra.mxu0 %v185
    %993 = vmatmul.f32.gmra.mxu0 %v915
    %v994 = vpop.f32.mrf.mxu0
    %v995 = vadd.f32 0.0, %v994
    %996 = vdwg.mxu0
    %v997 = vadd.f32 %v910, %v935
    %v998 = vadd.f32 %v911, %v955
    %v999 = vadd.f32 %v912, %v975
    %v1000 = vadd.f32 %v913, %v995
    %v1001 = vxor.u32 %v997, 2147483648
    %v1002 = vmul.f32 %v1001, 1.442695
    %v1003 = vpow.pop %v1002
    %v1004 = vadd.f32 %v1003, 1.0
    %v1005 = vrcp.pop %v1004
    %v1006 = vmul.f32 %v1004, %v1005
    %v1007 = vsub.f32 1.0, %v1006
    %v1008 = vmul.f32 %v1005, %v1007
    %v1009 = vadd.f32 %v1005, %v1008
    %vm1010 = vweird.f32 %v1004
    %vm1011 = vweird.f32 %v1005
    %vm1012 = vmor %vm1010, %vm1011
    %v1013 = vsel %vm1012, %v1005, %v1009
    %v1014 = vand.u32 2147483647, %v1004
    %vm1015 = vcmp.eq.f32.partialorder %v1014, 8.507059e+37
    %v1016 = vand.u32 %v1004, 2147483648
    %v1017 = vor.u32 1.1754944e-38, %v1016
    %v1018 = vsel %vm1015, %v1017, %v1013
    %v1019 = vmul.f32 1.0, %v1018
    %v1020 = vxor.u32 %v998, 2147483648
    %v1021 = vmul.f32 %v1020, 1.442695
    %v1022 = vpow.pop %v1021
    %v1023 = vadd.f32 %v1022, 1.0
    %v1024 = vrcp.pop %v1023
    %v1025 = vmul.f32 %v1023, %v1024
    %v1026 = vsub.f32 1.0, %v1025
    %v1027 = vmul.f32 %v1024, %v1026
    %v1028 = vadd.f32 %v1024, %v1027
    %vm1029 = vweird.f32 %v1023
    %vm1030 = vweird.f32 %v1024
    %vm1031 = vmor %vm1029, %vm1030
    %v1032 = vsel %vm1031, %v1024, %v1028
    %v1033 = vand.u32 2147483647, %v1023
    %vm1034 = vcmp.eq.f32.partialorder %v1033, 8.507059e+37
    %v1035 = vand.u32 %v1023, 2147483648
    %v1036 = vor.u32 1.1754944e-38, %v1035
    %v1037 = vsel %vm1034, %v1036, %v1032
    %v1038 = vmul.f32 1.0, %v1037
    %v1039 = vtanh.pop %v999
    %v1040 = vxor.u32 %v1000, 2147483648
    %v1041 = vmul.f32 %v1040, 1.442695
    %v1042 = vpow.pop %v1041
    %v1043 = vadd.f32 %v1042, 1.0
    %v1044 = vrcp.pop %v1043
    %v1045 = vmul.f32 %v1043, %v1044
    %v1046 = vsub.f32 1.0, %v1045
    %v1047 = vmul.f32 %v1044, %v1046
    %v1048 = vadd.f32 %v1044, %v1047
    %vm1049 = vweird.f32 %v1043
    %vm1050 = vweird.f32 %v1044
    %vm1051 = vmor %vm1049, %vm1050
    %v1052 = vsel %vm1051, %v1044, %v1048
    %v1053 = vand.u32 2147483647, %v1043
    %vm1054 = vcmp.eq.f32.partialorder %v1053, 8.507059e+37
    %v1055 = vand.u32 %v1043, 2147483648
    %v1056 = vor.u32 1.1754944e-38, %v1055
    %v1057 = vsel %vm1054, %v1056, %v1052
    %v1058 = vmul.f32 1.0, %v1057
    %v1060 = vrot.slane %v905, 6
    %v1062 = vmul.f32 %v1038, %v1060
    %v1063 = vmul.f32 %v1019, %v1039
    %v1064 = vadd.f32 %v1062, %v1063
    %v1065 = vtanh.pop %v1064
    %v1066 = vmul.f32 %v1058, %v1065
    %s1067 = scalar_lea.vmem %s4, 8
    %1068 = vst [vmem:[%s1067] sm:$0x3] %v1066
    %v1069 = vld [vmem:[#allocation4 + $0x20] sm:$0xc]
    %v1070 = vld [vmem:[#allocation4 + $0x28] sm:$0xc]
    %v1071 = vld [vmem:[#allocation4 + $0x30] sm:$0xc]
    %v1072 = vld [vmem:[#allocation4 + $0x38] sm:$0xc]
    %1073 = vmatpush.msra.mxu0 %v242
    %1074 = vmatpush.msra.mxu0 %v238
    %1075 = vmatpush.msra.mxu0 %v234
    %1076 = vmatpush.msra.mxu0 %v230
    %1077 = vmatpush.msra.mxu0 %v226
    %1078 = vmatpush.msra.mxu0 %v222
    %1079 = vmatpush.msra.mxu0 %v218
    %1080 = vmatpush.msra.mxu0 %v214
    %1081 = vmatpush.msra.mxu0 %v210
    %1082 = vmatpush.msra.mxu0 %v206
    %1083 = vmatpush.msra.mxu0 %v202
    %1084 = vmatpush.msra.mxu0 %v198
    %1085 = vmatpush.msra.mxu0 %v194
    %1086 = vmatpush.msra.mxu0 %v190
    %1087 = vmatpush.msra.mxu0 %v186
    %1088 = vmatpush.msra.mxu0 %v182
    %1089 = vmatmul.f32.gmra.mxu0 %v1066
    %v1090 = vpop.f32.mrf.mxu0
    %v1091 = vadd.f32 0.0, %v1090
    %1092 = vdwg.mxu0
    %1093 = vmatpush.msra.mxu0 %v243
    %1094 = vmatpush.msra.mxu0 %v239
    %1095 = vmatpush.msra.mxu0 %v235
    %1096 = vmatpush.msra.mxu0 %v231
    %1097 = vmatpush.msra.mxu0 %v227
    %1098 = vmatpush.msra.mxu0 %v223
    %1099 = vmatpush.msra.mxu0 %v219
    %1100 = vmatpush.msra.mxu0 %v215
    %1101 = vmatpush.msra.mxu0 %v211
    %1102 = vmatpush.msra.mxu0 %v207
    %1103 = vmatpush.msra.mxu0 %v203
    %1104 = vmatpush.msra.mxu0 %v199
    %1105 = vmatpush.msra.mxu0 %v195
    %1106 = vmatpush.msra.mxu0 %v191
    %1107 = vmatpush.msra.mxu0 %v187
    %1108 = vmatpush.msra.mxu0 %v183
    %1109 = vmatmul.f32.gmra.mxu0 %v1066
    %v1110 = vpop.f32.mrf.mxu0
    %v1111 = vadd.f32 0.0, %v1110
    %1112 = vdwg.mxu0
    %1113 = vmatpush.msra.mxu0 %v244
    %1114 = vmatpush.msra.mxu0 %v240
    %1115 = vmatpush.msra.mxu0 %v236
    %1116 = vmatpush.msra.mxu0 %v232
    %1117 = vmatpush.msra.mxu0 %v228
    %1118 = vmatpush.msra.mxu0 %v224
    %1119 = vmatpush.msra.mxu0 %v220
    %1120 = vmatpush.msra.mxu0 %v216
    %1121 = vmatpush.msra.mxu0 %v212
    %1122 = vmatpush.msra.mxu0 %v208
    %1123 = vmatpush.msra.mxu0 %v204
    %1124 = vmatpush.msra.mxu0 %v200
    %1125 = vmatpush.msra.mxu0 %v196
    %1126 = vmatpush.msra.mxu0 %v192
    %1127 = vmatpush.msra.mxu0 %v188
    %1128 = vmatpush.msra.mxu0 %v184
    %1129 = vmatmul.f32.gmra.mxu0 %v1066
    %v1130 = vpop.f32.mrf.mxu0
    %v1131 = vadd.f32 0.0, %v1130
    %1132 = vdwg.mxu0
    %1133 = vmatpush.msra.mxu0 %v245
    %1134 = vmatpush.msra.mxu0 %v241
    %1135 = vmatpush.msra.mxu0 %v237
    %1136 = vmatpush.msra.mxu0 %v233
    %1137 = vmatpush.msra.mxu0 %v229
    %1138 = vmatpush.msra.mxu0 %v225
    %1139 = vmatpush.msra.mxu0 %v221
    %1140 = vmatpush.msra.mxu0 %v217
    %1141 = vmatpush.msra.mxu0 %v213
    %1142 = vmatpush.msra.mxu0 %v209
    %1143 = vmatpush.msra.mxu0 %v205
    %1144 = vmatpush.msra.mxu0 %v201
    %1145 = vmatpush.msra.mxu0 %v197
    %1146 = vmatpush.msra.mxu0 %v193
    %1147 = vmatpush.msra.mxu0 %v189
    %1148 = vmatpush.msra.mxu0 %v185
    %1149 = vmatmul.f32.gmra.mxu0 %v1066
    %v1150 = vpop.f32.mrf.mxu0
    %v1151 = vadd.f32 0.0, %v1150
    %1152 = vdwg.mxu0
    %v1157 = vrot.slane %v1091, 6
    %v1158 = vrot.slane %v1111, 6
    %v1159 = vrot.slane %v1131, 6
    %v1160 = vrot.slane %v1151, 6
    %v1165 = vadd.f32 %v1069, %v1157
    %v1166 = vadd.f32 %v1070, %v1158
    %v1167 = vadd.f32 %v1071, %v1159
    %v1168 = vadd.f32 %v1072, %v1160
    %v1169 = vxor.u32 %v1165, 2147483648
    %v1170 = vmul.f32 %v1169, 1.442695
    %v1171 = vpow.pop %v1170
    %v1172 = vadd.f32 %v1171, 1.0
    %v1173 = vrcp.pop %v1172
    %v1174 = vmul.f32 %v1172, %v1173
    %v1175 = vsub.f32 1.0, %v1174
    %v1176 = vmul.f32 %v1173, %v1175
    %v1177 = vadd.f32 %v1173, %v1176
    %vm1178 = vweird.f32 %v1172
    %vm1179 = vweird.f32 %v1173
    %vm1180 = vmor %vm1178, %vm1179
    %v1181 = vsel %vm1180, %v1173, %v1177
    %v1182 = vand.u32 2147483647, %v1172
    %vm1183 = vcmp.eq.f32.partialorder %v1182, 8.507059e+37
    %v1184 = vand.u32 %v1172, 2147483648
    %v1185 = vor.u32 1.1754944e-38, %v1184
    %v1186 = vsel %vm1183, %v1185, %v1181
    %v1187 = vmul.f32 1.0, %v1186
    %v1188 = vxor.u32 %v1166, 2147483648
    %v1189 = vmul.f32 %v1188, 1.442695
    %v1190 = vpow.pop %v1189
    %v1191 = vadd.f32 %v1190, 1.0
    %v1192 = vrcp.pop %v1191
    %v1193 = vmul.f32 %v1191, %v1192
    %v1194 = vsub.f32 1.0, %v1193
    %v1195 = vmul.f32 %v1192, %v1194
    %v1196 = vadd.f32 %v1192, %v1195
    %vm1197 = vweird.f32 %v1191
    %vm1198 = vweird.f32 %v1192
    %vm1199 = vmor %vm1197, %vm1198
    %v1200 = vsel %vm1199, %v1192, %v1196
    %v1201 = vand.u32 2147483647, %v1191
    %vm1202 = vcmp.eq.f32.partialorder %v1201, 8.507059e+37
    %v1203 = vand.u32 %v1191, 2147483648
    %v1204 = vor.u32 1.1754944e-38, %v1203
    %v1205 = vsel %vm1202, %v1204, %v1200
    %v1206 = vmul.f32 1.0, %v1205
    %v1207 = vtanh.pop %v1167
    %v1208 = vxor.u32 %v1168, 2147483648
    %v1209 = vmul.f32 %v1208, 1.442695
    %v1210 = vpow.pop %v1209
    %v1211 = vadd.f32 %v1210, 1.0
    %v1212 = vrcp.pop %v1211
    %v1213 = vmul.f32 %v1211, %v1212
    %v1214 = vsub.f32 1.0, %v1213
    %v1215 = vmul.f32 %v1212, %v1214
    %v1216 = vadd.f32 %v1212, %v1215
    %vm1217 = vweird.f32 %v1211
    %vm1218 = vweird.f32 %v1212
    %vm1219 = vmor %vm1217, %vm1218
    %v1220 = vsel %vm1219, %v1212, %v1216
    %v1221 = vand.u32 2147483647, %v1211
    %vm1222 = vcmp.eq.f32.partialorder %v1221, 8.507059e+37
    %v1223 = vand.u32 %v1211, 2147483648
    %v1224 = vor.u32 1.1754944e-38, %v1223
    %v1225 = vsel %vm1222, %v1224, %v1220
    %v1226 = vmul.f32 1.0, %v1225
    %v1228 = vrot.slane %v1064, 6
    %v1230 = vmul.f32 %v1206, %v1228
    %v1231 = vmul.f32 %v1187, %v1207
    %v1232 = vadd.f32 %v1230, %v1231
    %v1233 = vtanh.pop %v1232
    %v1234 = vmul.f32 %v1226, %v1233
    %s1235 = scalar_lea.vmem %s4, 10
    %1236 = vst [vmem:[%s1235 - $0x2] sm:$0xc] %v1234
    %v1237 = vld [vmem:[#allocation4 + $0x20] sm:$0x30]
    %v1238 = vld [vmem:[#allocation4 + $0x28] sm:$0x30]
    %v1239 = vld [vmem:[#allocation4 + $0x30] sm:$0x30]
    %v1240 = vld [vmem:[#allocation4 + $0x38] sm:$0x30]
    %v1242 = vrot.slane %v1234, 2
    %1244 = vmatpush.msra.mxu0 %v242
    %1245 = vmatpush.msra.mxu0 %v238
    %1246 = vmatpush.msra.mxu0 %v234
    %1247 = vmatpush.msra.mxu0 %v230
    %1248 = vmatpush.msra.mxu0 %v226
    %1249 = vmatpush.msra.mxu0 %v222
    %1250 = vmatpush.msra.mxu0 %v218
    %1251 = vmatpush.msra.mxu0 %v214
    %1252 = vmatpush.msra.mxu0 %v210
    %1253 = vmatpush.msra.mxu0 %v206
    %1254 = vmatpush.msra.mxu0 %v202
    %1255 = vmatpush.msra.mxu0 %v198
    %1256 = vmatpush.msra.mxu0 %v194
    %1257 = vmatpush.msra.mxu0 %v190
    %1258 = vmatpush.msra.mxu0 %v186
    %1259 = vmatpush.msra.mxu0 %v182
    %1260 = vmatmul.f32.gmra.mxu0 %v1242
    %v1261 = vpop.f32.mrf.mxu0
    %v1262 = vadd.f32 0.0, %v1261
    %1263 = vdwg.mxu0
    %1264 = vmatpush.msra.mxu0 %v243
    %1265 = vmatpush.msra.mxu0 %v239
    %1266 = vmatpush.msra.mxu0 %v235
    %1267 = vmatpush.msra.mxu0 %v231
    %1268 = vmatpush.msra.mxu0 %v227
    %1269 = vmatpush.msra.mxu0 %v223
    %1270 = vmatpush.msra.mxu0 %v219
    %1271 = vmatpush.msra.mxu0 %v215
    %1272 = vmatpush.msra.mxu0 %v211
    %1273 = vmatpush.msra.mxu0 %v207
    %1274 = vmatpush.msra.mxu0 %v203
    %1275 = vmatpush.msra.mxu0 %v199
    %1276 = vmatpush.msra.mxu0 %v195
    %1277 = vmatpush.msra.mxu0 %v191
    %1278 = vmatpush.msra.mxu0 %v187
    %1279 = vmatpush.msra.mxu0 %v183
    %1280 = vmatmul.f32.gmra.mxu0 %v1242
    %v1281 = vpop.f32.mrf.mxu0
    %v1282 = vadd.f32 0.0, %v1281
    %1283 = vdwg.mxu0
    %1284 = vmatpush.msra.mxu0 %v244
    %1285 = vmatpush.msra.mxu0 %v240
    %1286 = vmatpush.msra.mxu0 %v236
    %1287 = vmatpush.msra.mxu0 %v232
    %1288 = vmatpush.msra.mxu0 %v228
    %1289 = vmatpush.msra.mxu0 %v224
    %1290 = vmatpush.msra.mxu0 %v220
    %1291 = vmatpush.msra.mxu0 %v216
    %1292 = vmatpush.msra.mxu0 %v212
    %1293 = vmatpush.msra.mxu0 %v208
    %1294 = vmatpush.msra.mxu0 %v204
    %1295 = vmatpush.msra.mxu0 %v200
    %1296 = vmatpush.msra.mxu0 %v196
    %1297 = vmatpush.msra.mxu0 %v192
    %1298 = vmatpush.msra.mxu0 %v188
    %1299 = vmatpush.msra.mxu0 %v184
    %1300 = vmatmul.f32.gmra.mxu0 %v1242
    %v1301 = vpop.f32.mrf.mxu0
    %v1302 = vadd.f32 0.0, %v1301
    %1303 = vdwg.mxu0
    %1304 = vmatpush.msra.mxu0 %v245
    %1305 = vmatpush.msra.mxu0 %v241
    %1306 = vmatpush.msra.mxu0 %v237
    %1307 = vmatpush.msra.mxu0 %v233
    %1308 = vmatpush.msra.mxu0 %v229
    %1309 = vmatpush.msra.mxu0 %v225
    %1310 = vmatpush.msra.mxu0 %v221
    %1311 = vmatpush.msra.mxu0 %v217
    %1312 = vmatpush.msra.mxu0 %v213
    %1313 = vmatpush.msra.mxu0 %v209
    %1314 = vmatpush.msra.mxu0 %v205
    %1315 = vmatpush.msra.mxu0 %v201
    %1316 = vmatpush.msra.mxu0 %v197
    %1317 = vmatpush.msra.mxu0 %v193
    %1318 = vmatpush.msra.mxu0 %v189
    %1319 = vmatpush.msra.mxu0 %v185
    %1320 = vmatmul.f32.gmra.mxu0 %v1242
    %v1321 = vpop.f32.mrf.mxu0
    %v1322 = vadd.f32 0.0, %v1321
    %1323 = vdwg.mxu0
    %v1328 = vrot.slane %v1262, 4
    %v1329 = vrot.slane %v1282, 4
    %v1330 = vrot.slane %v1302, 4
    %v1331 = vrot.slane %v1322, 4
    %v1336 = vadd.f32 %v1237, %v1328
    %v1337 = vadd.f32 %v1238, %v1329
    %v1338 = vadd.f32 %v1239, %v1330
    %v1339 = vadd.f32 %v1240, %v1331
    %v1340 = vxor.u32 %v1336, 2147483648
    %v1341 = vmul.f32 %v1340, 1.442695
    %v1342 = vpow.pop %v1341
    %v1343 = vadd.f32 %v1342, 1.0
    %v1344 = vrcp.pop %v1343
    %v1345 = vmul.f32 %v1343, %v1344
    %v1346 = vsub.f32 1.0, %v1345
    %v1347 = vmul.f32 %v1344, %v1346
    %v1348 = vadd.f32 %v1344, %v1347
    %vm1349 = vweird.f32 %v1343
    %vm1350 = vweird.f32 %v1344
    %vm1351 = vmor %vm1349, %vm1350
    %v1352 = vsel %vm1351, %v1344, %v1348
    %v1353 = vand.u32 2147483647, %v1343
    %vm1354 = vcmp.eq.f32.partialorder %v1353, 8.507059e+37
    %v1355 = vand.u32 %v1343, 2147483648
    %v1356 = vor.u32 1.1754944e-38, %v1355
    %v1357 = vsel %vm1354, %v1356, %v1352
    %v1358 = vmul.f32 1.0, %v1357
    %v1359 = vxor.u32 %v1337, 2147483648
    %v1360 = vmul.f32 %v1359, 1.442695
    %v1361 = vpow.pop %v1360
    %v1362 = vadd.f32 %v1361, 1.0
    %v1363 = vrcp.pop %v1362
    %v1364 = vmul.f32 %v1362, %v1363
    %v1365 = vsub.f32 1.0, %v1364
    %v1366 = vmul.f32 %v1363, %v1365
    %v1367 = vadd.f32 %v1363, %v1366
    %vm1368 = vweird.f32 %v1362
    %vm1369 = vweird.f32 %v1363
    %vm1370 = vmor %vm1368, %vm1369
    %v1371 = vsel %vm1370, %v1363, %v1367
    %v1372 = vand.u32 2147483647, %v1362
    %vm1373 = vcmp.eq.f32.partialorder %v1372, 8.507059e+37
    %v1374 = vand.u32 %v1362, 2147483648
    %v1375 = vor.u32 1.1754944e-38, %v1374
    %v1376 = vsel %vm1373, %v1375, %v1371
    %v1377 = vmul.f32 1.0, %v1376
    %v1378 = vtanh.pop %v1338
    %v1379 = vxor.u32 %v1339, 2147483648
    %v1380 = vmul.f32 %v1379, 1.442695
    %v1381 = vpow.pop %v1380
    %v1382 = vadd.f32 %v1381, 1.0
    %v1383 = vrcp.pop %v1382
    %v1384 = vmul.f32 %v1382, %v1383
    %v1385 = vsub.f32 1.0, %v1384
    %v1386 = vmul.f32 %v1383, %v1385
    %v1387 = vadd.f32 %v1383, %v1386
    %vm1388 = vweird.f32 %v1382
    %vm1389 = vweird.f32 %v1383
    %vm1390 = vmor %vm1388, %vm1389
    %v1391 = vsel %vm1390, %v1383, %v1387
    %v1392 = vand.u32 2147483647, %v1382
    %vm1393 = vcmp.eq.f32.partialorder %v1392, 8.507059e+37
    %v1394 = vand.u32 %v1382, 2147483648
    %v1395 = vor.u32 1.1754944e-38, %v1394
    %v1396 = vsel %vm1393, %v1395, %v1391
    %v1397 = vmul.f32 1.0, %v1396
    %v1399 = vrot.slane %v1232, 6
    %v1401 = vmul.f32 %v1377, %v1399
    %v1402 = vmul.f32 %v1358, %v1378
    %v1403 = vadd.f32 %v1401, %v1402
    %v1404 = vtanh.pop %v1403
    %v1405 = vmul.f32 %v1397, %v1404
    %s1406 = scalar_lea.vmem %s4, 12
    %1407 = vst [vmem:[%s1406 - $0x4] sm:$0x30] %v1405
    %v1408 = vld [vmem:[#allocation4 + $0x20] sm:$0xc0]
    %v1409 = vld [vmem:[#allocation4 + $0x28] sm:$0xc0]
    %v1410 = vld [vmem:[#allocation4 + $0x30] sm:$0xc0]
    %v1411 = vld [vmem:[#allocation4 + $0x38] sm:$0xc0]
    %v1413 = vrot.slane %v1405, 4
    %1415 = vmatpush.msra.mxu0 %v242
    %1416 = vmatpush.msra.mxu0 %v238
    %1417 = vmatpush.msra.mxu0 %v234
    %1418 = vmatpush.msra.mxu0 %v230
    %1419 = vmatpush.msra.mxu0 %v226
    %1420 = vmatpush.msra.mxu0 %v222
    %1421 = vmatpush.msra.mxu0 %v218
    %1422 = vmatpush.msra.mxu0 %v214
    %1423 = vmatpush.msra.mxu0 %v210
    %1424 = vmatpush.msra.mxu0 %v206
    %1425 = vmatpush.msra.mxu0 %v202
    %1426 = vmatpush.msra.mxu0 %v198
    %1427 = vmatpush.msra.mxu0 %v194
    %1428 = vmatpush.msra.mxu0 %v190
    %1429 = vmatpush.msra.mxu0 %v186
    %1430 = vmatpush.msra.mxu0 %v182
    %1431 = vmatmul.f32.gmra.mxu0 %v1413
    %v1432 = vpop.f32.mrf.mxu0
    %v1433 = vadd.f32 0.0, %v1432
    %1434 = vdwg.mxu0
    %1435 = vmatpush.msra.mxu0 %v243
    %1436 = vmatpush.msra.mxu0 %v239
    %1437 = vmatpush.msra.mxu0 %v235
    %1438 = vmatpush.msra.mxu0 %v231
    %1439 = vmatpush.msra.mxu0 %v227
    %1440 = vmatpush.msra.mxu0 %v223
    %1441 = vmatpush.msra.mxu0 %v219
    %1442 = vmatpush.msra.mxu0 %v215
    %1443 = vmatpush.msra.mxu0 %v211
    %1444 = vmatpush.msra.mxu0 %v207
    %1445 = vmatpush.msra.mxu0 %v203
    %1446 = vmatpush.msra.mxu0 %v199
    %1447 = vmatpush.msra.mxu0 %v195
    %1448 = vmatpush.msra.mxu0 %v191
    %1449 = vmatpush.msra.mxu0 %v187
    %1450 = vmatpush.msra.mxu0 %v183
    %1451 = vmatmul.f32.gmra.mxu0 %v1413
    %v1452 = vpop.f32.mrf.mxu0
    %v1453 = vadd.f32 0.0, %v1452
    %1454 = vdwg.mxu0
    %1455 = vmatpush.msra.mxu0 %v244
    %1456 = vmatpush.msra.mxu0 %v240
    %1457 = vmatpush.msra.mxu0 %v236
    %1458 = vmatpush.msra.mxu0 %v232
    %1459 = vmatpush.msra.mxu0 %v228
    %1460 = vmatpush.msra.mxu0 %v224
    %1461 = vmatpush.msra.mxu0 %v220
    %1462 = vmatpush.msra.mxu0 %v216
    %1463 = vmatpush.msra.mxu0 %v212
    %1464 = vmatpush.msra.mxu0 %v208
    %1465 = vmatpush.msra.mxu0 %v204
    %1466 = vmatpush.msra.mxu0 %v200
    %1467 = vmatpush.msra.mxu0 %v196
    %1468 = vmatpush.msra.mxu0 %v192
    %1469 = vmatpush.msra.mxu0 %v188
    %1470 = vmatpush.msra.mxu0 %v184
    %1471 = vmatmul.f32.gmra.mxu0 %v1413
    %v1472 = vpop.f32.mrf.mxu0
    %v1473 = vadd.f32 0.0, %v1472
    %1474 = vdwg.mxu0
    %1475 = vmatpush.msra.mxu0 %v245
    %1476 = vmatpush.msra.mxu0 %v241
    %1477 = vmatpush.msra.mxu0 %v237
    %1478 = vmatpush.msra.mxu0 %v233
    %1479 = vmatpush.msra.mxu0 %v229
    %1480 = vmatpush.msra.mxu0 %v225
    %1481 = vmatpush.msra.mxu0 %v221
    %1482 = vmatpush.msra.mxu0 %v217
    %1483 = vmatpush.msra.mxu0 %v213
    %1484 = vmatpush.msra.mxu0 %v209
    %1485 = vmatpush.msra.mxu0 %v205
    %1486 = vmatpush.msra.mxu0 %v201
    %1487 = vmatpush.msra.mxu0 %v197
    %1488 = vmatpush.msra.mxu0 %v193
    %1489 = vmatpush.msra.mxu0 %v189
    %1490 = vmatpush.msra.mxu0 %v185
    %1491 = vmatmul.f32.gmra.mxu0 %v1413
    %v1492 = vpop.f32.mrf.mxu0
    %v1493 = vadd.f32 0.0, %v1492
    %1494 = vdwg.mxu0
    %v1499 = vrot.slane %v1433, 2
    %v1500 = vrot.slane %v1453, 2
    %v1501 = vrot.slane %v1473, 2
    %v1502 = vrot.slane %v1493, 2
    %v1507 = vadd.f32 %v1408, %v1499
    %v1508 = vadd.f32 %v1409, %v1500
    %v1509 = vadd.f32 %v1410, %v1501
    %v1510 = vadd.f32 %v1411, %v1502
    %v1511 = vxor.u32 %v1507, 2147483648
    %v1512 = vmul.f32 %v1511, 1.442695
    %v1513 = vpow.pop %v1512
    %v1514 = vadd.f32 %v1513, 1.0
    %v1515 = vrcp.pop %v1514
    %v1516 = vmul.f32 %v1514, %v1515
    %v1517 = vsub.f32 1.0, %v1516
    %v1518 = vmul.f32 %v1515, %v1517
    %v1519 = vadd.f32 %v1515, %v1518
    %vm1520 = vweird.f32 %v1514
    %vm1521 = vweird.f32 %v1515
    %vm1522 = vmor %vm1520, %vm1521
    %v1523 = vsel %vm1522, %v1515, %v1519
    %v1524 = vand.u32 2147483647, %v1514
    %vm1525 = vcmp.eq.f32.partialorder %v1524, 8.507059e+37
    %v1526 = vand.u32 %v1514, 2147483648
    %v1527 = vor.u32 1.1754944e-38, %v1526
    %v1528 = vsel %vm1525, %v1527, %v1523
    %v1529 = vmul.f32 1.0, %v1528
    %v1530 = vxor.u32 %v1508, 2147483648
    %v1531 = vmul.f32 %v1530, 1.442695
    %v1532 = vpow.pop %v1531
    %v1533 = vadd.f32 %v1532, 1.0
    %v1534 = vrcp.pop %v1533
    %v1535 = vmul.f32 %v1533, %v1534
    %v1536 = vsub.f32 1.0, %v1535
    %v1537 = vmul.f32 %v1534, %v1536
    %v1538 = vadd.f32 %v1534, %v1537
    %vm1539 = vweird.f32 %v1533
    %vm1540 = vweird.f32 %v1534
    %vm1541 = vmor %vm1539, %vm1540
    %v1542 = vsel %vm1541, %v1534, %v1538
    %v1543 = vand.u32 2147483647, %v1533
    %vm1544 = vcmp.eq.f32.partialorder %v1543, 8.507059e+37
    %v1545 = vand.u32 %v1533, 2147483648
    %v1546 = vor.u32 1.1754944e-38, %v1545
    %v1547 = vsel %vm1544, %v1546, %v1542
    %v1548 = vmul.f32 1.0, %v1547
    %v1549 = vtanh.pop %v1509
    %v1550 = vxor.u32 %v1510, 2147483648
    %v1551 = vmul.f32 %v1550, 1.442695
    %v1552 = vpow.pop %v1551
    %v1553 = vadd.f32 %v1552, 1.0
    %v1554 = vrcp.pop %v1553
    %v1555 = vmul.f32 %v1553, %v1554
    %v1556 = vsub.f32 1.0, %v1555
    %v1557 = vmul.f32 %v1554, %v1556
    %v1558 = vadd.f32 %v1554, %v1557
    %vm1559 = vweird.f32 %v1553
    %vm1560 = vweird.f32 %v1554
    %vm1561 = vmor %vm1559, %vm1560
    %v1562 = vsel %vm1561, %v1554, %v1558
    %v1563 = vand.u32 2147483647, %v1553
    %vm1564 = vcmp.eq.f32.partialorder %v1563, 8.507059e+37
    %v1565 = vand.u32 %v1553, 2147483648
    %v1566 = vor.u32 1.1754944e-38, %v1565
    %v1567 = vsel %vm1564, %v1566, %v1562
    %v1568 = vmul.f32 1.0, %v1567
    %v1570 = vrot.slane %v1403, 6
    %v1572 = vmul.f32 %v1548, %v1570
    %v1573 = vmul.f32 %v1529, %v1549
    %v1574 = vadd.f32 %v1572, %v1573
    %v1575 = vtanh.pop %v1574
    %v1576 = vmul.f32 %v1568, %v1575
    %s1577 = scalar_lea.vmem %s4, 14
    %1578 = vst [vmem:[%s1577 - $0x6] sm:$0xc0] %v1576
    %1579 = vst [vmem:[#allocation2 - $0x6] sm:$0xc0] %v1576
    %1580 = vst [vmem:[#allocation3 - $0x6] sm:$0xc0] %v1574
    // Predicated region
    $region30: #{lstm_forward.2} parent=1 // pred_check
      _
    $region31: #{lstm_forward.2} parent=1 // pred_check_branch
      %1582 = sbr.rel (0) target = $region33
    $region32: #{lstm_forward.2} parent=1 // pred_region
      _
    $region33: #{lstm_forward.2} parent=1 // pred_fallthru
      _
    // Predicated region
    $region34: #{lstm_forward.2} parent=1 // pred_check
      _
    $region35: #{lstm_forward.2} parent=1 // pred_check_branch
      %1584 = sbr.rel (0) target = $region37
    $region36: #{lstm_forward.2} parent=1 // pred_region
      _
    $region37: #{lstm_forward.2} parent=1 // pred_fallthru
      _
    %1585 = vsyncpa [#allocation6], 1
    %1586 = vsyncpa [#allocation8], 1

// kernel: lstm_forward.3
$region0: #{lstm_forward.3}
  #allocation0 [shape = 'u32[]', space=smem, size = 0x4, offset = 0x4, fixed_abs, tag = 'smem constant byte address 0x4 - core index']
  #allocation1 [shape = 'u32[72,128]{1,0:T(1,128)}', space=vmem, size = 0x9000, scoped, tag = 'internal scratch']
  #allocation2 [shape = 'f32[2,128]{1,0:T(2,128)}', space=vmem, size = 0x400, scoped, tag = 'scratch operand']
  #allocation3 [shape = 'f32[2,128]{1,0:T(2,128)}', space=vmem, size = 0x400, scoped, tag = 'scratch operand']
  #allocation4 [shape = 'f32[16,512]{1,0:T(8,128)}', space=vmem, size = 0x8000, scoped, tag = 'scratch operand']
  #allocation5 [shape = 'f32[1,1]{1,0:T(1,128)S(1)}', space=vmem, size = 0x200, scoped, tag = 'scoped memory for lstm_forward.3']
  %s0 = inlined_call_operand.vmem [shape: f32[16,128], index: 0, kind: input, shape index: {}]
  %s1 = inlined_call_operand.hbm [shape: f32[128,512], index: 1, kind: input, shape index: {}]
  %s2 = inlined_call_operand.hbm [shape: f32[128,512], index: 2, kind: input, shape index: {}]
  %s3 = inlined_call_operand.vmem [shape: f32[1,512], index: 3, kind: input, shape index: {}]
  %s4 = inlined_call_operand.vmem [shape: f32[128,1], index: 4, kind: input, shape index: {}]
  %s5 = inlined_call_operand.<no memory space> [shape: f32[1,1], index: 5, kind: input, shape index: {}]
  %s6 = inlined_call_operand.vmem [shape: f32[2,1], index: 6, kind: output, shape index: {}]
  %s7 = sld [smem:[#allocation0]]
  $region50: #{lstm_forward.3} parent=0
    _
  %s9 = ssub.s32 1, %s7
  %s10 = scalar_select 0, %s9, %s7
  %v11 = vstv %s5
  %12 = vst [vmem:[#allocation5] sm:$0x1] %v11
  $region1: #{lstm_forward.3} parent=0
    #allocation6 [shape = 'u8[262144]{0}', space=vmem, size = 0x40000, scoped, tag = 'input window, operand 1, single buffered']
    #allocation7 [shape = 's32[1]{0}', space=sflag, size = 0x4, scoped, tag = 'scoped memory for lstm_forward.3']
    #allocation8 [shape = 'u8[262144]{0}', space=vmem, size = 0x40000, scoped, tag = 'input window, operand 2, single buffered']
    #allocation9 [shape = 's32[1]{0}', space=sflag, size = 0x4, scoped, tag = 'scoped memory for lstm_forward.3']
    %13 = vsyncpa [#allocation7], 0
    %14 = vsyncpa [#allocation9], 0
    // Predicated region
    $region2: #{lstm_forward.3} parent=1 // pred_check
      _
    $region3: #{lstm_forward.3} parent=1 // pred_check_branch
      %16 = sbr.rel (0) target = $region5
    $region4: #{lstm_forward.3} parent=1 // pred_region
      _
    $region5: #{lstm_forward.3} parent=1 // pred_fallthru
      _
    // Predicated region
    $region6: #{lstm_forward.3} parent=1 // pred_check
      _
    $region7: #{lstm_forward.3} parent=1 // pred_check_branch
      %18 = sbr.rel (0) target = $region9
    $region8: #{lstm_forward.3} parent=1 // pred_region
      %20 = vsyncadd [#allocation7], 0
      %s21 = sshll.u32 %s1, 4
      %s22 = int_to_ptr.hbm [resolvable:$true] %s21
      %s23 = sshll.u32 [#allocation6], 4
      %s24 = int_to_ptr.vmem [resolvable:$true] %s23
      %29 = dma.hbm_to_vmem [thread:$0]  %s22, 8192, %s24, [#allocation7], 512, 512, 32
    $region9: #{lstm_forward.3} parent=1 // pred_fallthru
      _
    // Predicated region
    $region10: #{lstm_forward.3} parent=1 // pred_check
      _
    $region11: #{lstm_forward.3} parent=1 // pred_check_branch
      %31 = sbr.rel (0) target = $region13
    $region12: #{lstm_forward.3} parent=1 // pred_region
      %33 = vsyncadd [#allocation9], 0
      %s34 = sshll.u32 %s2, 4
      %s35 = int_to_ptr.hbm [resolvable:$true] %s34
      %s36 = sshll.u32 [#allocation8], 4
      %s37 = int_to_ptr.vmem [resolvable:$true] %s36
      %42 = dma.hbm_to_vmem [thread:$0]  %s35, 8192, %s37, [#allocation9], 512, 512, 32
    $region13: #{lstm_forward.3} parent=1 // pred_fallthru
      _
    // Predicated region
    $region14: #{lstm_forward.3} parent=1 // pred_check
      _
    $region15: #{lstm_forward.3} parent=1 // pred_check_branch
      %44 = sbr.rel (0) target = $region17
    $region16: #{lstm_forward.3} parent=1 // pred_region
      _
    $region17: #{lstm_forward.3} parent=1 // pred_fallthru
      _
    // Predicated region
    $region18: #{lstm_forward.3} parent=1 // pred_check
      _
    $region19: #{lstm_forward.3} parent=1 // pred_check_branch
      %46 = sbr.rel (0) target = $region21
    $region20: #{lstm_forward.3} parent=1 // pred_region
      _
    $region21: #{lstm_forward.3} parent=1 // pred_fallthru
      _
    // Predicated region
    $region22: #{lstm_forward.3} parent=1 // pred_check
      _
    $region23: #{lstm_forward.3} parent=1 // pred_check_branch
      %48 = sbr.rel (0) target = $region25
    $region24: #{lstm_forward.3} parent=1 // pred_region
      _
    $region25: #{lstm_forward.3} parent=1 // pred_fallthru
      _
    // Predicated region
    $region26: #{lstm_forward.3} parent=1 // pred_check
      _
    $region27: #{lstm_forward.3} parent=1 // pred_check_branch
      %50 = sbr.rel (0) target = $region29
    $region28: #{lstm_forward.3} parent=1 // pred_region
      %52 = dma.done [#allocation7], 8192
    $region29: #{lstm_forward.3} parent=1 // pred_fallthru
      _
    // Predicated region
    $region30: #{lstm_forward.3} parent=1 // pred_check
      _
    $region31: #{lstm_forward.3} parent=1 // pred_check_branch
      %54 = sbr.rel (0) target = $region33
    $region32: #{lstm_forward.3} parent=1 // pred_region
      %56 = dma.done [#allocation9], 8192
    $region33: #{lstm_forward.3} parent=1 // pred_fallthru
      _
    %p57 = scmp.eq.s32.totalorder 0, 0
    // Predicated region
    $region34: #{lstm_forward.3} parent=1 // pred_check
      %p58 = pneg %p57
    $region35: #{lstm_forward.3} parent=1 // pred_check_branch
      %60 = sbr.rel (%p58) target = $region37
    $region36: #{lstm_forward.3} parent=1 // pred_region
      %61 = vst [vmem:[#allocation2] sm:$0x3] 0.0
      %62 = vst [vmem:[#allocation3] sm:$0x3] 0.0
    $region37: #{lstm_forward.3} parent=1 // pred_fallthru
      _
    %v63 = vld [vmem:[%s0] sm:$0xff]
    %v64 = vld [vmem:[%s0 + $0x8] sm:$0xff]
    %v65 = vld [vmem:[#allocation6] sm:$0xff]
    %v66 = vld [vmem:[#allocation6 + $0x8] sm:$0xff]
    %v67 = vld [vmem:[#allocation6 + $0x10] sm:$0xff]
    %v68 = vld [vmem:[#allocation6 + $0x18] sm:$0xff]
    %v69 = vld [vmem:[#allocation6 + $0x20] sm:$0xff]
    %v70 = vld [vmem:[#allocation6 + $0x28] sm:$0xff]
    %v71 = vld [vmem:[#allocation6 + $0x30] sm:$0xff]
    %v72 = vld [vmem:[#allocation6 + $0x38] sm:$0xff]
    %v73 = vld [vmem:[#allocation6 + $0x40] sm:$0xff]
    %v74 = vld [vmem:[#allocation6 + $0x48] sm:$0xff]
    %v75 = vld [vmem:[#allocation6 + $0x50] sm:$0xff]
    %v76 = vld [vmem:[#allocation6 + $0x58] sm:$0xff]
    %v77 = vld [vmem:[#allocation6 + $0x60] sm:$0xff]
    %v78 = vld [vmem:[#allocation6 + $0x68] sm:$0xff]
    %v79 = vld [vmem:[#allocation6 + $0x70] sm:$0xff]
    %v80 = vld [vmem:[#allocation6 + $0x78] sm:$0xff]
    %v81 = vld [vmem:[#allocation6 + $0x80] sm:$0xff]
    %v82 = vld [vmem:[#allocation6 + $0x88] sm:$0xff]
    %v83 = vld [vmem:[#allocation6 + $0x90] sm:$0xff]
    %v84 = vld [vmem:[#allocation6 + $0x98] sm:$0xff]
    %v85 = vld [vmem:[#allocation6 + $0xa0] sm:$0xff]
    %v86 = vld [vmem:[#allocation6 + $0xa8] sm:$0xff]
    %v87 = vld [vmem:[#allocation6 + $0xb0] sm:$0xff]
    %v88 = vld [vmem:[#allocation6 + $0xb8] sm:$0xff]
    %v89 = vld [vmem:[#allocation6 + $0xc0] sm:$0xff]
    %v90 = vld [vmem:[#allocation6 + $0xc8] sm:$0xff]
    %v91 = vld [vmem:[#allocation6 + $0xd0] sm:$0xff]
    %v92 = vld [vmem:[#allocation6 + $0xd8] sm:$0xff]
    %v93 = vld [vmem:[#allocation6 + $0xe0] sm:$0xff]
    %v94 = vld [vmem:[#allocation6 + $0xe8] sm:$0xff]
    %v95 = vld [vmem:[#allocation6 + $0xf0] sm:$0xff]
    %v96 = vld [vmem:[#allocation6 + $0xf8] sm:$0xff]
    %v97 = vld [vmem:[#allocation6 + $0x100] sm:$0xff]
    %v98 = vld [vmem:[#allocation6 + $0x108] sm:$0xff]
    %v99 = vld [vmem:[#allocation6 + $0x110] sm:$0xff]
    %v100 = vld [vmem:[#allocation6 + $0x118] sm:$0xff]
    %v101 = vld [vmem:[#allocation6 + $0x120] sm:$0xff]
    %v102 = vld [vmem:[#allocation6 + $0x128] sm:$0xff]
    %v103 = vld [vmem:[#allocation6 + $0x130] sm:$0xff]
    %v104 = vld [vmem:[#allocation6 + $0x138] sm:$0xff]
    %v105 = vld [vmem:[#allocation6 + $0x140] sm:$0xff]
    %v106 = vld [vmem:[#allocation6 + $0x148] sm:$0xff]
    %v107 = vld [vmem:[#allocation6 + $0x150] sm:$0xff]
    %v108 = vld [vmem:[#allocation6 + $0x158] sm:$0xff]
    %v109 = vld [vmem:[#allocation6 + $0x160] sm:$0xff]
    %v110 = vld [vmem:[#allocation6 + $0x168] sm:$0xff]
    %v111 = vld [vmem:[#allocation6 + $0x170] sm:$0xff]
    %v112 = vld [vmem:[#allocation6 + $0x178] sm:$0xff]
    %v113 = vld [vmem:[#allocation6 + $0x180] sm:$0xff]
    %v114 = vld [vmem:[#allocation6 + $0x188] sm:$0xff]
    %v115 = vld [vmem:[#allocation6 + $0x190] sm:$0xff]
    %v116 = vld [vmem:[#allocation6 + $0x198] sm:$0xff]
    %v117 = vld [vmem:[#allocation6 + $0x1a0] sm:$0xff]
    %v118 = vld [vmem:[#allocation6 + $0x1a8] sm:$0xff]
    %v119 = vld [vmem:[#allocation6 + $0x1b0] sm:$0xff]
    %v120 = vld [vmem:[#allocation6 + $0x1b8] sm:$0xff]
    %v121 = vld [vmem:[#allocation6 + $0x1c0] sm:$0xff]
    %v122 = vld [vmem:[#allocation6 + $0x1c8] sm:$0xff]
    %v123 = vld [vmem:[#allocation6 + $0x1d0] sm:$0xff]
    %v124 = vld [vmem:[#allocation6 + $0x1d8] sm:$0xff]
    %v125 = vld [vmem:[#allocation6 + $0x1e0] sm:$0xff]
    %v126 = vld [vmem:[#allocation6 + $0x1e8] sm:$0xff]
    %v127 = vld [vmem:[#allocation6 + $0x1f0] sm:$0xff]
    %v128 = vld [vmem:[#allocation6 + $0x1f8] sm:$0xff]
    %v129 = vld [vmem:[%s3] sm:$0xf]
    %v131 = vperm.slane %v129, 0
    %v132 = vperm.slane %v129, 1
    %v133 = vperm.slane %v129, 2
    %v134 = vperm.slane %v129, 3
    %139 = vmatpush.msra.mxu0 %v125
    %140 = vmatpush.msra.mxu0 %v121
    %141 = vmatpush.msra.mxu0 %v117
    %142 = vmatpush.msra.mxu0 %v113
    %143 = vmatpush.msra.mxu0 %v109
    %144 = vmatpush.msra.mxu0 %v105
    %145 = vmatpush.msra.mxu0 %v101
    %146 = vmatpush.msra.mxu0 %v97
    %147 = vmatpush.msra.mxu0 %v93
    %148 = vmatpush.msra.mxu0 %v89
    %149 = vmatpush.msra.mxu0 %v85
    %150 = vmatpush.msra.mxu0 %v81
    %151 = vmatpush.msra.mxu0 %v77
    %152 = vmatpush.msra.mxu0 %v73
    %153 = vmatpush.msra.mxu0 %v69
    %154 = vmatpush.msra.mxu0 %v65
    %155 = vmatmul.f32.gmra.mxu0 %v63
    %v156 = vpop.f32.mrf.mxu0
    %v157 = vadd.f32 %v131, %v156
    %158 = vmatmul.f32.gmra.mxu0 %v64
    %v159 = vpop.f32.mrf.mxu0
    %v160 = vadd.f32 %v131, %v159
    %161 = vdwg.mxu0
    %162 = vmatpush.msra.mxu0 %v126
    %163 = vmatpush.msra.mxu0 %v122
    %164 = vmatpush.msra.mxu0 %v118
    %165 = vmatpush.msra.mxu0 %v114
    %166 = vmatpush.msra.mxu0 %v110
    %167 = vmatpush.msra.mxu0 %v106
    %168 = vmatpush.msra.mxu0 %v102
    %169 = vmatpush.msra.mxu0 %v98
    %170 = vmatpush.msra.mxu0 %v94
    %171 = vmatpush.msra.mxu0 %v90
    %172 = vmatpush.msra.mxu0 %v86
    %173 = vmatpush.msra.mxu0 %v82
    %174 = vmatpush.msra.mxu0 %v78
    %175 = vmatpush.msra.mxu0 %v74
    %176 = vmatpush.msra.mxu0 %v70
    %177 = vmatpush.msra.mxu0 %v66
    %178 = vmatmul.f32.gmra.mxu0 %v63
    %v179 = vpop.f32.mrf.mxu0
    %v180 = vadd.f32 %v132, %v179
    %181 = vmatmul.f32.gmra.mxu0 %v64
    %v182 = vpop.f32.mrf.mxu0
    %v183 = vadd.f32 %v132, %v182
    %184 = vdwg.mxu0
    %185 = vmatpush.msra.mxu0 %v127
    %186 = vmatpush.msra.mxu0 %v123
    %187 = vmatpush.msra.mxu0 %v119
    %188 = vmatpush.msra.mxu0 %v115
    %189 = vmatpush.msra.mxu0 %v111
    %190 = vmatpush.msra.mxu0 %v107
    %191 = vmatpush.msra.mxu0 %v103
    %192 = vmatpush.msra.mxu0 %v99
    %193 = vmatpush.msra.mxu0 %v95
    %194 = vmatpush.msra.mxu0 %v91
    %195 = vmatpush.msra.mxu0 %v87
    %196 = vmatpush.msra.mxu0 %v83
    %197 = vmatpush.msra.mxu0 %v79
    %198 = vmatpush.msra.mxu0 %v75
    %199 = vmatpush.msra.mxu0 %v71
    %200 = vmatpush.msra.mxu0 %v67
    %201 = vmatmul.f32.gmra.mxu0 %v63
    %v202 = vpop.f32.mrf.mxu0
    %v203 = vadd.f32 %v133, %v202
    %204 = vmatmul.f32.gmra.mxu0 %v64
    %v205 = vpop.f32.mrf.mxu0
    %v206 = vadd.f32 %v133, %v205
    %207 = vdwg.mxu0
    %208 = vmatpush.msra.mxu0 %v128
    %209 = vmatpush.msra.mxu0 %v124
    %210 = vmatpush.msra.mxu0 %v120
    %211 = vmatpush.msra.mxu0 %v116
    %212 = vmatpush.msra.mxu0 %v112
    %213 = vmatpush.msra.mxu0 %v108
    %214 = vmatpush.msra.mxu0 %v104
    %215 = vmatpush.msra.mxu0 %v100
    %216 = vmatpush.msra.mxu0 %v96
    %217 = vmatpush.msra.mxu0 %v92
    %218 = vmatpush.msra.mxu0 %v88
    %219 = vmatpush.msra.mxu0 %v84
    %220 = vmatpush.msra.mxu0 %v80
    %221 = vmatpush.msra.mxu0 %v76
    %222 = vmatpush.msra.mxu0 %v72
    %223 = vmatpush.msra.mxu0 %v68
    %224 = vmatmul.f32.gmra.mxu0 %v63
    %v225 = vpop.f32.mrf.mxu0
    %v226 = vadd.f32 %v134, %v225
    %227 = vmatmul.f32.gmra.mxu0 %v64
    %v228 = vpop.f32.mrf.mxu0
    %v229 = vadd.f32 %v134, %v228
    %230 = vdwg.mxu0
    %231 = vst [vmem:[#allocation4] sm:$0xff] %v157
    %232 = vst [vmem:[#allocation4 + $0x8] sm:$0xff] %v180
    %233 = vst [vmem:[#allocation4 + $0x10] sm:$0xff] %v203
    %234 = vst [vmem:[#allocation4 + $0x18] sm:$0xff] %v226
    %235 = vst [vmem:[#allocation4 + $0x20] sm:$0xff] %v160
    %236 = vst [vmem:[#allocation4 + $0x28] sm:$0xff] %v183
    %237 = vst [vmem:[#allocation4 + $0x30] sm:$0xff] %v206
    %238 = vst [vmem:[#allocation4 + $0x38] sm:$0xff] %v229
    %v239 = vld [vmem:[#allocation8] sm:$0xff]
    %v240 = vld [vmem:[#allocation8 + $0x8] sm:$0xff]
    %v241 = vld [vmem:[#allocation8 + $0x10] sm:$0xff]
    %v242 = vld [vmem:[#allocation8 + $0x18] sm:$0xff]
    %v243 = vld [vmem:[#allocation8 + $0x20] sm:$0xff]
    %v244 = vld [vmem:[#allocation8 + $0x28] sm:$0xff]
    %v245 = vld [vmem:[#allocation8 + $0x30] sm:$0xff]
    %v246 = vld [vmem:[#allocation8 + $0x38] sm:$0xff]
    %v247 = vld [vmem:[#allocation8 + $0x40] sm:$0xff]
    %v248 = vld [vmem:[#allocation8 + $0x48] sm:$0xff]
    %v249 = vld [vmem:[#allocation8 + $0x50] sm:$0xff]
    %v250 = vld [vmem:[#allocation8 + $0x58] sm:$0xff]
    %v251 = vld [vmem:[#allocation8 + $0x60] sm:$0xff]
    %v252 = vld [vmem:[#allocation8 + $0x68] sm:$0xff]
    %v253 = vld [vmem:[#allocation8 + $0x70] sm:$0xff]
    %v254 = vld [vmem:[#allocation8 + $0x78] sm:$0xff]
    %v255 = vld [vmem:[#allocation8 + $0x80] sm:$0xff]
    %v256 = vld [vmem:[#allocation8 + $0x88] sm:$0xff]
    %v257 = vld [vmem:[#allocation8 + $0x90] sm:$0xff]
    %v258 = vld [vmem:[#allocation8 + $0x98] sm:$0xff]
    %v259 = vld [vmem:[#allocation8 + $0xa0] sm:$0xff]
    %v260 = vld [vmem:[#allocation8 + $0xa8] sm:$0xff]
    %v261 = vld [vmem:[#allocation8 + $0xb0] sm:$0xff]
    %v262 = vld [vmem:[#allocation8 + $0xb8] sm:$0xff]
    %v263 = vld [vmem:[#allocation8 + $0xc0] sm:$0xff]
    %v264 = vld [vmem:[#allocation8 + $0xc8] sm:$0xff]
    %v265 = vld [vmem:[#allocation8 + $0xd0] sm:$0xff]
    %v266 = vld [vmem:[#allocation8 + $0xd8] sm:$0xff]
    %v267 = vld [vmem:[#allocation8 + $0xe0] sm:$0xff]
    %v268 = vld [vmem:[#allocation8 + $0xe8] sm:$0xff]
    %v269 = vld [vmem:[#allocation8 + $0xf0] sm:$0xff]
    %v270 = vld [vmem:[#allocation8 + $0xf8] sm:$0xff]
    %v271 = vld [vmem:[#allocation8 + $0x100] sm:$0xff]
    %v272 = vld [vmem:[#allocation8 + $0x108] sm:$0xff]
    %v273 = vld [vmem:[#allocation8 + $0x110] sm:$0xff]
    %v274 = vld [vmem:[#allocation8 + $0x118] sm:$0xff]
    %v275 = vld [vmem:[#allocation8 + $0x120] sm:$0xff]
    %v276 = vld [vmem:[#allocation8 + $0x128] sm:$0xff]
    %v277 = vld [vmem:[#allocation8 + $0x130] sm:$0xff]
    %v278 = vld [vmem:[#allocation8 + $0x138] sm:$0xff]
    %v279 = vld [vmem:[#allocation8 + $0x140] sm:$0xff]
    %v280 = vld [vmem:[#allocation8 + $0x148] sm:$0xff]
    %v281 = vld [vmem:[#allocation8 + $0x150] sm:$0xff]
    %v282 = vld [vmem:[#allocation8 + $0x158] sm:$0xff]
    %v283 = vld [vmem:[#allocation8 + $0x160] sm:$0xff]
    %v284 = vld [vmem:[#allocation8 + $0x168] sm:$0xff]
    %v285 = vld [vmem:[#allocation8 + $0x170] sm:$0xff]
    %v286 = vld [vmem:[#allocation8 + $0x178] sm:$0xff]
    %v287 = vld [vmem:[#allocation8 + $0x180] sm:$0xff]
    %v288 = vld [vmem:[#allocation8 + $0x188] sm:$0xff]
    %v289 = vld [vmem:[#allocation8 + $0x190] sm:$0xff]
    %v290 = vld [vmem:[#allocation8 + $0x198] sm:$0xff]
    %v291 = vld [vmem:[#allocation8 + $0x1a0] sm:$0xff]
    %v292 = vld [vmem:[#allocation8 + $0x1a8] sm:$0xff]
    %v293 = vld [vmem:[#allocation8 + $0x1b0] sm:$0xff]
    %v294 = vld [vmem:[#allocation8 + $0x1b8] sm:$0xff]
    %v295 = vld [vmem:[#allocation8 + $0x1c0] sm:$0xff]
    %v296 = vld [vmem:[#allocation8 + $0x1c8] sm:$0xff]
    %v297 = vld [vmem:[#allocation8 + $0x1d0] sm:$0xff]
    %v298 = vld [vmem:[#allocation8 + $0x1d8] sm:$0xff]
    %v299 = vld [vmem:[#allocation8 + $0x1e0] sm:$0xff]
    %v300 = vld [vmem:[#allocation8 + $0x1e8] sm:$0xff]
    %v301 = vld [vmem:[#allocation8 + $0x1f0] sm:$0xff]
    %v302 = vld [vmem:[#allocation8 + $0x1f8] sm:$0xff]
    %v303 = vld [vmem:[#allocation2] sm:$0x3]
    %v304 = vld [vmem:[#allocation3] sm:$0x3]
    %v305 = vld [vmem:[#allocation4] sm:$0x3]
    %v306 = vld [vmem:[#allocation4 + $0x8] sm:$0x3]
    %v307 = vld [vmem:[#allocation4 + $0x10] sm:$0x3]
    %v308 = vld [vmem:[#allocation4 + $0x18] sm:$0x3]
    %309 = vmatpush.msra.mxu0 %v299
    %310 = vmatpush.msra.mxu0 %v295
    %311 = vmatpush.msra.mxu0 %v291
    %312 = vmatpush.msra.mxu0 %v287
    %313 = vmatpush.msra.mxu0 %v283
    %314 = vmatpush.msra.mxu0 %v279
    %315 = vmatpush.msra.mxu0 %v275
    %316 = vmatpush.msra.mxu0 %v271
    %317 = vmatpush.msra.mxu0 %v267
    %318 = vmatpush.msra.mxu0 %v263
    %319 = vmatpush.msra.mxu0 %v259
    %320 = vmatpush.msra.mxu0 %v255
    %321 = vmatpush.msra.mxu0 %v251
    %322 = vmatpush.msra.mxu0 %v247
    %323 = vmatpush.msra.mxu0 %v243
    %324 = vmatpush.msra.mxu0 %v239
    %325 = vmatmul.f32.gmra.mxu0 %v303
    %v326 = vpop.f32.mrf.mxu0
    %v327 = vadd.f32 0.0, %v326
    %328 = vdwg.mxu0
    %329 = vmatpush.msra.mxu0 %v300
    %330 = vmatpush.msra.mxu0 %v296
    %331 = vmatpush.msra.mxu0 %v292
    %332 = vmatpush.msra.mxu0 %v288
    %333 = vmatpush.msra.mxu0 %v284
    %334 = vmatpush.msra.mxu0 %v280
    %335 = vmatpush.msra.mxu0 %v276
    %336 = vmatpush.msra.mxu0 %v272
    %337 = vmatpush.msra.mxu0 %v268
    %338 = vmatpush.msra.mxu0 %v264
    %339 = vmatpush.msra.mxu0 %v260
    %340 = vmatpush.msra.mxu0 %v256
    %341 = vmatpush.msra.mxu0 %v252
    %342 = vmatpush.msra.mxu0 %v248
    %343 = vmatpush.msra.mxu0 %v244
    %344 = vmatpush.msra.mxu0 %v240
    %345 = vmatmul.f32.gmra.mxu0 %v303
    %v346 = vpop.f32.mrf.mxu0
    %v347 = vadd.f32 0.0, %v346
    %348 = vdwg.mxu0
    %349 = vmatpush.msra.mxu0 %v301
    %350 = vmatpush.msra.mxu0 %v297
    %351 = vmatpush.msra.mxu0 %v293
    %352 = vmatpush.msra.mxu0 %v289
    %353 = vmatpush.msra.mxu0 %v285
    %354 = vmatpush.msra.mxu0 %v281
    %355 = vmatpush.msra.mxu0 %v277
    %356 = vmatpush.msra.mxu0 %v273
    %357 = vmatpush.msra.mxu0 %v269
    %358 = vmatpush.msra.mxu0 %v265
    %359 = vmatpush.msra.mxu0 %v261
    %360 = vmatpush.msra.mxu0 %v257
    %361 = vmatpush.msra.mxu0 %v253
    %362 = vmatpush.msra.mxu0 %v249
    %363 = vmatpush.msra.mxu0 %v245
    %364 = vmatpush.msra.mxu0 %v241
    %365 = vmatmul.f32.gmra.mxu0 %v303
    %v366 = vpop.f32.mrf.mxu0
    %v367 = vadd.f32 0.0, %v366
    %368 = vdwg.mxu0
    %369 = vmatpush.msra.mxu0 %v302
    %370 = vmatpush.msra.mxu0 %v298
    %371 = vmatpush.msra.mxu0 %v294
    %372 = vmatpush.msra.mxu0 %v290
    %373 = vmatpush.msra.mxu0 %v286
    %374 = vmatpush.msra.mxu0 %v282
    %375 = vmatpush.msra.mxu0 %v278
    %376 = vmatpush.msra.mxu0 %v274
    %377 = vmatpush.msra.mxu0 %v270
    %378 = vmatpush.msra.mxu0 %v266
    %379 = vmatpush.msra.mxu0 %v262
    %380 = vmatpush.msra.mxu0 %v258
    %381 = vmatpush.msra.mxu0 %v254
    %382 = vmatpush.msra.mxu0 %v250
    %383 = vmatpush.msra.mxu0 %v246
    %384 = vmatpush.msra.mxu0 %v242
    %385 = vmatmul.f32.gmra.mxu0 %v303
    %v386 = vpop.f32.mrf.mxu0
    %v387 = vadd.f32 0.0, %v386
    %388 = vdwg.mxu0
    %v389 = vadd.f32 %v305, %v327
    %v390 = vadd.f32 %v306, %v347
    %v391 = vadd.f32 %v307, %v367
    %v392 = vadd.f32 %v308, %v387
    %v393 = vxor.u32 %v389, 2147483648
    %v394 = vmul.f32 %v393, 1.442695
    %v395 = vpow.pop %v394
    %v396 = vadd.f32 %v395, 1.0
    %v397 = vrcp.pop %v396
    %v398 = vmul.f32 %v396, %v397
    %v399 = vsub.f32 1.0, %v398
    %v400 = vmul.f32 %v397, %v399
    %v401 = vadd.f32 %v397, %v400
    %vm402 = vweird.f32 %v396
    %vm403 = vweird.f32 %v397
    %vm404 = vmor %vm402, %vm403
    %v405 = vsel %vm404, %v397, %v401
    %v406 = vand.u32 2147483647, %v396
    %vm407 = vcmp.eq.f32.partialorder %v406, 8.507059e+37
    %v408 = vand.u32 %v396, 2147483648
    %v409 = vor.u32 1.1754944e-38, %v408
    %v410 = vsel %vm407, %v409, %v405
    %v411 = vmul.f32 1.0, %v410
    %v412 = vxor.u32 %v390, 2147483648
    %v413 = vmul.f32 %v412, 1.442695
    %v414 = vpow.pop %v413
    %v415 = vadd.f32 %v414, 1.0
    %v416 = vrcp.pop %v415
    %v417 = vmul.f32 %v415, %v416
    %v418 = vsub.f32 1.0, %v417
    %v419 = vmul.f32 %v416, %v418
    %v420 = vadd.f32 %v416, %v419
    %vm421 = vweird.f32 %v415
    %vm422 = vweird.f32 %v416
    %vm423 = vmor %vm421, %vm422
    %v424 = vsel %vm423, %v416, %v420
    %v425 = vand.u32 2147483647, %v415
    %vm426 = vcmp.eq.f32.partialorder %v425, 8.507059e+37
    %v427 = vand.u32 %v415, 2147483648
    %v428 = vor.u32 1.1754944e-38, %v427
    %v429 = vsel %vm426, %v428, %v424
    %v430 = vmul.f32 1.0, %v429
    %v431 = vtanh.pop %v391
    %v432 = vxor.u32 %v392, 2147483648
    %v433 = vmul.f32 %v432, 1.442695
    %v434 = vpow.pop %v433
    %v435 = vadd.f32 %v434, 1.0
    %v436 = vrcp.pop %v435
    %v437 = vmul.f32 %v435, %v436
    %v438 = vsub.f32 1.0, %v437
    %v439 = vmul.f32 %v436, %v438
    %v440 = vadd.f32 %v436, %v439
    %vm441 = vweird.f32 %v435
    %vm442 = vweird.f32 %v436
    %vm443 = vmor %vm441, %vm442
    %v444 = vsel %vm443, %v436, %v440
    %v445 = vand.u32 2147483647, %v435
    %vm446 = vcmp.eq.f32.partialorder %v445, 8.507059e+37
    %v447 = vand.u32 %v435, 2147483648
    %v448 = vor.u32 1.1754944e-38, %v447
    %v449 = vsel %vm446, %v448, %v444
    %v450 = vmul.f32 1.0, %v449
    %v451 = vmul.f32 %v430, %v304
    %v452 = vmul.f32 %v411, %v431
    %v453 = vadd.f32 %v451, %v452
    %v454 = vtanh.pop %v453
    %v455 = vmul.f32 %v450, %v454
    %v456 = vld [vmem:[#allocation4] sm:$0xc]
    %v457 = vld [vmem:[#allocation4 + $0x8] sm:$0xc]
    %v458 = vld [vmem:[#allocation4 + $0x10] sm:$0xc]
    %v459 = vld [vmem:[#allocation4 + $0x18] sm:$0xc]
    %460 = vmatpush.msra.mxu0 %v299
    %461 = vmatpush.msra.mxu0 %v295
    %462 = vmatpush.msra.mxu0 %v291
    %463 = vmatpush.msra.mxu0 %v287
    %464 = vmatpush.msra.mxu0 %v283
    %465 = vmatpush.msra.mxu0 %v279
    %466 = vmatpush.msra.mxu0 %v275
    %467 = vmatpush.msra.mxu0 %v271
    %468 = vmatpush.msra.mxu0 %v267
    %469 = vmatpush.msra.mxu0 %v263
    %470 = vmatpush.msra.mxu0 %v259
    %471 = vmatpush.msra.mxu0 %v255
    %472 = vmatpush.msra.mxu0 %v251
    %473 = vmatpush.msra.mxu0 %v247
    %474 = vmatpush.msra.mxu0 %v243
    %475 = vmatpush.msra.mxu0 %v239
    %476 = vmatmul.f32.gmra.mxu0 %v455
    %v477 = vpop.f32.mrf.mxu0
    %v478 = vadd.f32 0.0, %v477
    %479 = vdwg.mxu0
    %480 = vmatpush.msra.mxu0 %v300
    %481 = vmatpush.msra.mxu0 %v296
    %482 = vmatpush.msra.mxu0 %v292
    %483 = vmatpush.msra.mxu0 %v288
    %484 = vmatpush.msra.mxu0 %v284
    %485 = vmatpush.msra.mxu0 %v280
    %486 = vmatpush.msra.mxu0 %v276
    %487 = vmatpush.msra.mxu0 %v272
    %488 = vmatpush.msra.mxu0 %v268
    %489 = vmatpush.msra.mxu0 %v264
    %490 = vmatpush.msra.mxu0 %v260
    %491 = vmatpush.msra.mxu0 %v256
    %492 = vmatpush.msra.mxu0 %v252
    %493 = vmatpush.msra.mxu0 %v248
    %494 = vmatpush.msra.mxu0 %v244
    %495 = vmatpush.msra.mxu0 %v240
    %496 = vmatmul.f32.gmra.mxu0 %v455
    %v497 = vpop.f32.mrf.mxu0
    %v498 = vadd.f32 0.0, %v497
    %499 = vdwg.mxu0
    %500 = vmatpush.msra.mxu0 %v301
    %501 = vmatpush.msra.mxu0 %v297
    %502 = vmatpush.msra.mxu0 %v293
    %503 = vmatpush.msra.mxu0 %v289
    %504 = vmatpush.msra.mxu0 %v285
    %505 = vmatpush.msra.mxu0 %v281
    %506 = vmatpush.msra.mxu0 %v277
    %507 = vmatpush.msra.mxu0 %v273
    %508 = vmatpush.msra.mxu0 %v269
    %509 = vmatpush.msra.mxu0 %v265
    %510 = vmatpush.msra.mxu0 %v261
    %511 = vmatpush.msra.mxu0 %v257
    %512 = vmatpush.msra.mxu0 %v253
    %513 = vmatpush.msra.mxu0 %v249
    %514 = vmatpush.msra.mxu0 %v245
    %515 = vmatpush.msra.mxu0 %v241
    %516 = vmatmul.f32.gmra.mxu0 %v455
    %v517 = vpop.f32.mrf.mxu0
    %v518 = vadd.f32 0.0, %v517
    %519 = vdwg.mxu0
    %520 = vmatpush.msra.mxu0 %v302
    %521 = vmatpush.msra.mxu0 %v298
    %522 = vmatpush.msra.mxu0 %v294
    %523 = vmatpush.msra.mxu0 %v290
    %524 = vmatpush.msra.mxu0 %v286
    %525 = vmatpush.msra.mxu0 %v282
    %526 = vmatpush.msra.mxu0 %v278
    %527 = vmatpush.msra.mxu0 %v274
    %528 = vmatpush.msra.mxu0 %v270
    %529 = vmatpush.msra.mxu0 %v266
    %530 = vmatpush.msra.mxu0 %v262
    %531 = vmatpush.msra.mxu0 %v258
    %532 = vmatpush.msra.mxu0 %v254
    %533 = vmatpush.msra.mxu0 %v250
    %534 = vmatpush.msra.mxu0 %v246
    %535 = vmatpush.msra.mxu0 %v242
    %536 = vmatmul.f32.gmra.mxu0 %v455
    %v537 = vpop.f32.mrf.mxu0
    %v538 = vadd.f32 0.0, %v537
    %539 = vdwg.mxu0
    %v544 = vrot.slane %v478, 6
    %v545 = vrot.slane %v498, 6
    %v546 = vrot.slane %v518, 6
    %v547 = vrot.slane %v538, 6
    %v552 = vadd.f32 %v456, %v544
    %v553 = vadd.f32 %v457, %v545
    %v554 = vadd.f32 %v458, %v546
    %v555 = vadd.f32 %v459, %v547
    %v556 = vxor.u32 %v552, 2147483648
    %v557 = vmul.f32 %v556, 1.442695
    %v558 = vpow.pop %v557
    %v559 = vadd.f32 %v558, 1.0
    %v560 = vrcp.pop %v559
    %v561 = vmul.f32 %v559, %v560
    %v562 = vsub.f32 1.0, %v561
    %v563 = vmul.f32 %v560, %v562
    %v564 = vadd.f32 %v560, %v563
    %vm565 = vweird.f32 %v559
    %vm566 = vweird.f32 %v560
    %vm567 = vmor %vm565, %vm566
    %v568 = vsel %vm567, %v560, %v564
    %v569 = vand.u32 2147483647, %v559
    %vm570 = vcmp.eq.f32.partialorder %v569, 8.507059e+37
    %v571 = vand.u32 %v559, 2147483648
    %v572 = vor.u32 1.1754944e-38, %v571
    %v573 = vsel %vm570, %v572, %v568
    %v574 = vmul.f32 1.0, %v573
    %v575 = vxor.u32 %v553, 2147483648
    %v576 = vmul.f32 %v575, 1.442695
    %v577 = vpow.pop %v576
    %v578 = vadd.f32 %v577, 1.0
    %v579 = vrcp.pop %v578
    %v580 = vmul.f32 %v578, %v579
    %v581 = vsub.f32 1.0, %v580
    %v582 = vmul.f32 %v579, %v581
    %v583 = vadd.f32 %v579, %v582
    %vm584 = vweird.f32 %v578
    %vm585 = vweird.f32 %v579
    %vm586 = vmor %vm584, %vm585
    %v587 = vsel %vm586, %v579, %v583
    %v588 = vand.u32 2147483647, %v578
    %vm589 = vcmp.eq.f32.partialorder %v588, 8.507059e+37
    %v590 = vand.u32 %v578, 2147483648
    %v591 = vor.u32 1.1754944e-38, %v590
    %v592 = vsel %vm589, %v591, %v587
    %v593 = vmul.f32 1.0, %v592
    %v594 = vtanh.pop %v554
    %v595 = vxor.u32 %v555, 2147483648
    %v596 = vmul.f32 %v595, 1.442695
    %v597 = vpow.pop %v596
    %v598 = vadd.f32 %v597, 1.0
    %v599 = vrcp.pop %v598
    %v600 = vmul.f32 %v598, %v599
    %v601 = vsub.f32 1.0, %v600
    %v602 = vmul.f32 %v599, %v601
    %v603 = vadd.f32 %v599, %v602
    %vm604 = vweird.f32 %v598
    %vm605 = vweird.f32 %v599
    %vm606 = vmor %vm604, %vm605
    %v607 = vsel %vm606, %v599, %v603
    %v608 = vand.u32 2147483647, %v598
    %vm609 = vcmp.eq.f32.partialorder %v608, 8.507059e+37
    %v610 = vand.u32 %v598, 2147483648
    %v611 = vor.u32 1.1754944e-38, %v610
    %v612 = vsel %vm609, %v611, %v607
    %v613 = vmul.f32 1.0, %v612
    %v615 = vrot.slane %v453, 6
    %v617 = vmul.f32 %v593, %v615
    %v618 = vmul.f32 %v574, %v594
    %v619 = vadd.f32 %v617, %v618
    %v620 = vtanh.pop %v619
    %v621 = vmul.f32 %v613, %v620
    %v622 = vld [vmem:[#allocation4] sm:$0x30]
    %v623 = vld [vmem:[#allocation4 + $0x8] sm:$0x30]
    %v624 = vld [vmem:[#allocation4 + $0x10] sm:$0x30]
    %v625 = vld [vmem:[#allocation4 + $0x18] sm:$0x30]
    %v627 = vrot.slane %v621, 2
    %629 = vmatpush.msra.mxu0 %v299
    %630 = vmatpush.msra.mxu0 %v295
    %631 = vmatpush.msra.mxu0 %v291
    %632 = vmatpush.msra.mxu0 %v287
    %633 = vmatpush.msra.mxu0 %v283
    %634 = vmatpush.msra.mxu0 %v279
    %635 = vmatpush.msra.mxu0 %v275
    %636 = vmatpush.msra.mxu0 %v271
    %637 = vmatpush.msra.mxu0 %v267
    %638 = vmatpush.msra.mxu0 %v263
    %639 = vmatpush.msra.mxu0 %v259
    %640 = vmatpush.msra.mxu0 %v255
    %641 = vmatpush.msra.mxu0 %v251
    %642 = vmatpush.msra.mxu0 %v247
    %643 = vmatpush.msra.mxu0 %v243
    %644 = vmatpush.msra.mxu0 %v239
    %645 = vmatmul.f32.gmra.mxu0 %v627
    %v646 = vpop.f32.mrf.mxu0
    %v647 = vadd.f32 0.0, %v646
    %648 = vdwg.mxu0
    %649 = vmatpush.msra.mxu0 %v300
    %650 = vmatpush.msra.mxu0 %v296
    %651 = vmatpush.msra.mxu0 %v292
    %652 = vmatpush.msra.mxu0 %v288
    %653 = vmatpush.msra.mxu0 %v284
    %654 = vmatpush.msra.mxu0 %v280
    %655 = vmatpush.msra.mxu0 %v276
    %656 = vmatpush.msra.mxu0 %v272
    %657 = vmatpush.msra.mxu0 %v268
    %658 = vmatpush.msra.mxu0 %v264
    %659 = vmatpush.msra.mxu0 %v260
    %660 = vmatpush.msra.mxu0 %v256
    %661 = vmatpush.msra.mxu0 %v252
    %662 = vmatpush.msra.mxu0 %v248
    %663 = vmatpush.msra.mxu0 %v244
    %664 = vmatpush.msra.mxu0 %v240
    %665 = vmatmul.f32.gmra.mxu0 %v627
    %v666 = vpop.f32.mrf.mxu0
    %v667 = vadd.f32 0.0, %v666
    %668 = vdwg.mxu0
    %669 = vmatpush.msra.mxu0 %v301
    %670 = vmatpush.msra.mxu0 %v297
    %671 = vmatpush.msra.mxu0 %v293
    %672 = vmatpush.msra.mxu0 %v289
    %673 = vmatpush.msra.mxu0 %v285
    %674 = vmatpush.msra.mxu0 %v281
    %675 = vmatpush.msra.mxu0 %v277
    %676 = vmatpush.msra.mxu0 %v273
    %677 = vmatpush.msra.mxu0 %v269
    %678 = vmatpush.msra.mxu0 %v265
    %679 = vmatpush.msra.mxu0 %v261
    %680 = vmatpush.msra.mxu0 %v257
    %681 = vmatpush.msra.mxu0 %v253
    %682 = vmatpush.msra.mxu0 %v249
    %683 = vmatpush.msra.mxu0 %v245
    %684 = vmatpush.msra.mxu0 %v241
    %685 = vmatmul.f32.gmra.mxu0 %v627
    %v686 = vpop.f32.mrf.mxu0
    %v687 = vadd.f32 0.0, %v686
    %688 = vdwg.mxu0
    %689 = vmatpush.msra.mxu0 %v302
    %690 = vmatpush.msra.mxu0 %v298
    %691 = vmatpush.msra.mxu0 %v294
    %692 = vmatpush.msra.mxu0 %v290
    %693 = vmatpush.msra.mxu0 %v286
    %694 = vmatpush.msra.mxu0 %v282
    %695 = vmatpush.msra.mxu0 %v278
    %696 = vmatpush.msra.mxu0 %v274
    %697 = vmatpush.msra.mxu0 %v270
    %698 = vmatpush.msra.mxu0 %v266
    %699 = vmatpush.msra.mxu0 %v262
    %700 = vmatpush.msra.mxu0 %v258
    %701 = vmatpush.msra.mxu0 %v254
    %702 = vmatpush.msra.mxu0 %v250
    %703 = vmatpush.msra.mxu0 %v246
    %704 = vmatpush.msra.mxu0 %v242
    %705 = vmatmul.f32.gmra.mxu0 %v627
    %v706 = vpop.f32.mrf.mxu0
    %v707 = vadd.f32 0.0, %v706
    %708 = vdwg.mxu0
    %v713 = vrot.slane %v647, 4
    %v714 = vrot.slane %v667, 4
    %v715 = vrot.slane %v687, 4
    %v716 = vrot.slane %v707, 4
    %v721 = vadd.f32 %v622, %v713
    %v722 = vadd.f32 %v623, %v714
    %v723 = vadd.f32 %v624, %v715
    %v724 = vadd.f32 %v625, %v716
    %v725 = vxor.u32 %v721, 2147483648
    %v726 = vmul.f32 %v725, 1.442695
    %v727 = vpow.pop %v726
    %v728 = vadd.f32 %v727, 1.0
    %v729 = vrcp.pop %v728
    %v730 = vmul.f32 %v728, %v729
    %v731 = vsub.f32 1.0, %v730
    %v732 = vmul.f32 %v729, %v731
    %v733 = vadd.f32 %v729, %v732
    %vm734 = vweird.f32 %v728
    %vm735 = vweird.f32 %v729
    %vm736 = vmor %vm734, %vm735
    %v737 = vsel %vm736, %v729, %v733
    %v738 = vand.u32 2147483647, %v728
    %vm739 = vcmp.eq.f32.partialorder %v738, 8.507059e+37
    %v740 = vand.u32 %v728, 2147483648
    %v741 = vor.u32 1.1754944e-38, %v740
    %v742 = vsel %vm739, %v741, %v737
    %v743 = vmul.f32 1.0, %v742
    %v744 = vxor.u32 %v722, 2147483648
    %v745 = vmul.f32 %v744, 1.442695
    %v746 = vpow.pop %v745
    %v747 = vadd.f32 %v746, 1.0
    %v748 = vrcp.pop %v747
    %v749 = vmul.f32 %v747, %v748
    %v750 = vsub.f32 1.0, %v749
    %v751 = vmul.f32 %v748, %v750
    %v752 = vadd.f32 %v748, %v751
    %vm753 = vweird.f32 %v747
    %vm754 = vweird.f32 %v748
    %vm755 = vmor %vm753, %vm754
    %v756 = vsel %vm755, %v748, %v752
    %v757 = vand.u32 2147483647, %v747
    %vm758 = vcmp.eq.f32.partialorder %v757, 8.507059e+37
    %v759 = vand.u32 %v747, 2147483648
    %v760 = vor.u32 1.1754944e-38, %v759
    %v761 = vsel %vm758, %v760, %v756
    %v762 = vmul.f32 1.0, %v761
    %v763 = vtanh.pop %v723
    %v764 = vxor.u32 %v724, 2147483648
    %v765 = vmul.f32 %v764, 1.442695
    %v766 = vpow.pop %v765
    %v767 = vadd.f32 %v766, 1.0
    %v768 = vrcp.pop %v767
    %v769 = vmul.f32 %v767, %v768
    %v770 = vsub.f32 1.0, %v769
    %v771 = vmul.f32 %v768, %v770
    %v772 = vadd.f32 %v768, %v771
    %vm773 = vweird.f32 %v767
    %vm774 = vweird.f32 %v768
    %vm775 = vmor %vm773, %vm774
    %v776 = vsel %vm775, %v768, %v772
    %v777 = vand.u32 2147483647, %v767
    %vm778 = vcmp.eq.f32.partialorder %v777, 8.507059e+37
    %v779 = vand.u32 %v767, 2147483648
    %v780 = vor.u32 1.1754944e-38, %v779
    %v781 = vsel %vm778, %v780, %v776
    %v782 = vmul.f32 1.0, %v781
    %v784 = vrot.slane %v619, 6
    %v786 = vmul.f32 %v762, %v784
    %v787 = vmul.f32 %v743, %v763
    %v788 = vadd.f32 %v786, %v787
    %v789 = vtanh.pop %v788
    %v790 = vmul.f32 %v782, %v789
    %v791 = vld [vmem:[#allocation4] sm:$0xc0]
    %v792 = vld [vmem:[#allocation4 + $0x8] sm:$0xc0]
    %v793 = vld [vmem:[#allocation4 + $0x10] sm:$0xc0]
    %v794 = vld [vmem:[#allocation4 + $0x18] sm:$0xc0]
    %v796 = vrot.slane %v790, 4
    %798 = vmatpush.msra.mxu0 %v299
    %799 = vmatpush.msra.mxu0 %v295
    %800 = vmatpush.msra.mxu0 %v291
    %801 = vmatpush.msra.mxu0 %v287
    %802 = vmatpush.msra.mxu0 %v283
    %803 = vmatpush.msra.mxu0 %v279
    %804 = vmatpush.msra.mxu0 %v275
    %805 = vmatpush.msra.mxu0 %v271
    %806 = vmatpush.msra.mxu0 %v267
    %807 = vmatpush.msra.mxu0 %v263
    %808 = vmatpush.msra.mxu0 %v259
    %809 = vmatpush.msra.mxu0 %v255
    %810 = vmatpush.msra.mxu0 %v251
    %811 = vmatpush.msra.mxu0 %v247
    %812 = vmatpush.msra.mxu0 %v243
    %813 = vmatpush.msra.mxu0 %v239
    %814 = vmatmul.f32.gmra.mxu0 %v796
    %v815 = vpop.f32.mrf.mxu0
    %v816 = vadd.f32 0.0, %v815
    %817 = vdwg.mxu0
    %818 = vmatpush.msra.mxu0 %v300
    %819 = vmatpush.msra.mxu0 %v296
    %820 = vmatpush.msra.mxu0 %v292
    %821 = vmatpush.msra.mxu0 %v288
    %822 = vmatpush.msra.mxu0 %v284
    %823 = vmatpush.msra.mxu0 %v280
    %824 = vmatpush.msra.mxu0 %v276
    %825 = vmatpush.msra.mxu0 %v272
    %826 = vmatpush.msra.mxu0 %v268
    %827 = vmatpush.msra.mxu0 %v264
    %828 = vmatpush.msra.mxu0 %v260
    %829 = vmatpush.msra.mxu0 %v256
    %830 = vmatpush.msra.mxu0 %v252
    %831 = vmatpush.msra.mxu0 %v248
    %832 = vmatpush.msra.mxu0 %v244
    %833 = vmatpush.msra.mxu0 %v240
    %834 = vmatmul.f32.gmra.mxu0 %v796
    %v835 = vpop.f32.mrf.mxu0
    %v836 = vadd.f32 0.0, %v835
    %837 = vdwg.mxu0
    %838 = vmatpush.msra.mxu0 %v301
    %839 = vmatpush.msra.mxu0 %v297
    %840 = vmatpush.msra.mxu0 %v293
    %841 = vmatpush.msra.mxu0 %v289
    %842 = vmatpush.msra.mxu0 %v285
    %843 = vmatpush.msra.mxu0 %v281
    %844 = vmatpush.msra.mxu0 %v277
    %845 = vmatpush.msra.mxu0 %v273
    %846 = vmatpush.msra.mxu0 %v269
    %847 = vmatpush.msra.mxu0 %v265
    %848 = vmatpush.msra.mxu0 %v261
    %849 = vmatpush.msra.mxu0 %v257
    %850 = vmatpush.msra.mxu0 %v253
    %851 = vmatpush.msra.mxu0 %v249
    %852 = vmatpush.msra.mxu0 %v245
    %853 = vmatpush.msra.mxu0 %v241
    %854 = vmatmul.f32.gmra.mxu0 %v796
    %v855 = vpop.f32.mrf.mxu0
    %v856 = vadd.f32 0.0, %v855
    %857 = vdwg.mxu0
    %858 = vmatpush.msra.mxu0 %v302
    %859 = vmatpush.msra.mxu0 %v298
    %860 = vmatpush.msra.mxu0 %v294
    %861 = vmatpush.msra.mxu0 %v290
    %862 = vmatpush.msra.mxu0 %v286
    %863 = vmatpush.msra.mxu0 %v282
    %864 = vmatpush.msra.mxu0 %v278
    %865 = vmatpush.msra.mxu0 %v274
    %866 = vmatpush.msra.mxu0 %v270
    %867 = vmatpush.msra.mxu0 %v266
    %868 = vmatpush.msra.mxu0 %v262
    %869 = vmatpush.msra.mxu0 %v258
    %870 = vmatpush.msra.mxu0 %v254
    %871 = vmatpush.msra.mxu0 %v250
    %872 = vmatpush.msra.mxu0 %v246
    %873 = vmatpush.msra.mxu0 %v242
    %874 = vmatmul.f32.gmra.mxu0 %v796
    %v875 = vpop.f32.mrf.mxu0
    %v876 = vadd.f32 0.0, %v875
    %877 = vdwg.mxu0
    %v882 = vrot.slane %v816, 2
    %v883 = vrot.slane %v836, 2
    %v884 = vrot.slane %v856, 2
    %v885 = vrot.slane %v876, 2
    %v890 = vadd.f32 %v791, %v882
    %v891 = vadd.f32 %v792, %v883
    %v892 = vadd.f32 %v793, %v884
    %v893 = vadd.f32 %v794, %v885
    %v894 = vxor.u32 %v890, 2147483648
    %v895 = vmul.f32 %v894, 1.442695
    %v896 = vpow.pop %v895
    %v897 = vadd.f32 %v896, 1.0
    %v898 = vrcp.pop %v897
    %v899 = vmul.f32 %v897, %v898
    %v900 = vsub.f32 1.0, %v899
    %v901 = vmul.f32 %v898, %v900
    %v902 = vadd.f32 %v898, %v901
    %vm903 = vweird.f32 %v897
    %vm904 = vweird.f32 %v898
    %vm905 = vmor %vm903, %vm904
    %v906 = vsel %vm905, %v898, %v902
    %v907 = vand.u32 2147483647, %v897
    %vm908 = vcmp.eq.f32.partialorder %v907, 8.507059e+37
    %v909 = vand.u32 %v897, 2147483648
    %v910 = vor.u32 1.1754944e-38, %v909
    %v911 = vsel %vm908, %v910, %v906
    %v912 = vmul.f32 1.0, %v911
    %v913 = vxor.u32 %v891, 2147483648
    %v914 = vmul.f32 %v913, 1.442695
    %v915 = vpow.pop %v914
    %v916 = vadd.f32 %v915, 1.0
    %v917 = vrcp.pop %v916
    %v918 = vmul.f32 %v916, %v917
    %v919 = vsub.f32 1.0, %v918
    %v920 = vmul.f32 %v917, %v919
    %v921 = vadd.f32 %v917, %v920
    %vm922 = vweird.f32 %v916
    %vm923 = vweird.f32 %v917
    %vm924 = vmor %vm922, %vm923
    %v925 = vsel %vm924, %v917, %v921
    %v926 = vand.u32 2147483647, %v916
    %vm927 = vcmp.eq.f32.partialorder %v926, 8.507059e+37
    %v928 = vand.u32 %v916, 2147483648
    %v929 = vor.u32 1.1754944e-38, %v928
    %v930 = vsel %vm927, %v929, %v925
    %v931 = vmul.f32 1.0, %v930
    %v932 = vtanh.pop %v892
    %v933 = vxor.u32 %v893, 2147483648
    %v934 = vmul.f32 %v933, 1.442695
    %v935 = vpow.pop %v934
    %v936 = vadd.f32 %v935, 1.0
    %v937 = vrcp.pop %v936
    %v938 = vmul.f32 %v936, %v937
    %v939 = vsub.f32 1.0, %v938
    %v940 = vmul.f32 %v937, %v939
    %v941 = vadd.f32 %v937, %v940
    %vm942 = vweird.f32 %v936
    %vm943 = vweird.f32 %v937
    %vm944 = vmor %vm942, %vm943
    %v945 = vsel %vm944, %v937, %v941
    %v946 = vand.u32 2147483647, %v936
    %vm947 = vcmp.eq.f32.partialorder %v946, 8.507059e+37
    %v948 = vand.u32 %v936, 2147483648
    %v949 = vor.u32 1.1754944e-38, %v948
    %v950 = vsel %vm947, %v949, %v945
    %v951 = vmul.f32 1.0, %v950
    %v953 = vrot.slane %v788, 6
    %v955 = vmul.f32 %v931, %v953
    %v956 = vmul.f32 %v912, %v932
    %v957 = vadd.f32 %v955, %v956
    %v958 = vtanh.pop %v957
    %v959 = vmul.f32 %v951, %v958
    %v960 = vld [vmem:[#allocation4 + $0x20] sm:$0x3]
    %v961 = vld [vmem:[#allocation4 + $0x28] sm:$0x3]
    %v962 = vld [vmem:[#allocation4 + $0x30] sm:$0x3]
    %v963 = vld [vmem:[#allocation4 + $0x38] sm:$0x3]
    %v965 = vrot.slane %v959, 6
    %967 = vmatpush.msra.mxu0 %v299
    %968 = vmatpush.msra.mxu0 %v295
    %969 = vmatpush.msra.mxu0 %v291
    %970 = vmatpush.msra.mxu0 %v287
    %971 = vmatpush.msra.mxu0 %v283
    %972 = vmatpush.msra.mxu0 %v279
    %973 = vmatpush.msra.mxu0 %v275
    %974 = vmatpush.msra.mxu0 %v271
    %975 = vmatpush.msra.mxu0 %v267
    %976 = vmatpush.msra.mxu0 %v263
    %977 = vmatpush.msra.mxu0 %v259
    %978 = vmatpush.msra.mxu0 %v255
    %979 = vmatpush.msra.mxu0 %v251
    %980 = vmatpush.msra.mxu0 %v247
    %981 = vmatpush.msra.mxu0 %v243
    %982 = vmatpush.msra.mxu0 %v239
    %983 = vmatmul.f32.gmra.mxu0 %v965
    %v984 = vpop.f32.mrf.mxu0
    %v985 = vadd.f32 0.0, %v984
    %986 = vdwg.mxu0
    %987 = vmatpush.msra.mxu0 %v300
    %988 = vmatpush.msra.mxu0 %v296
    %989 = vmatpush.msra.mxu0 %v292
    %990 = vmatpush.msra.mxu0 %v288
    %991 = vmatpush.msra.mxu0 %v284
    %992 = vmatpush.msra.mxu0 %v280
    %993 = vmatpush.msra.mxu0 %v276
    %994 = vmatpush.msra.mxu0 %v272
    %995 = vmatpush.msra.mxu0 %v268
    %996 = vmatpush.msra.mxu0 %v264
    %997 = vmatpush.msra.mxu0 %v260
    %998 = vmatpush.msra.mxu0 %v256
    %999 = vmatpush.msra.mxu0 %v252
    %1000 = vmatpush.msra.mxu0 %v248
    %1001 = vmatpush.msra.mxu0 %v244
    %1002 = vmatpush.msra.mxu0 %v240
    %1003 = vmatmul.f32.gmra.mxu0 %v965
    %v1004 = vpop.f32.mrf.mxu0
    %v1005 = vadd.f32 0.0, %v1004
    %1006 = vdwg.mxu0
    %1007 = vmatpush.msra.mxu0 %v301
    %1008 = vmatpush.msra.mxu0 %v297
    %1009 = vmatpush.msra.mxu0 %v293
    %1010 = vmatpush.msra.mxu0 %v289
    %1011 = vmatpush.msra.mxu0 %v285
    %1012 = vmatpush.msra.mxu0 %v281
    %1013 = vmatpush.msra.mxu0 %v277
    %1014 = vmatpush.msra.mxu0 %v273
    %1015 = vmatpush.msra.mxu0 %v269
    %1016 = vmatpush.msra.mxu0 %v265
    %1017 = vmatpush.msra.mxu0 %v261
    %1018 = vmatpush.msra.mxu0 %v257
    %1019 = vmatpush.msra.mxu0 %v253
    %1020 = vmatpush.msra.mxu0 %v249
    %1021 = vmatpush.msra.mxu0 %v245
    %1022 = vmatpush.msra.mxu0 %v241
    %1023 = vmatmul.f32.gmra.mxu0 %v965
    %v1024 = vpop.f32.mrf.mxu0
    %v1025 = vadd.f32 0.0, %v1024
    %1026 = vdwg.mxu0
    %1027 = vmatpush.msra.mxu0 %v302
    %1028 = vmatpush.msra.mxu0 %v298
    %1029 = vmatpush.msra.mxu0 %v294
    %1030 = vmatpush.msra.mxu0 %v290
    %1031 = vmatpush.msra.mxu0 %v286
    %1032 = vmatpush.msra.mxu0 %v282
    %1033 = vmatpush.msra.mxu0 %v278
    %1034 = vmatpush.msra.mxu0 %v274
    %1035 = vmatpush.msra.mxu0 %v270
    %1036 = vmatpush.msra.mxu0 %v266
    %1037 = vmatpush.msra.mxu0 %v262
    %1038 = vmatpush.msra.mxu0 %v258
    %1039 = vmatpush.msra.mxu0 %v254
    %1040 = vmatpush.msra.mxu0 %v250
    %1041 = vmatpush.msra.mxu0 %v246
    %1042 = vmatpush.msra.mxu0 %v242
    %1043 = vmatmul.f32.gmra.mxu0 %v965
    %v1044 = vpop.f32.mrf.mxu0
    %v1045 = vadd.f32 0.0, %v1044
    %1046 = vdwg.mxu0
    %v1047 = vadd.f32 %v960, %v985
    %v1048 = vadd.f32 %v961, %v1005
    %v1049 = vadd.f32 %v962, %v1025
    %v1050 = vadd.f32 %v963, %v1045
    %v1051 = vxor.u32 %v1047, 2147483648
    %v1052 = vmul.f32 %v1051, 1.442695
    %v1053 = vpow.pop %v1052
    %v1054 = vadd.f32 %v1053, 1.0
    %v1055 = vrcp.pop %v1054
    %v1056 = vmul.f32 %v1054, %v1055
    %v1057 = vsub.f32 1.0, %v1056
    %v1058 = vmul.f32 %v1055, %v1057
    %v1059 = vadd.f32 %v1055, %v1058
    %vm1060 = vweird.f32 %v1054
    %vm1061 = vweird.f32 %v1055
    %vm1062 = vmor %vm1060, %vm1061
    %v1063 = vsel %vm1062, %v1055, %v1059
    %v1064 = vand.u32 2147483647, %v1054
    %vm1065 = vcmp.eq.f32.partialorder %v1064, 8.507059e+37
    %v1066 = vand.u32 %v1054, 2147483648
    %v1067 = vor.u32 1.1754944e-38, %v1066
    %v1068 = vsel %vm1065, %v1067, %v1063
    %v1069 = vmul.f32 1.0, %v1068
    %v1070 = vxor.u32 %v1048, 2147483648
    %v1071 = vmul.f32 %v1070, 1.442695
    %v1072 = vpow.pop %v1071
    %v1073 = vadd.f32 %v1072, 1.0
    %v1074 = vrcp.pop %v1073
    %v1075 = vmul.f32 %v1073, %v1074
    %v1076 = vsub.f32 1.0, %v1075
    %v1077 = vmul.f32 %v1074, %v1076
    %v1078 = vadd.f32 %v1074, %v1077
    %vm1079 = vweird.f32 %v1073
    %vm1080 = vweird.f32 %v1074
    %vm1081 = vmor %vm1079, %vm1080
    %v1082 = vsel %vm1081, %v1074, %v1078
    %v1083 = vand.u32 2147483647, %v1073
    %vm1084 = vcmp.eq.f32.partialorder %v1083, 8.507059e+37
    %v1085 = vand.u32 %v1073, 2147483648
    %v1086 = vor.u32 1.1754944e-38, %v1085
    %v1087 = vsel %vm1084, %v1086, %v1082
    %v1088 = vmul.f32 1.0, %v1087
    %v1089 = vtanh.pop %v1049
    %v1090 = vxor.u32 %v1050, 2147483648
    %v1091 = vmul.f32 %v1090, 1.442695
    %v1092 = vpow.pop %v1091
    %v1093 = vadd.f32 %v1092, 1.0
    %v1094 = vrcp.pop %v1093
    %v1095 = vmul.f32 %v1093, %v1094
    %v1096 = vsub.f32 1.0, %v1095
    %v1097 = vmul.f32 %v1094, %v1096
    %v1098 = vadd.f32 %v1094, %v1097
    %vm1099 = vweird.f32 %v1093
    %vm1100 = vweird.f32 %v1094
    %vm1101 = vmor %vm1099, %vm1100
    %v1102 = vsel %vm1101, %v1094, %v1098
    %v1103 = vand.u32 2147483647, %v1093
    %vm1104 = vcmp.eq.f32.partialorder %v1103, 8.507059e+37
    %v1105 = vand.u32 %v1093, 2147483648
    %v1106 = vor.u32 1.1754944e-38, %v1105
    %v1107 = vsel %vm1104, %v1106, %v1102
    %v1108 = vmul.f32 1.0, %v1107
    %v1110 = vrot.slane %v957, 6
    %v1112 = vmul.f32 %v1088, %v1110
    %v1113 = vmul.f32 %v1069, %v1089
    %v1114 = vadd.f32 %v1112, %v1113
    %v1115 = vtanh.pop %v1114
    %v1116 = vmul.f32 %v1108, %v1115
    %v1117 = vld [vmem:[#allocation4 + $0x20] sm:$0xc]
    %v1118 = vld [vmem:[#allocation4 + $0x28] sm:$0xc]
    %v1119 = vld [vmem:[#allocation4 + $0x30] sm:$0xc]
    %v1120 = vld [vmem:[#allocation4 + $0x38] sm:$0xc]
    %1121 = vmatpush.msra.mxu0 %v299
    %1122 = vmatpush.msra.mxu0 %v295
    %1123 = vmatpush.msra.mxu0 %v291
    %1124 = vmatpush.msra.mxu0 %v287
    %1125 = vmatpush.msra.mxu0 %v283
    %1126 = vmatpush.msra.mxu0 %v279
    %1127 = vmatpush.msra.mxu0 %v275
    %1128 = vmatpush.msra.mxu0 %v271
    %1129 = vmatpush.msra.mxu0 %v267
    %1130 = vmatpush.msra.mxu0 %v263
    %1131 = vmatpush.msra.mxu0 %v259
    %1132 = vmatpush.msra.mxu0 %v255
    %1133 = vmatpush.msra.mxu0 %v251
    %1134 = vmatpush.msra.mxu0 %v247
    %1135 = vmatpush.msra.mxu0 %v243
    %1136 = vmatpush.msra.mxu0 %v239
    %1137 = vmatmul.f32.gmra.mxu0 %v1116
    %v1138 = vpop.f32.mrf.mxu0
    %v1139 = vadd.f32 0.0, %v1138
    %1140 = vdwg.mxu0
    %1141 = vmatpush.msra.mxu0 %v300
    %1142 = vmatpush.msra.mxu0 %v296
    %1143 = vmatpush.msra.mxu0 %v292
    %1144 = vmatpush.msra.mxu0 %v288
    %1145 = vmatpush.msra.mxu0 %v284
    %1146 = vmatpush.msra.mxu0 %v280
    %1147 = vmatpush.msra.mxu0 %v276
    %1148 = vmatpush.msra.mxu0 %v272
    %1149 = vmatpush.msra.mxu0 %v268
    %1150 = vmatpush.msra.mxu0 %v264
    %1151 = vmatpush.msra.mxu0 %v260
    %1152 = vmatpush.msra.mxu0 %v256
    %1153 = vmatpush.msra.mxu0 %v252
    %1154 = vmatpush.msra.mxu0 %v248
    %1155 = vmatpush.msra.mxu0 %v244
    %1156 = vmatpush.msra.mxu0 %v240
    %1157 = vmatmul.f32.gmra.mxu0 %v1116
    %v1158 = vpop.f32.mrf.mxu0
    %v1159 = vadd.f32 0.0, %v1158
    %1160 = vdwg.mxu0
    %1161 = vmatpush.msra.mxu0 %v301
    %1162 = vmatpush.msra.mxu0 %v297
    %1163 = vmatpush.msra.mxu0 %v293
    %1164 = vmatpush.msra.mxu0 %v289
    %1165 = vmatpush.msra.mxu0 %v285
    %1166 = vmatpush.msra.mxu0 %v281
    %1167 = vmatpush.msra.mxu0 %v277
    %1168 = vmatpush.msra.mxu0 %v273
    %1169 = vmatpush.msra.mxu0 %v269
    %1170 = vmatpush.msra.mxu0 %v265
    %1171 = vmatpush.msra.mxu0 %v261
    %1172 = vmatpush.msra.mxu0 %v257
    %1173 = vmatpush.msra.mxu0 %v253
    %1174 = vmatpush.msra.mxu0 %v249
    %1175 = vmatpush.msra.mxu0 %v245
    %1176 = vmatpush.msra.mxu0 %v241
    %1177 = vmatmul.f32.gmra.mxu0 %v1116
    %v1178 = vpop.f32.mrf.mxu0
    %v1179 = vadd.f32 0.0, %v1178
    %1180 = vdwg.mxu0
    %1181 = vmatpush.msra.mxu0 %v302
    %1182 = vmatpush.msra.mxu0 %v298
    %1183 = vmatpush.msra.mxu0 %v294
    %1184 = vmatpush.msra.mxu0 %v290
    %1185 = vmatpush.msra.mxu0 %v286
    %1186 = vmatpush.msra.mxu0 %v282
    %1187 = vmatpush.msra.mxu0 %v278
    %1188 = vmatpush.msra.mxu0 %v274
    %1189 = vmatpush.msra.mxu0 %v270
    %1190 = vmatpush.msra.mxu0 %v266
    %1191 = vmatpush.msra.mxu0 %v262
    %1192 = vmatpush.msra.mxu0 %v258
    %1193 = vmatpush.msra.mxu0 %v254
    %1194 = vmatpush.msra.mxu0 %v250
    %1195 = vmatpush.msra.mxu0 %v246
    %1196 = vmatpush.msra.mxu0 %v242
    %1197 = vmatmul.f32.gmra.mxu0 %v1116
    %v1198 = vpop.f32.mrf.mxu0
    %v1199 = vadd.f32 0.0, %v1198
    %1200 = vdwg.mxu0
    %v1205 = vrot.slane %v1139, 6
    %v1206 = vrot.slane %v1159, 6
    %v1207 = vrot.slane %v1179, 6
    %v1208 = vrot.slane %v1199, 6
    %v1213 = vadd.f32 %v1117, %v1205
    %v1214 = vadd.f32 %v1118, %v1206
    %v1215 = vadd.f32 %v1119, %v1207
    %v1216 = vadd.f32 %v1120, %v1208
    %v1217 = vxor.u32 %v1213, 2147483648
    %v1218 = vmul.f32 %v1217, 1.442695
    %v1219 = vpow.pop %v1218
    %v1220 = vadd.f32 %v1219, 1.0
    %v1221 = vrcp.pop %v1220
    %v1222 = vmul.f32 %v1220, %v1221
    %v1223 = vsub.f32 1.0, %v1222
    %v1224 = vmul.f32 %v1221, %v1223
    %v1225 = vadd.f32 %v1221, %v1224
    %vm1226 = vweird.f32 %v1220
    %vm1227 = vweird.f32 %v1221
    %vm1228 = vmor %vm1226, %vm1227
    %v1229 = vsel %vm1228, %v1221, %v1225
    %v1230 = vand.u32 2147483647, %v1220
    %vm1231 = vcmp.eq.f32.partialorder %v1230, 8.507059e+37
    %v1232 = vand.u32 %v1220, 2147483648
    %v1233 = vor.u32 1.1754944e-38, %v1232
    %v1234 = vsel %vm1231, %v1233, %v1229
    %v1235 = vmul.f32 1.0, %v1234
    %v1236 = vxor.u32 %v1214, 2147483648
    %v1237 = vmul.f32 %v1236, 1.442695
    %v1238 = vpow.pop %v1237
    %v1239 = vadd.f32 %v1238, 1.0
    %v1240 = vrcp.pop %v1239
    %v1241 = vmul.f32 %v1239, %v1240
    %v1242 = vsub.f32 1.0, %v1241
    %v1243 = vmul.f32 %v1240, %v1242
    %v1244 = vadd.f32 %v1240, %v1243
    %vm1245 = vweird.f32 %v1239
    %vm1246 = vweird.f32 %v1240
    %vm1247 = vmor %vm1245, %vm1246
    %v1248 = vsel %vm1247, %v1240, %v1244
    %v1249 = vand.u32 2147483647, %v1239
    %vm1250 = vcmp.eq.f32.partialorder %v1249, 8.507059e+37
    %v1251 = vand.u32 %v1239, 2147483648
    %v1252 = vor.u32 1.1754944e-38, %v1251
    %v1253 = vsel %vm1250, %v1252, %v1248
    %v1254 = vmul.f32 1.0, %v1253
    %v1255 = vtanh.pop %v1215
    %v1256 = vxor.u32 %v1216, 2147483648
    %v1257 = vmul.f32 %v1256, 1.442695
    %v1258 = vpow.pop %v1257
    %v1259 = vadd.f32 %v1258, 1.0
    %v1260 = vrcp.pop %v1259
    %v1261 = vmul.f32 %v1259, %v1260
    %v1262 = vsub.f32 1.0, %v1261
    %v1263 = vmul.f32 %v1260, %v1262
    %v1264 = vadd.f32 %v1260, %v1263
    %vm1265 = vweird.f32 %v1259
    %vm1266 = vweird.f32 %v1260
    %vm1267 = vmor %vm1265, %vm1266
    %v1268 = vsel %vm1267, %v1260, %v1264
    %v1269 = vand.u32 2147483647, %v1259
    %vm1270 = vcmp.eq.f32.partialorder %v1269, 8.507059e+37
    %v1271 = vand.u32 %v1259, 2147483648
    %v1272 = vor.u32 1.1754944e-38, %v1271
    %v1273 = vsel %vm1270, %v1272, %v1268
    %v1274 = vmul.f32 1.0, %v1273
    %v1276 = vrot.slane %v1114, 6
    %v1278 = vmul.f32 %v1254, %v1276
    %v1279 = vmul.f32 %v1235, %v1255
    %v1280 = vadd.f32 %v1278, %v1279
    %v1281 = vtanh.pop %v1280
    %v1282 = vmul.f32 %v1274, %v1281
    %v1283 = vld [vmem:[#allocation4 + $0x20] sm:$0x30]
    %v1284 = vld [vmem:[#allocation4 + $0x28] sm:$0x30]
    %v1285 = vld [vmem:[#allocation4 + $0x30] sm:$0x30]
    %v1286 = vld [vmem:[#allocation4 + $0x38] sm:$0x30]
    %v1288 = vrot.slane %v1282, 2
    %1290 = vmatpush.msra.mxu0 %v299
    %1291 = vmatpush.msra.mxu0 %v295
    %1292 = vmatpush.msra.mxu0 %v291
    %1293 = vmatpush.msra.mxu0 %v287
    %1294 = vmatpush.msra.mxu0 %v283
    %1295 = vmatpush.msra.mxu0 %v279
    %1296 = vmatpush.msra.mxu0 %v275
    %1297 = vmatpush.msra.mxu0 %v271
    %1298 = vmatpush.msra.mxu0 %v267
    %1299 = vmatpush.msra.mxu0 %v263
    %1300 = vmatpush.msra.mxu0 %v259
    %1301 = vmatpush.msra.mxu0 %v255
    %1302 = vmatpush.msra.mxu0 %v251
    %1303 = vmatpush.msra.mxu0 %v247
    %1304 = vmatpush.msra.mxu0 %v243
    %1305 = vmatpush.msra.mxu0 %v239
    %1306 = vmatmul.f32.gmra.mxu0 %v1288
    %v1307 = vpop.f32.mrf.mxu0
    %v1308 = vadd.f32 0.0, %v1307
    %1309 = vdwg.mxu0
    %1310 = vmatpush.msra.mxu0 %v300
    %1311 = vmatpush.msra.mxu0 %v296
    %1312 = vmatpush.msra.mxu0 %v292
    %1313 = vmatpush.msra.mxu0 %v288
    %1314 = vmatpush.msra.mxu0 %v284
    %1315 = vmatpush.msra.mxu0 %v280
    %1316 = vmatpush.msra.mxu0 %v276
    %1317 = vmatpush.msra.mxu0 %v272
    %1318 = vmatpush.msra.mxu0 %v268
    %1319 = vmatpush.msra.mxu0 %v264
    %1320 = vmatpush.msra.mxu0 %v260
    %1321 = vmatpush.msra.mxu0 %v256
    %1322 = vmatpush.msra.mxu0 %v252
    %1323 = vmatpush.msra.mxu0 %v248
    %1324 = vmatpush.msra.mxu0 %v244
    %1325 = vmatpush.msra.mxu0 %v240
    %1326 = vmatmul.f32.gmra.mxu0 %v1288
    %v1327 = vpop.f32.mrf.mxu0
    %v1328 = vadd.f32 0.0, %v1327
    %1329 = vdwg.mxu0
    %1330 = vmatpush.msra.mxu0 %v301
    %1331 = vmatpush.msra.mxu0 %v297
    %1332 = vmatpush.msra.mxu0 %v293
    %1333 = vmatpush.msra.mxu0 %v289
    %1334 = vmatpush.msra.mxu0 %v285
    %1335 = vmatpush.msra.mxu0 %v281
    %1336 = vmatpush.msra.mxu0 %v277
    %1337 = vmatpush.msra.mxu0 %v273
    %1338 = vmatpush.msra.mxu0 %v269
    %1339 = vmatpush.msra.mxu0 %v265
    %1340 = vmatpush.msra.mxu0 %v261
    %1341 = vmatpush.msra.mxu0 %v257
    %1342 = vmatpush.msra.mxu0 %v253
    %1343 = vmatpush.msra.mxu0 %v249
    %1344 = vmatpush.msra.mxu0 %v245
    %1345 = vmatpush.msra.mxu0 %v241
    %1346 = vmatmul.f32.gmra.mxu0 %v1288
    %v1347 = vpop.f32.mrf.mxu0
    %v1348 = vadd.f32 0.0, %v1347
    %1349 = vdwg.mxu0
    %1350 = vmatpush.msra.mxu0 %v302
    %1351 = vmatpush.msra.mxu0 %v298
    %1352 = vmatpush.msra.mxu0 %v294
    %1353 = vmatpush.msra.mxu0 %v290
    %1354 = vmatpush.msra.mxu0 %v286
    %1355 = vmatpush.msra.mxu0 %v282
    %1356 = vmatpush.msra.mxu0 %v278
    %1357 = vmatpush.msra.mxu0 %v274
    %1358 = vmatpush.msra.mxu0 %v270
    %1359 = vmatpush.msra.mxu0 %v266
    %1360 = vmatpush.msra.mxu0 %v262
    %1361 = vmatpush.msra.mxu0 %v258
    %1362 = vmatpush.msra.mxu0 %v254
    %1363 = vmatpush.msra.mxu0 %v250
    %1364 = vmatpush.msra.mxu0 %v246
    %1365 = vmatpush.msra.mxu0 %v242
    %1366 = vmatmul.f32.gmra.mxu0 %v1288
    %v1367 = vpop.f32.mrf.mxu0
    %v1368 = vadd.f32 0.0, %v1367
    %1369 = vdwg.mxu0
    %v1374 = vrot.slane %v1308, 4
    %v1375 = vrot.slane %v1328, 4
    %v1376 = vrot.slane %v1348, 4
    %v1377 = vrot.slane %v1368, 4
    %v1382 = vadd.f32 %v1283, %v1374
    %v1383 = vadd.f32 %v1284, %v1375
    %v1384 = vadd.f32 %v1285, %v1376
    %v1385 = vadd.f32 %v1286, %v1377
    %v1386 = vxor.u32 %v1382, 2147483648
    %v1387 = vmul.f32 %v1386, 1.442695
    %v1388 = vpow.pop %v1387
    %v1389 = vadd.f32 %v1388, 1.0
    %v1390 = vrcp.pop %v1389
    %v1391 = vmul.f32 %v1389, %v1390
    %v1392 = vsub.f32 1.0, %v1391
    %v1393 = vmul.f32 %v1390, %v1392
    %v1394 = vadd.f32 %v1390, %v1393
    %vm1395 = vweird.f32 %v1389
    %vm1396 = vweird.f32 %v1390
    %vm1397 = vmor %vm1395, %vm1396
    %v1398 = vsel %vm1397, %v1390, %v1394
    %v1399 = vand.u32 2147483647, %v1389
    %vm1400 = vcmp.eq.f32.partialorder %v1399, 8.507059e+37
    %v1401 = vand.u32 %v1389, 2147483648
    %v1402 = vor.u32 1.1754944e-38, %v1401
    %v1403 = vsel %vm1400, %v1402, %v1398
    %v1404 = vmul.f32 1.0, %v1403
    %v1405 = vxor.u32 %v1383, 2147483648
    %v1406 = vmul.f32 %v1405, 1.442695
    %v1407 = vpow.pop %v1406
    %v1408 = vadd.f32 %v1407, 1.0
    %v1409 = vrcp.pop %v1408
    %v1410 = vmul.f32 %v1408, %v1409
    %v1411 = vsub.f32 1.0, %v1410
    %v1412 = vmul.f32 %v1409, %v1411
    %v1413 = vadd.f32 %v1409, %v1412
    %vm1414 = vweird.f32 %v1408
    %vm1415 = vweird.f32 %v1409
    %vm1416 = vmor %vm1414, %vm1415
    %v1417 = vsel %vm1416, %v1409, %v1413
    %v1418 = vand.u32 2147483647, %v1408
    %vm1419 = vcmp.eq.f32.partialorder %v1418, 8.507059e+37
    %v1420 = vand.u32 %v1408, 2147483648
    %v1421 = vor.u32 1.1754944e-38, %v1420
    %v1422 = vsel %vm1419, %v1421, %v1417
    %v1423 = vmul.f32 1.0, %v1422
    %v1424 = vtanh.pop %v1384
    %v1425 = vxor.u32 %v1385, 2147483648
    %v1426 = vmul.f32 %v1425, 1.442695
    %v1427 = vpow.pop %v1426
    %v1428 = vadd.f32 %v1427, 1.0
    %v1429 = vrcp.pop %v1428
    %v1430 = vmul.f32 %v1428, %v1429
    %v1431 = vsub.f32 1.0, %v1430
    %v1432 = vmul.f32 %v1429, %v1431
    %v1433 = vadd.f32 %v1429, %v1432
    %vm1434 = vweird.f32 %v1428
    %vm1435 = vweird.f32 %v1429
    %vm1436 = vmor %vm1434, %vm1435
    %v1437 = vsel %vm1436, %v1429, %v1433
    %v1438 = vand.u32 2147483647, %v1428
    %vm1439 = vcmp.eq.f32.partialorder %v1438, 8.507059e+37
    %v1440 = vand.u32 %v1428, 2147483648
    %v1441 = vor.u32 1.1754944e-38, %v1440
    %v1442 = vsel %vm1439, %v1441, %v1437
    %v1443 = vmul.f32 1.0, %v1442
    %v1445 = vrot.slane %v1280, 6
    %v1447 = vmul.f32 %v1423, %v1445
    %v1448 = vmul.f32 %v1404, %v1424
    %v1449 = vadd.f32 %v1447, %v1448
    %v1450 = vtanh.pop %v1449
    %v1451 = vmul.f32 %v1443, %v1450
    %v1452 = vld [vmem:[#allocation4 + $0x20] sm:$0xc0]
    %v1453 = vld [vmem:[#allocation4 + $0x28] sm:$0xc0]
    %v1454 = vld [vmem:[#allocation4 + $0x30] sm:$0xc0]
    %v1455 = vld [vmem:[#allocation4 + $0x38] sm:$0xc0]
    %v1457 = vrot.slane %v1451, 4
    %1459 = vmatpush.msra.mxu0 %v299
    %1460 = vmatpush.msra.mxu0 %v295
    %1461 = vmatpush.msra.mxu0 %v291
    %1462 = vmatpush.msra.mxu0 %v287
    %1463 = vmatpush.msra.mxu0 %v283
    %1464 = vmatpush.msra.mxu0 %v279
    %1465 = vmatpush.msra.mxu0 %v275
    %1466 = vmatpush.msra.mxu0 %v271
    %1467 = vmatpush.msra.mxu0 %v267
    %1468 = vmatpush.msra.mxu0 %v263
    %1469 = vmatpush.msra.mxu0 %v259
    %1470 = vmatpush.msra.mxu0 %v255
    %1471 = vmatpush.msra.mxu0 %v251
    %1472 = vmatpush.msra.mxu0 %v247
    %1473 = vmatpush.msra.mxu0 %v243
    %1474 = vmatpush.msra.mxu0 %v239
    %1475 = vmatmul.f32.gmra.mxu0 %v1457
    %v1476 = vpop.f32.mrf.mxu0
    %v1477 = vadd.f32 0.0, %v1476
    %1478 = vdwg.mxu0
    %1479 = vmatpush.msra.mxu0 %v300
    %1480 = vmatpush.msra.mxu0 %v296
    %1481 = vmatpush.msra.mxu0 %v292
    %1482 = vmatpush.msra.mxu0 %v288
    %1483 = vmatpush.msra.mxu0 %v284
    %1484 = vmatpush.msra.mxu0 %v280
    %1485 = vmatpush.msra.mxu0 %v276
    %1486 = vmatpush.msra.mxu0 %v272
    %1487 = vmatpush.msra.mxu0 %v268
    %1488 = vmatpush.msra.mxu0 %v264
    %1489 = vmatpush.msra.mxu0 %v260
    %1490 = vmatpush.msra.mxu0 %v256
    %1491 = vmatpush.msra.mxu0 %v252
    %1492 = vmatpush.msra.mxu0 %v248
    %1493 = vmatpush.msra.mxu0 %v244
    %1494 = vmatpush.msra.mxu0 %v240
    %1495 = vmatmul.f32.gmra.mxu0 %v1457
    %v1496 = vpop.f32.mrf.mxu0
    %v1497 = vadd.f32 0.0, %v1496
    %1498 = vdwg.mxu0
    %1499 = vmatpush.msra.mxu0 %v301
    %1500 = vmatpush.msra.mxu0 %v297
    %1501 = vmatpush.msra.mxu0 %v293
    %1502 = vmatpush.msra.mxu0 %v289
    %1503 = vmatpush.msra.mxu0 %v285
    %1504 = vmatpush.msra.mxu0 %v281
    %1505 = vmatpush.msra.mxu0 %v277
    %1506 = vmatpush.msra.mxu0 %v273
    %1507 = vmatpush.msra.mxu0 %v269
    %1508 = vmatpush.msra.mxu0 %v265
    %1509 = vmatpush.msra.mxu0 %v261
    %1510 = vmatpush.msra.mxu0 %v257
    %1511 = vmatpush.msra.mxu0 %v253
    %1512 = vmatpush.msra.mxu0 %v249
    %1513 = vmatpush.msra.mxu0 %v245
    %1514 = vmatpush.msra.mxu0 %v241
    %1515 = vmatmul.f32.gmra.mxu0 %v1457
    %v1516 = vpop.f32.mrf.mxu0
    %v1517 = vadd.f32 0.0, %v1516
    %1518 = vdwg.mxu0
    %1519 = vmatpush.msra.mxu0 %v302
    %1520 = vmatpush.msra.mxu0 %v298
    %1521 = vmatpush.msra.mxu0 %v294
    %1522 = vmatpush.msra.mxu0 %v290
    %1523 = vmatpush.msra.mxu0 %v286
    %1524 = vmatpush.msra.mxu0 %v282
    %1525 = vmatpush.msra.mxu0 %v278
    %1526 = vmatpush.msra.mxu0 %v274
    %1527 = vmatpush.msra.mxu0 %v270
    %1528 = vmatpush.msra.mxu0 %v266
    %1529 = vmatpush.msra.mxu0 %v262
    %1530 = vmatpush.msra.mxu0 %v258
    %1531 = vmatpush.msra.mxu0 %v254
    %1532 = vmatpush.msra.mxu0 %v250
    %1533 = vmatpush.msra.mxu0 %v246
    %1534 = vmatpush.msra.mxu0 %v242
    %1535 = vmatmul.f32.gmra.mxu0 %v1457
    %v1536 = vpop.f32.mrf.mxu0
    %v1537 = vadd.f32 0.0, %v1536
    %1538 = vdwg.mxu0
    %v1543 = vrot.slane %v1477, 2
    %v1544 = vrot.slane %v1497, 2
    %v1545 = vrot.slane %v1517, 2
    %v1546 = vrot.slane %v1537, 2
    %v1551 = vadd.f32 %v1452, %v1543
    %v1552 = vadd.f32 %v1453, %v1544
    %v1553 = vadd.f32 %v1454, %v1545
    %v1554 = vadd.f32 %v1455, %v1546
    %v1555 = vxor.u32 %v1551, 2147483648
    %v1556 = vmul.f32 %v1555, 1.442695
    %v1557 = vpow.pop %v1556
    %v1558 = vadd.f32 %v1557, 1.0
    %v1559 = vrcp.pop %v1558
    %v1560 = vmul.f32 %v1558, %v1559
    %v1561 = vsub.f32 1.0, %v1560
    %v1562 = vmul.f32 %v1559, %v1561
    %v1563 = vadd.f32 %v1559, %v1562
    %vm1564 = vweird.f32 %v1558
    %vm1565 = vweird.f32 %v1559
    %vm1566 = vmor %vm1564, %vm1565
    %v1567 = vsel %vm1566, %v1559, %v1563
    %v1568 = vand.u32 2147483647, %v1558
    %vm1569 = vcmp.eq.f32.partialorder %v1568, 8.507059e+37
    %v1570 = vand.u32 %v1558, 2147483648
    %v1571 = vor.u32 1.1754944e-38, %v1570
    %v1572 = vsel %vm1569, %v1571, %v1567
    %v1573 = vmul.f32 1.0, %v1572
    %v1574 = vxor.u32 %v1552, 2147483648
    %v1575 = vmul.f32 %v1574, 1.442695
    %v1576 = vpow.pop %v1575
    %v1577 = vadd.f32 %v1576, 1.0
    %v1578 = vrcp.pop %v1577
    %v1579 = vmul.f32 %v1577, %v1578
    %v1580 = vsub.f32 1.0, %v1579
    %v1581 = vmul.f32 %v1578, %v1580
    %v1582 = vadd.f32 %v1578, %v1581
    %vm1583 = vweird.f32 %v1577
    %vm1584 = vweird.f32 %v1578
    %vm1585 = vmor %vm1583, %vm1584
    %v1586 = vsel %vm1585, %v1578, %v1582
    %v1587 = vand.u32 2147483647, %v1577
    %vm1588 = vcmp.eq.f32.partialorder %v1587, 8.507059e+37
    %v1589 = vand.u32 %v1577, 2147483648
    %v1590 = vor.u32 1.1754944e-38, %v1589
    %v1591 = vsel %vm1588, %v1590, %v1586
    %v1592 = vmul.f32 1.0, %v1591
    %v1593 = vtanh.pop %v1553
    %v1594 = vxor.u32 %v1554, 2147483648
    %v1595 = vmul.f32 %v1594, 1.442695
    %v1596 = vpow.pop %v1595
    %v1597 = vadd.f32 %v1596, 1.0
    %v1598 = vrcp.pop %v1597
    %v1599 = vmul.f32 %v1597, %v1598
    %v1600 = vsub.f32 1.0, %v1599
    %v1601 = vmul.f32 %v1598, %v1600
    %v1602 = vadd.f32 %v1598, %v1601
    %vm1603 = vweird.f32 %v1597
    %vm1604 = vweird.f32 %v1598
    %vm1605 = vmor %vm1603, %vm1604
    %v1606 = vsel %vm1605, %v1598, %v1602
    %v1607 = vand.u32 2147483647, %v1597
    %vm1608 = vcmp.eq.f32.partialorder %v1607, 8.507059e+37
    %v1609 = vand.u32 %v1597, 2147483648
    %v1610 = vor.u32 1.1754944e-38, %v1609
    %v1611 = vsel %vm1608, %v1610, %v1606
    %v1612 = vmul.f32 1.0, %v1611
    %v1614 = vrot.slane %v1449, 6
    %v1616 = vmul.f32 %v1592, %v1614
    %v1617 = vmul.f32 %v1573, %v1593
    %v1618 = vadd.f32 %v1616, %v1617
    %v1619 = vtanh.pop %v1618
    %v1620 = vmul.f32 %v1612, %v1619
    %1621 = vst [vmem:[#allocation2 - $0x6] sm:$0xc0] %v1620
    %1622 = vst [vmem:[#allocation3 - $0x6] sm:$0xc0] %v1618
    // Predicated region
    $region38: #{lstm_forward.3} parent=1 // pred_check
      %p1623 = pneg %p57
    $region39: #{lstm_forward.3} parent=1 // pred_check_branch
      %1625 = sbr.rel (%p1623) target = $region41
    $region40: #{lstm_forward.3} parent=1 // pred_region
      %v1626 = vld [vmem:[%s4] sm:$0xff]
      %v1627 = vld [vmem:[%s4 + $0x8] sm:$0xff]
      %v1628 = vld [vmem:[%s4 + $0x10] sm:$0xff]
      %v1629 = vld [vmem:[%s4 + $0x18] sm:$0xff]
      %v1630 = vld [vmem:[%s4 + $0x20] sm:$0xff]
      %v1631 = vld [vmem:[%s4 + $0x28] sm:$0xff]
      %v1632 = vld [vmem:[%s4 + $0x30] sm:$0xff]
      %v1633 = vld [vmem:[%s4 + $0x38] sm:$0xff]
      %v1634 = vld [vmem:[%s4 + $0x40] sm:$0xff]
      %v1635 = vld [vmem:[%s4 + $0x48] sm:$0xff]
      %v1636 = vld [vmem:[%s4 + $0x50] sm:$0xff]
      %v1637 = vld [vmem:[%s4 + $0x58] sm:$0xff]
      %v1638 = vld [vmem:[%s4 + $0x60] sm:$0xff]
      %v1639 = vld [vmem:[%s4 + $0x68] sm:$0xff]
      %v1640 = vld [vmem:[%s4 + $0x70] sm:$0xff]
      %v1641 = vld [vmem:[%s4 + $0x78] sm:$0xff]
      %v1642 = vld [vmem:[#allocation5] sm:$0x1]
      %v1644 = vperm.slane %v1642, 0
      %v1647 = vrot.slane %v1620, 6
      %1649 = vmatpush.msra.mxu0 %v1641
      %1650 = vmatpush.msra.mxu0 %v1640
      %1651 = vmatpush.msra.mxu0 %v1639
      %1652 = vmatpush.msra.mxu0 %v1638
      %1653 = vmatpush.msra.mxu0 %v1637
      %1654 = vmatpush.msra.mxu0 %v1636
      %1655 = vmatpush.msra.mxu0 %v1635
      %1656 = vmatpush.msra.mxu0 %v1634
      %1657 = vmatpush.msra.mxu0 %v1633
      %1658 = vmatpush.msra.mxu0 %v1632
      %1659 = vmatpush.msra.mxu0 %v1631
      %1660 = vmatpush.msra.mxu0 %v1630
      %1661 = vmatpush.msra.mxu0 %v1629
      %1662 = vmatpush.msra.mxu0 %v1628
      %1663 = vmatpush.msra.mxu0 %v1627
      %1664 = vmatpush.msra.mxu0 %v1626
      %1665 = vmatmul.f32.gmra.mxu0 %v1647
      %v1666 = vpop.f32.mrf.mxu0
      %v1667 = vadd.f32 %v1644, %v1666
      %1668 = vdwg.mxu0
      %vm1669 = vcmask 1024
      %1670 = vst.msk [vmem:[%s6] sm:$0x3] %vm1669, %v1667
    $region41: #{lstm_forward.3} parent=1 // pred_fallthru
      _
    // Predicated region
    $region42: #{lstm_forward.3} parent=1 // pred_check
      _
    $region43: #{lstm_forward.3} parent=1 // pred_check_branch
      %1672 = sbr.rel (0) target = $region45
    $region44: #{lstm_forward.3} parent=1 // pred_region
      _
    $region45: #{lstm_forward.3} parent=1 // pred_fallthru
      _
    // Predicated region
    $region46: #{lstm_forward.3} parent=1 // pred_check
      _
    $region47: #{lstm_forward.3} parent=1 // pred_check_branch
      %1674 = sbr.rel (0) target = $region49
    $region48: #{lstm_forward.3} parent=1 // pred_region
      _
    $region49: #{lstm_forward.3} parent=1 // pred_fallthru
      _
    %1675 = vsyncpa [#allocation7], 1
    %1676 = vsyncpa [#allocation9], 1

</llo_original>
